<compile_context>
chip_gen: v5e
topology: v5e:2x2
jax: 0.10.0
libtpu: 0.0.40
codegen_flags: <defaults>
</compile_context>

<pallas_src>
import functools
import math

import jax
import jax.numpy as jnp
from jax.experimental import pallas as pl
from jax.experimental.pallas import tpu as pltpu

# ----------------------- model hyper-parameters (small) -----------------------
VOCAB = 512          # stand-in for len(BertTokenizer.vocab) (30522), kept small
EMBED = 128          # embed_dim (768 in the reference, kept small)
NUM_Q = 8            # num_query_tokens (32 in the reference, kept small)
NUM_HEADS = 4
HEAD_DIM = EMBED // NUM_HEADS
FFN = 256
PATCH = 8
IMG_C, IMG_HW = 3, 32
N_PATCH = (IMG_HW // PATCH) ** 2
SEQ = 8
BATCH = 2
NEG_INF = -1e9
LN_EPS = 1e-5
_VMEM_LIMIT = 32 * 1024 * 1024   # explicit scoped-VMEM budget (safe on v5e/v6e/v7x)


# ------------------------------ in-kernel helpers ------------------------------


def _ln(x, g, b, eps):
    """LayerNorm over the last dim, f32 math (rsqrt -> EUP)."""
    mu = jnp.mean(x, axis=-1, keepdims=True)
    xc = x - mu
    var = jnp.mean(xc * xc, axis=-1, keepdims=True)
    return xc * jax.lax.rsqrt(var + eps) * g + b


def _mha(q, k, v, bias, att_ref, num_heads, scale):
    """Multi-head attention with heads kept folded in the lane dimension.

    q: (Lq, D) f32, k/v: (Lk, D) f32 or bf16, bias: (Lq, Lk) additive f32 or None.
    Per-head score matrices are stacked along the sublane axis so the softmax
    (max/exp/sum/reciprocal) runs once on fuller vregs; each P.V product is
    stored into its lane range of the (Lq, D) f32 VMEM scratch `att_ref`
    instead of a lane concat.  Returns the (Lq, D) f32 attention output.
    """
    D = q.shape[-1]
    Lq = q.shape[0]
    dh = D // num_heads
    qb = q.astype(jnp.bfloat16)
    kb = k.astype(jnp.bfloat16)
    vb = v.astype(jnp.bfloat16)

    scores = []
    for h in range(num_heads):
        lo = h * dh
        # (Lq, dh) x (Lk, dh) contracting on dh -> (Lq, Lk); no explicit transpose.
        scores.append(jax.lax.dot_general(
            qb[:, lo:lo + dh], kb[:, lo:lo + dh], (((1,), (1,)), ((), ())),
            preferred_element_type=jnp.float32))
    s_all = jnp.concatenate(scores, axis=0) * scale            # (H*Lq, Lk)
    if bias is not None:
        s_all = s_all + jnp.concatenate([bias] * num_heads, axis=0)

    m = jnp.max(s_all, axis=-1, keepdims=True)
    p = jnp.exp(s_all - m)
    l = jnp.sum(p, axis=-1, keepdims=True)
    p = (p * pl.reciprocal(l, approx=True)).astype(jnp.bfloat16)

    for h in range(num_heads):
        lo = h * dh
        att_ref[:, lo:lo + dh] = jnp.dot(
            p[h * Lq:(h + 1) * Lq], vb[:, lo:lo + dh],
            preferred_element_type=jnp.float32)
    return att_ref[...]


# ------------------------------ Pallas kernels --------------------------------


def _vision_qformer_kernel(
        patch_ref, pw_ref, pb_ref, pos_ref, ig_ref, ib_ref, qtok_ref,
        awq_ref, abq_ref, awkv_ref, abkv_ref, awo_ref, abo_ref, ag_ref, ab_ref,
        fw1_ref, fb1_ref, fw2_ref, fb2_ref, fg_ref, fb_ref,
        mem_ref, att_ref, *, num_heads, scale, eps):
    """Fused image encoder + QFormer for one sample (all activations in VMEM)."""
    D = pw_ref.shape[-1]

    # ---- ImageEncoder: patch-embed matmul + positional add + LayerNorm ----
    img = jnp.dot(patch_ref[0].astype(jnp.bfloat16), pw_ref[...],
                  preferred_element_type=jnp.float32) + pb_ref[...] + pos_ref[...]
    img = _ln(img, ig_ref[...], ib_ref[...], eps)               # (N, D) f32

    # ---- QFormer cross-attention block (queries attend to image features) ----
    q_in = qtok_ref[...]                                        # (NUM_Q, D) f32
    q = jnp.dot(q_in.astype(jnp.bfloat16), awq_ref[...],
                preferred_element_type=jnp.float32) + abq_ref[...]
    kv = jnp.dot(img.astype(jnp.bfloat16), awkv_ref[...],
                 preferred_element_type=jnp.float32) + abkv_ref[...]
    att = _mha(q, kv[:, :D], kv[:, D:], None, att_ref, num_heads, scale)
    proj = jnp.dot(att.astype(jnp.bfloat16), awo_ref[...],
                   preferred_element_type=jnp.float32) + abo_ref[...]
    x = _ln(q_in + proj, ag_ref[...], ab_ref[...], eps)          # (NUM_Q, D) f32

    # ---- QFormer FFN block ----
    h = jnp.dot(x.astype(jnp.bfloat16), fw1_ref[...],
                preferred_element_type=jnp.float32) + fb1_ref[...]
    # TODO(synk): PyTorch nn.GELU defaults to exact erf; tanh approximation used here.
    h = jax.nn.gelu(h)
    y = jnp.dot(h.astype(jnp.bfloat16), fw2_ref[...],
                preferred_element_type=jnp.float32) + fb2_ref[...]
    mem_ref[0] = _ln(x + y, fg_ref[...], fb_ref[...], eps).astype(mem_ref.dtype)


def _decoder_kernel(
        tok_ref, mem_ref, mask_ref, pad_ref,
        swqkv_ref, sbqkv_ref, swo_ref, sbo_ref, sg_ref, sb_ref,
        cwq_ref, cbq_ref, cwkv_ref, cbkv_ref, cwo_ref, cbo_ref, cg_ref, cb_ref,
        fw1_ref, fb1_ref, fw2_ref, fb2_ref, fg_ref, fb_ref,
        out_ref, att_ref, *, num_heads, scale, eps):
    """Fused text-decoder layer for one sample: self-attn + cross-attn + FFN."""
    x = tok_ref[0]                                              # (S, D) f32
    D = x.shape[-1]
    bias = mask_ref[...] + pad_ref[0]                           # causal + key padding

    # ---- masked self-attention block (fused QKV projection) ----
    qkv = jnp.dot(x.astype(jnp.bfloat16), swqkv_ref[...],
                  preferred_element_type=jnp.float32) + sbqkv_ref[...]
    att = _mha(qkv[:, :D], qkv[:, D:2 * D], qkv[:, 2 * D:], bias, att_ref,
               num_heads, scale)
    proj = jnp.dot(att.astype(jnp.bfloat16), swo_ref[...],
                   preferred_element_type=jnp.float32) + sbo_ref[...]
    x = _ln(x + proj, sg_ref[...], sb_ref[...], eps)

    # ---- cross-attention to the QFormer memory (fused KV projection) ----
    q = jnp.dot(x.astype(jnp.bfloat16), cwq_ref[...],
                preferred_element_type=jnp.float32) + cbq_ref[...]
    kv = jnp.dot(mem_ref[0], cwkv_ref[...],
                 preferred_element_type=jnp.float32) + cbkv_ref[...]
    att = _mha(q, kv[:, :D], kv[:, D:], None, att_ref, num_heads, scale)
    proj = jnp.dot(att.astype(jnp.bfloat16), cwo_ref[...],
                   preferred_element_type=jnp.float32) + cbo_ref[...]
    x = _ln(x + proj, cg_ref[...], cb_ref[...], eps)

    # ---- FFN block ----
    h = jnp.dot(x.astype(jnp.bfloat16), fw1_ref[...],
                preferred_element_type=jnp.float32) + fb1_ref[...]
    # TODO(synk): exact erf GELU (PyTorch default) once erf lowering is guaranteed.
    h = jax.nn.gelu(h)
    y = jnp.dot(h.astype(jnp.bfloat16), fw2_ref[...],
                preferred_element_type=jnp.float32) + fb2_ref[...]
    out_ref[0] = _ln(x + y, fg_ref[...], fb_ref[...], eps).astype(out_ref.dtype)


def _lm_head_kernel(x_ref, w_ref, b_ref, o_ref):
    """Output-projection tile: full K resident, lane-dense (M, tn) output tile."""
    o_ref[...] = (jnp.dot(x_ref[...], w_ref[...],
                          preferred_element_type=jnp.float32)
                  + b_ref[...]).astype(o_ref.dtype)


# ------------------------------ pallas_call wrappers ---------------------------

_PARALLEL_1D = pltpu.CompilerParams(
    dimension_semantics=("parallel",), vmem_limit_bytes=_VMEM_LIMIT)


def _c2(shape):
    """Constant (grid-invariant) 2-D weight BlockSpec."""
    return pl.BlockSpec(shape, lambda i: (0, 0))


def vision_qformer(patches, p, eps=LN_EPS):
    """patches: (B, N, C*p*p) -> QFormer memory (B, NUM_Q, D) bf16; grid over B."""
    B, N, Cpp = patches.shape
    D = EMBED
    a, f = p["qf_attn"], p["qf_ffn"]
    scale = 1.0 / math.sqrt(HEAD_DIM)
    return pl.pallas_call(
        functools.partial(_vision_qformer_kernel, num_heads=NUM_HEADS,
                          scale=scale, eps=eps),
        out_shape=jax.ShapeDtypeStruct((B, NUM_Q, D), jnp.bfloat16),
        grid=(B,),
        in_specs=[
            pl.BlockSpec((1, N, Cpp), lambda i: (i, 0, 0)),
            _c2((Cpp, D)), _c2((1, D)), _c2((N, D)), _c2((1, D)), _c2((1, D)),
            _c2((NUM_Q, D)),
            _c2((D, D)), _c2((1, D)), _c2((D, 2 * D)), _c2((1, 2 * D)),
            _c2((D, D)), _c2((1, D)), _c2((1, D)), _c2((1, D)),
            _c2((D, FFN)), _c2((1, FFN)), _c2((FFN, D)), _c2((1, D)),
            _c2((1, D)), _c2((1, D)),
        ],
        out_specs=pl.BlockSpec((1, NUM_Q, D), lambda i: (i, 0, 0)),
        scratch_shapes=[pltpu.VMEM((NUM_Q, D), jnp.float32)],
        compiler_params=_PARALLEL_1D,
    )(patches,
      p["patch_w"], p["patch_b"].reshape(1, D), p["img_pos"],
      p["img_ln_g"].reshape(1, D), p["img_ln_b"].reshape(1, D),
      p["query_tokens"],
      a["wq"], a["bq"].reshape(1, D), a["wkv"], a["bkv"].reshape(1, 2 * D),
      a["wo"], a["bo"].reshape(1, D), a["ln_g"].reshape(1, D), a["ln_b"].reshape(1, D),
      f["w1"], f["b1"].reshape(1, FFN), f["w2"], f["b2"].reshape(1, D),
      f["ln_g"].reshape(1, D), f["ln_b"].reshape(1, D))


def decoder(tok, memory, tgt_mask, pad_bias, p, eps=LN_EPS):
    """tok: (B, S, D) f32, memory: (B, NUM_Q, D) bf16 -> hidden (B, S, D) bf16."""
    B, S, D = tok.shape
    sa, ca, f = p["dec_self_attn"], p["dec_cross_attn"], p["dec_ffn"]
    scale = 1.0 / math.sqrt(HEAD_DIM)
    return pl.pallas_call(
        functools.partial(_decoder_kernel, num_heads=NUM_HEADS, scale=scale, eps=eps),
        out_shape=jax.ShapeDtypeStruct((B, S, D), jnp.bfloat16),
        grid=(B,),
        in_specs=[
            pl.BlockSpec((1, S, D), lambda i: (i, 0, 0)),
            pl.BlockSpec((1, NUM_Q, D), lambda i: (i, 0, 0)),
            _c2((S, S)),
            pl.BlockSpec((1, 1, S), lambda i: (i, 0, 0)),
            _c2((D, 3 * D)), _c2((1, 3 * D)), _c2((D, D)), _c2((1, D)),
            _c2((1, D)), _c2((1, D)),
            _c2((D, D)), _c2((1, D)), _c2((D, 2 * D)), _c2((1, 2 * D)),
            _c2((D, D)), _c2((1, D)), _c2((1, D)), _c2((1, D)),
            _c2((D, FFN)), _c2((1, FFN)), _c2((FFN, D)), _c2((1, D)),
            _c2((1, D)), _c2((1, D)),
        ],
        out_specs=pl.BlockSpec((1, S, D), lambda i: (i, 0, 0)),
        scratch_shapes=[pltpu.VMEM((S, D), jnp.float32)],
        compiler_params=_PARALLEL_1D,
    )(tok, memory, tgt_mask, pad_bias,
      sa["wqkv"], sa["bqkv"].reshape(1, 3 * D), sa["wo"], sa["bo"].reshape(1, D),
      sa["ln_g"].reshape(1, D), sa["ln_b"].reshape(1, D),
      ca["wq"], ca["bq"].reshape(1, D), ca["wkv"], ca["bkv"].reshape(1, 2 * D),
      ca["wo"], ca["bo"].reshape(1, D), ca["ln_g"].reshape(1, D), ca["ln_b"].reshape(1, D),
      f["w1"], f["b1"].reshape(1, FFN), f["w2"], f["b2"].reshape(1, D),
      f["ln_g"].reshape(1, D), f["ln_b"].reshape(1, D))


def lm_head(x, w, b, tn=256):
    """x: (M, D) bf16, w: (D, V) bf16 -> (M, V) f32.  Vocab-tiled, lane-dense
    output tiles.  Raise tn to 1024-2048 when scaling to the real 30522 vocab."""
    M, D = x.shape
    V = w.shape[1]
    assert V % tn == 0
    return pl.pallas_call(
        _lm_head_kernel,
        out_shape=jax.ShapeDtypeStruct((M, V), jnp.float32),
        grid=(V // tn,),
        in_specs=[
            pl.BlockSpec((M, D), lambda j: (0, 0)),
            pl.BlockSpec((D, tn), lambda j: (0, j)),
            pl.BlockSpec((1, tn), lambda j: (0, j)),
        ],
        out_specs=pl.BlockSpec((M, tn), lambda j: (0, j)),
        compiler_params=_PARALLEL_1D,
    )(x, w, b.reshape(1, V))


# ------------------------------ forward pass -----------------------------------


def blip_forward(params, images, tgt_tokens, tgt_mask=None, tgt_key_padding_mask=None):
    B, C, H, W = images.shape
    p_sz, D = PATCH, EMBED
    nh, nw = H // p_sz, W // p_sz
    N = nh * nw

    # TODO(synk): patch extraction kept as an XLA transpose; fold into the kernel
    # via index_map when scaling to real 224x224 inputs.
    patches = (
        images.reshape(B, C, nh, p_sz, nw, p_sz)
        .transpose(0, 2, 4, 1, 3, 5)
        .reshape(B, N, C * p_sz * p_sz)
    )

    # ---- kernel 1: ImageEncoder + QFormer (fused, bf16 memory out) ----
    memory = vision_qformer(patches, params)

    # ---- kernel 2: TextDecoder (self-attn + cross-attn + FFN fused) ----
    S = tgt_tokens.shape[1]
    tok = (params["tok_emb"][tgt_tokens] + params["txt_pos"][0, :S]).astype(jnp.float32)

    if tgt_mask is None:
        tgt_mask = jnp.zeros((S, S), jnp.float32)
    if tgt_key_padding_mask is not None:
        pad_bias = jnp.where(tgt_key_padding_mask, NEG_INF, 0.0).astype(jnp.float32)[:, None, :]
    else:
        pad_bias = jnp.zeros((B, 1, S), jnp.float32)

    hidden = decoder(tok, memory, tgt_mask.astype(jnp.float32), pad_bias, params)

    # ---- kernel 3: LM head (vocab-tiled) ----
    logits = lm_head(hidden.reshape(B * S, D), params["lm_w"], params["lm_b"])
    return logits.reshape(B, S, VOCAB)


# ------------------------------ parameter init ---------------------------------


def init_params(key):
    keys = iter(jax.random.split(key, 64))

    def dense(shape, dtype=jnp.bfloat16):
        # matmul weights stored bf16 (MXU operands); norms/biases stay f32
        return (jax.random.normal(next(keys), shape, jnp.float32) * 0.02).astype(dtype)

    ones = jnp.ones((EMBED,), jnp.float32)
    zeros = jnp.zeros((EMBED,), jnp.float32)

    def self_attn_p():
        return {
            "wqkv": dense((EMBED, 3 * EMBED)),
            "bqkv": jnp.zeros((3 * EMBED,), jnp.float32),
            "wo": dense((EMBED, EMBED)), "bo": zeros,
            "ln_g": ones, "ln_b": zeros,
        }

    def cross_attn_p():
        return {
            "wq": dense((EMBED, EMBED)), "bq": zeros,
            "wkv": dense((EMBED, 2 * EMBED)),
            "bkv": jnp.zeros((2 * EMBED,), jnp.float32),
            "wo": dense((EMBED, EMBED)), "bo": zeros,
            "ln_g": ones, "ln_b": zeros,
        }

    def ffn_p():
        return {
            "w1": dense((EMBED, FFN)), "b1": jnp.zeros((FFN,), jnp.float32),
            "w2": dense((FFN, EMBED)), "b2": zeros,
            "ln_g": ones, "ln_b": zeros,
        }

    return {
        # image encoder
        "patch_w": dense((IMG_C * PATCH * PATCH, EMBED)),
        "patch_b": jnp.zeros((EMBED,), jnp.float32),
        "img_pos": dense((N_PATCH, EMBED), jnp.float32),
        "img_ln_g": ones, "img_ln_b": zeros,
        # qformer
        "query_tokens": dense((NUM_Q, EMBED), jnp.float32),
        "qf_attn": cross_attn_p(), "qf_ffn": ffn_p(),
        # text decoder
        "tok_emb": dense((VOCAB, EMBED), jnp.float32),
        "txt_pos": dense((1, SEQ, EMBED), jnp.float32),
        "dec_self_attn": self_attn_p(),
        "dec_cross_attn": cross_attn_p(),
        "dec_ffn": ffn_p(),
        # LM head
        "lm_w": dense((EMBED, VOCAB)),
        "lm_b": jnp.zeros((VOCAB,), jnp.float32),
    }


# ------------------------------------ main --------------------------------------

if __name__ == "__main__":
    root = jax.random.PRNGKey(0)
    k_param, k_img, k_tok = jax.random.split(root, 3)

    params = init_params(k_param)
    images = jax.random.normal(k_img, (BATCH, IMG_C, IMG_HW, IMG_HW), jnp.float32)
    tgt_tokens = jax.random.randint(k_tok, (BATCH, SEQ), 0, VOCAB, jnp.int32)

    # PyTorch-style causal mask (additive float, upper triangle masked)
    tgt_mask = jnp.where(
        jnp.triu(jnp.ones((SEQ, SEQ), jnp.bool_), k=1), NEG_INF, 0.0
    ).astype(jnp.float32)
    # key-padding mask: True = padded position (last token of sample 1 padded)
    tgt_key_padding_mask = jnp.zeros((BATCH, SEQ), jnp.bool_).at[1, SEQ - 1].set(True)

    fwd = jax.jit(blip_forward)
    logits = fwd(params, images, tgt_tokens, tgt_mask, tgt_key_padding_mask)
    jax.block_until_ready(logits)

    assert logits.shape == (BATCH, SEQ, VOCAB), logits.shape
    assert bool(jnp.all(jnp.isfinite(logits)))
    print("KERNEL_OK")
</pallas_src>

<mosaic_0001>
module attributes {stable_mosaic.version = 11 : i64} {
  func.func @_vision_qformer_kernel(%arg0: i32, %arg1: memref<1x16x192xf32, #tpu.memory_space<vmem>>, %arg2: memref<192x128xbf16, #tpu.memory_space<vmem>>, %arg3: memref<1x128xf32, #tpu.memory_space<vmem>>, %arg4: memref<16x128xf32, #tpu.memory_space<vmem>>, %arg5: memref<1x128xf32, #tpu.memory_space<vmem>>, %arg6: memref<1x128xf32, #tpu.memory_space<vmem>>, %arg7: memref<8x128xf32, #tpu.memory_space<vmem>>, %arg8: memref<128x128xbf16, #tpu.memory_space<vmem>>, %arg9: memref<1x128xf32, #tpu.memory_space<vmem>>, %arg10: memref<128x256xbf16, #tpu.memory_space<vmem>>, %arg11: memref<1x256xf32, #tpu.memory_space<vmem>>, %arg12: memref<128x128xbf16, #tpu.memory_space<vmem>>, %arg13: memref<1x128xf32, #tpu.memory_space<vmem>>, %arg14: memref<1x128xf32, #tpu.memory_space<vmem>>, %arg15: memref<1x128xf32, #tpu.memory_space<vmem>>, %arg16: memref<128x256xbf16, #tpu.memory_space<vmem>>, %arg17: memref<1x256xf32, #tpu.memory_space<vmem>>, %arg18: memref<256x128xbf16, #tpu.memory_space<vmem>>, %arg19: memref<1x128xf32, #tpu.memory_space<vmem>>, %arg20: memref<1x128xf32, #tpu.memory_space<vmem>>, %arg21: memref<1x128xf32, #tpu.memory_space<vmem>>, %arg22: memref<1x8x128xbf16, #tpu.memory_space<vmem>>, %arg23: memref<8x128xf32, #tpu.memory_space<vmem>>) attributes {dimension_semantics = [#tpu.dimension_semantics<parallel>], iteration_bounds = array<i64: 2>, scalar_prefetch = 0 : i64, scratch_operands = 1 : i64, tpu.core_type = #tpu.core_type<tc>, window_params = [{transform_indices = @transform_0, window_bounds = array<i64: 1, 16, 192>}, {pipeline_mode = #tpu.pipeline_mode<synchronous>, transform_indices = @transform_1, window_bounds = array<i64: 192, 128>}, {pipeline_mode = #tpu.pipeline_mode<synchronous>, transform_indices = @transform_2, window_bounds = array<i64: 1, 128>}, {pipeline_mode = #tpu.pipeline_mode<synchronous>, transform_indices = @transform_3, window_bounds = array<i64: 16, 128>}, {pipeline_mode = #tpu.pipeline_mode<synchronous>, transform_indices = @transform_4, window_bounds = array<i64: 1, 128>}, {pipeline_mode = #tpu.pipeline_mode<synchronous>, transform_indices = @transform_5, window_bounds = array<i64: 1, 128>}, {pipeline_mode = #tpu.pipeline_mode<synchronous>, transform_indices = @transform_6, window_bounds = array<i64: 8, 128>}, {pipeline_mode = #tpu.pipeline_mode<synchronous>, transform_indices = @transform_7, window_bounds = array<i64: 128, 128>}, {pipeline_mode = #tpu.pipeline_mode<synchronous>, transform_indices = @transform_8, window_bounds = array<i64: 1, 128>}, {pipeline_mode = #tpu.pipeline_mode<synchronous>, transform_indices = @transform_9, window_bounds = array<i64: 128, 256>}, {pipeline_mode = #tpu.pipeline_mode<synchronous>, transform_indices = @transform_10, window_bounds = array<i64: 1, 256>}, {pipeline_mode = #tpu.pipeline_mode<synchronous>, transform_indices = @transform_11, window_bounds = array<i64: 128, 128>}, {pipeline_mode = #tpu.pipeline_mode<synchronous>, transform_indices = @transform_12, window_bounds = array<i64: 1, 128>}, {pipeline_mode = #tpu.pipeline_mode<synchronous>, transform_indices = @transform_13, window_bounds = array<i64: 1, 128>}, {pipeline_mode = #tpu.pipeline_mode<synchronous>, transform_indices = @transform_14, window_bounds = array<i64: 1, 128>}, {pipeline_mode = #tpu.pipeline_mode<synchronous>, transform_indices = @transform_15, window_bounds = array<i64: 128, 256>}, {pipeline_mode = #tpu.pipeline_mode<synchronous>, transform_indices = @transform_16, window_bounds = array<i64: 1, 256>}, {pipeline_mode = #tpu.pipeline_mode<synchronous>, transform_indices = @transform_17, window_bounds = array<i64: 256, 128>}, {pipeline_mode = #tpu.pipeline_mode<synchronous>, transform_indices = @transform_18, window_bounds = array<i64: 1, 128>}, {pipeline_mode = #tpu.pipeline_mode<synchronous>, transform_indices = @transform_19, window_bounds = array<i64: 1, 128>}, {pipeline_mode = #tpu.pipeline_mode<synchronous>, transform_indices = @transform_20, window_bounds = array<i64: 1, 128>}, {transform_indices = @transform_21, window_bounds = array<i64: 1, 8, 128>}]} {
    %c0 = arith.constant 0 : index
    %c0_0 = arith.constant 0 : index
    %c0_1 = arith.constant 0 : index
    %0 = vector.load %arg1[%c0, %c0_0, %c0_1] : memref<1x16x192xf32, #tpu.memory_space<vmem>>, vector<1x16x192xf32>
    %1 = vector.shape_cast %0 : vector<1x16x192xf32> to vector<16x192xf32>
    %2 = arith.truncf %1 : vector<16x192xf32> to vector<16x192xbf16>
    %c0_2 = arith.constant 0 : index
    %c0_3 = arith.constant 0 : index
    %3 = vector.load %arg2[%c0_2, %c0_3] : memref<192x128xbf16, #tpu.memory_space<vmem>>, vector<192x128xbf16>
    %cst = arith.constant dense<0.000000e+00> : vector<16x128xf32>
    %4 = tpu.matmul %2, %3, %cst {dimension_numbers = #tpu.dot_dimension_numbers<[1], [0], [0], [1], [0, 0, 1, 1], [], []>} : vector<16x192xbf16>, vector<192x128xbf16>, vector<16x128xf32> -> vector<16x128xf32>
    %c0_4 = arith.constant 0 : index
    %c0_5 = arith.constant 0 : index
    %5 = vector.load %arg3[%c0_4, %c0_5] : memref<1x128xf32, #tpu.memory_space<vmem>>, vector<1x128xf32>
    %6 = vector.broadcast %5 : vector<1x128xf32> to vector<16x128xf32>
    %7 = arith.addf %4, %6 : vector<16x128xf32>
    %c0_6 = arith.constant 0 : index
    %c0_7 = arith.constant 0 : index
    %8 = vector.load %arg4[%c0_6, %c0_7] : memref<16x128xf32, #tpu.memory_space<vmem>>, vector<16x128xf32>
    %9 = arith.addf %7, %8 : vector<16x128xf32>
    %c0_8 = arith.constant 0 : index
    %c0_9 = arith.constant 0 : index
    %10 = vector.load %arg5[%c0_8, %c0_9] : memref<1x128xf32, #tpu.memory_space<vmem>>, vector<1x128xf32>
    %c0_10 = arith.constant 0 : index
    %c0_11 = arith.constant 0 : index
    %11 = vector.load %arg6[%c0_10, %c0_11] : memref<1x128xf32, #tpu.memory_space<vmem>>, vector<1x128xf32>
    %cst_12 = arith.constant dense<0.000000e+00> : vector<16xf32>
    %12 = vector.multi_reduction <add>, %9, %cst_12 [1] : vector<16x128xf32> to vector<16xf32>
    %13 = vector.shape_cast %12 : vector<16xf32> to vector<16x1xf32>
    %cst_13 = arith.constant 1.280000e+02 : f32
    %14 = vector.broadcast %cst_13 : f32 to vector<16x1xf32>
    %15 = arith.divf %13, %14 : vector<16x1xf32>
    %16 = vector.broadcast %15 : vector<16x1xf32> to vector<16x128xf32>
    %17 = arith.subf %9, %16 : vector<16x128xf32>
    %18 = arith.mulf %17, %17 : vector<16x128xf32>
    %cst_14 = arith.constant dense<0.000000e+00> : vector<16xf32>
    %19 = vector.multi_reduction <add>, %18, %cst_14 [1] : vector<16x128xf32> to vector<16xf32>
    %20 = vector.shape_cast %19 : vector<16xf32> to vector<16x1xf32>
    %cst_15 = arith.constant 1.280000e+02 : f32
    %21 = vector.broadcast %cst_15 : f32 to vector<16x1xf32>
    %22 = arith.divf %20, %21 : vector<16x1xf32>
    %cst_16 = arith.constant 9.99999974E-6 : f32
    %23 = vector.broadcast %cst_16 : f32 to vector<16x1xf32>
    %24 = arith.addf %22, %23 : vector<16x1xf32>
    %25 = math.rsqrt %24 : vector<16x1xf32>
    %26 = vector.broadcast %25 : vector<16x1xf32> to vector<16x128xf32>
    %27 = arith.mulf %17, %26 : vector<16x128xf32>
    %28 = vector.broadcast %10 : vector<1x128xf32> to vector<16x128xf32>
    %29 = arith.mulf %27, %28 : vector<16x128xf32>
    %30 = vector.broadcast %11 : vector<1x128xf32> to vector<16x128xf32>
    %31 = arith.addf %29, %30 : vector<16x128xf32>
    %c0_17 = arith.constant 0 : index
    %c0_18 = arith.constant 0 : index
    %32 = vector.load %arg7[%c0_17, %c0_18] : memref<8x128xf32, #tpu.memory_space<vmem>>, vector<8x128xf32>
    %33 = arith.truncf %32 : vector<8x128xf32> to vector<8x128xbf16>
    %c0_19 = arith.constant 0 : index
    %c0_20 = arith.constant 0 : index
    %34 = vector.load %arg8[%c0_19, %c0_20] : memref<128x128xbf16, #tpu.memory_space<vmem>>, vector<128x128xbf16>
    %cst_21 = arith.constant dense<0.000000e+00> : vector<8x128xf32>
    %35 = tpu.matmul %33, %34, %cst_21 {dimension_numbers = #tpu.dot_dimension_numbers<[1], [0], [0], [1], [0, 0, 1, 1], [], []>} : vector<8x128xbf16>, vector<128x128xbf16>, vector<8x128xf32> -> vector<8x128xf32>
    %c0_22 = arith.constant 0 : index
    %c0_23 = arith.constant 0 : index
    %36 = vector.load %arg9[%c0_22, %c0_23] : memref<1x128xf32, #tpu.memory_space<vmem>>, vector<1x128xf32>
    %37 = vector.broadcast %36 : vector<1x128xf32> to vector<8x128xf32>
    %38 = arith.addf %35, %37 : vector<8x128xf32>
    %39 = arith.truncf %31 : vector<16x128xf32> to vector<16x128xbf16>
    %c0_24 = arith.constant 0 : index
    %c0_25 = arith.constant 0 : index
    %40 = vector.load %arg10[%c0_24, %c0_25] : memref<128x256xbf16, #tpu.memory_space<vmem>>, vector<128x256xbf16>
    %cst_26 = arith.constant dense<0.000000e+00> : vector<16x256xf32>
    %41 = tpu.matmul %39, %40, %cst_26 {dimension_numbers = #tpu.dot_dimension_numbers<[1], [0], [0], [1], [0, 0, 1, 1], [], []>} : vector<16x128xbf16>, vector<128x256xbf16>, vector<16x256xf32> -> vector<16x256xf32>
    %c0_27 = arith.constant 0 : index
    %c0_28 = arith.constant 0 : index
    %42 = vector.load %arg11[%c0_27, %c0_28] : memref<1x256xf32, #tpu.memory_space<vmem>>, vector<1x256xf32>
    %43 = vector.broadcast %42 : vector<1x256xf32> to vector<16x256xf32>
    %44 = arith.addf %41, %43 : vector<16x256xf32>
    %45 = vector.extract_strided_slice %44 {offsets = [0, 0], sizes = [16, 128], strides = [1, 1]} : vector<16x256xf32> to vector<16x128xf32>
    %46 = vector.extract_strided_slice %44 {offsets = [0, 128], sizes = [16, 128], strides = [1, 1]} : vector<16x256xf32> to vector<16x128xf32>
    %47 = arith.truncf %38 : vector<8x128xf32> to vector<8x128xbf16>
    %48 = arith.truncf %45 : vector<16x128xf32> to vector<16x128xbf16>
    %49 = arith.truncf %46 : vector<16x128xf32> to vector<16x128xbf16>
    %50 = vector.extract_strided_slice %47 {offsets = [0, 0], sizes = [8, 32], strides = [1, 1]} : vector<8x128xbf16> to vector<8x32xbf16>
    %51 = vector.extract_strided_slice %48 {offsets = [0, 0], sizes = [16, 32], strides = [1, 1]} : vector<16x128xbf16> to vector<16x32xbf16>
    %cst_29 = arith.constant dense<0.000000e+00> : vector<8x16xf32>
    %52 = tpu.matmul %50, %51, %cst_29 {dimension_numbers = #tpu.dot_dimension_numbers<[1], [1], [0], [0], [0, 0, 1, 0], [], []>} : vector<8x32xbf16>, vector<16x32xbf16>, vector<8x16xf32> -> vector<8x16xf32>
    %53 = vector.extract_strided_slice %47 {offsets = [0, 32], sizes = [8, 32], strides = [1, 1]} : vector<8x128xbf16> to vector<8x32xbf16>
    %54 = vector.extract_strided_slice %48 {offsets = [0, 32], sizes = [16, 32], strides = [1, 1]} : vector<16x128xbf16> to vector<16x32xbf16>
    %cst_30 = arith.constant dense<0.000000e+00> : vector<8x16xf32>
    %55 = tpu.matmul %53, %54, %cst_30 {dimension_numbers = #tpu.dot_dimension_numbers<[1], [1], [0], [0], [0, 0, 1, 0], [], []>} : vector<8x32xbf16>, vector<16x32xbf16>, vector<8x16xf32> -> vector<8x16xf32>
    %56 = vector.extract_strided_slice %47 {offsets = [0, 64], sizes = [8, 32], strides = [1, 1]} : vector<8x128xbf16> to vector<8x32xbf16>
    %57 = vector.extract_strided_slice %48 {offsets = [0, 64], sizes = [16, 32], strides = [1, 1]} : vector<16x128xbf16> to vector<16x32xbf16>
    %cst_31 = arith.constant dense<0.000000e+00> : vector<8x16xf32>
    %58 = tpu.matmul %56, %57, %cst_31 {dimension_numbers = #tpu.dot_dimension_numbers<[1], [1], [0], [0], [0, 0, 1, 0], [], []>} : vector<8x32xbf16>, vector<16x32xbf16>, vector<8x16xf32> -> vector<8x16xf32>
    %59 = vector.extract_strided_slice %47 {offsets = [0, 96], sizes = [8, 32], strides = [1, 1]} : vector<8x128xbf16> to vector<8x32xbf16>
    %60 = vector.extract_strided_slice %48 {offsets = [0, 96], sizes = [16, 32], strides = [1, 1]} : vector<16x128xbf16> to vector<16x32xbf16>
    %cst_32 = arith.constant dense<0.000000e+00> : vector<8x16xf32>
    %61 = tpu.matmul %59, %60, %cst_32 {dimension_numbers = #tpu.dot_dimension_numbers<[1], [1], [0], [0], [0, 0, 1, 0], [], []>} : vector<8x32xbf16>, vector<16x32xbf16>, vector<8x16xf32> -> vector<8x16xf32>
    %62 = tpu.concatenate %52, %55, %58, %61 in 0 : vector<8x16xf32>, vector<8x16xf32>, vector<8x16xf32>, vector<8x16xf32> -> vector<32x16xf32>
    %cst_33 = arith.constant 0.176776692 : f32
    %63 = vector.broadcast %cst_33 : f32 to vector<32x16xf32>
    %64 = arith.mulf %62, %63 : vector<32x16xf32>
    %cst_34 = arith.constant dense<0xFF800000> : vector<32xf32>
    %65 = vector.multi_reduction <maximumf>, %64, %cst_34 [1] : vector<32x16xf32> to vector<32xf32>
    %66 = vector.shape_cast %65 : vector<32xf32> to vector<32x1xf32>
    %67 = vector.broadcast %66 : vector<32x1xf32> to vector<32x16xf32>
    %68 = arith.subf %64, %67 : vector<32x16xf32>
    %69 = math.exp %68 : vector<32x16xf32>
    %cst_35 = arith.constant dense<0.000000e+00> : vector<32xf32>
    %70 = vector.multi_reduction <add>, %69, %cst_35 [1] : vector<32x16xf32> to vector<32xf32>
    %71 = vector.shape_cast %70 : vector<32xf32> to vector<32x1xf32>
    %72 = tpu.reciprocal %71 {approx = true} : vector<32x1xf32> -> vector<32x1xf32>
    %73 = vector.broadcast %72 : vector<32x1xf32> to vector<32x16xf32>
    %74 = arith.mulf %69, %73 : vector<32x16xf32>
    %75 = arith.truncf %74 : vector<32x16xf32> to vector<32x16xbf16>
    %76 = vector.extract_strided_slice %75 {offsets = [0, 0], sizes = [8, 16], strides = [1, 1]} : vector<32x16xbf16> to vector<8x16xbf16>
    %77 = vector.extract_strided_slice %49 {offsets = [0, 0], sizes = [16, 32], strides = [1, 1]} : vector<16x128xbf16> to vector<16x32xbf16>
    %cst_36 = arith.constant dense<0.000000e+00> : vector<8x32xf32>
    %78 = tpu.matmul %76, %77, %cst_36 {dimension_numbers = #tpu.dot_dimension_numbers<[1], [0], [0], [1], [0, 0, 1, 1], [], []>} : vector<8x16xbf16>, vector<16x32xbf16>, vector<8x32xf32> -> vector<8x32xf32>
    %c0_37 = arith.constant 0 : index
    %c0_38 = arith.constant 0 : index
    %79 = vector.load %arg23[%c0_37, %c0_38] : memref<8x128xf32, #tpu.memory_space<vmem>>, vector<8x32xf32>
    tpu.vector_store %arg23[%c0_37, %c0_38], %78 {strides = array<i32>} : memref<8x128xf32, #tpu.memory_space<vmem>>, vector<8x32xf32>,
    %80 = vector.extract_strided_slice %75 {offsets = [8, 0], sizes = [8, 16], strides = [1, 1]} : vector<32x16xbf16> to vector<8x16xbf16>
    %81 = vector.extract_strided_slice %49 {offsets = [0, 32], sizes = [16, 32], strides = [1, 1]} : vector<16x128xbf16> to vector<16x32xbf16>
    %cst_39 = arith.constant dense<0.000000e+00> : vector<8x32xf32>
    %82 = tpu.matmul %80, %81, %cst_39 {dimension_numbers = #tpu.dot_dimension_numbers<[1], [0], [0], [1], [0, 0, 1, 1], [], []>} : vector<8x16xbf16>, vector<16x32xbf16>, vector<8x32xf32> -> vector<8x32xf32>
    %c0_40 = arith.constant 0 : index
    %c32 = arith.constant 32 : index
    %83 = vector.load %arg23[%c0_40, %c32] : memref<8x128xf32, #tpu.memory_space<vmem>>, vector<8x32xf32>
    tpu.vector_store %arg23[%c0_40, %c32], %82 {strides = array<i32>} : memref<8x128xf32, #tpu.memory_space<vmem>>, vector<8x32xf32>,
    %84 = vector.extract_strided_slice %75 {offsets = [16, 0], sizes = [8, 16], strides = [1, 1]} : vector<32x16xbf16> to vector<8x16xbf16>
    %85 = vector.extract_strided_slice %49 {offsets = [0, 64], sizes = [16, 32], strides = [1, 1]} : vector<16x128xbf16> to vector<16x32xbf16>
    %cst_41 = arith.constant dense<0.000000e+00> : vector<8x32xf32>
    %86 = tpu.matmul %84, %85, %cst_41 {dimension_numbers = #tpu.dot_dimension_numbers<[1], [0], [0], [1], [0, 0, 1, 1], [], []>} : vector<8x16xbf16>, vector<16x32xbf16>, vector<8x32xf32> -> vector<8x32xf32>
    %c0_42 = arith.constant 0 : index
    %c64 = arith.constant 64 : index
    %87 = vector.load %arg23[%c0_42, %c64] : memref<8x128xf32, #tpu.memory_space<vmem>>, vector<8x32xf32>
    tpu.vector_store %arg23[%c0_42, %c64], %86 {strides = array<i32>} : memref<8x128xf32, #tpu.memory_space<vmem>>, vector<8x32xf32>,
    %88 = vector.extract_strided_slice %75 {offsets = [24, 0], sizes = [8, 16], strides = [1, 1]} : vector<32x16xbf16> to vector<8x16xbf16>
    %89 = vector.extract_strided_slice %49 {offsets = [0, 96], sizes = [16, 32], strides = [1, 1]} : vector<16x128xbf16> to vector<16x32xbf16>
    %cst_43 = arith.constant dense<0.000000e+00> : vector<8x32xf32>
    %90 = tpu.matmul %88, %89, %cst_43 {dimension_numbers = #tpu.dot_dimension_numbers<[1], [0], [0], [1], [0, 0, 1, 1], [], []>} : vector<8x16xbf16>, vector<16x32xbf16>, vector<8x32xf32> -> vector<8x32xf32>
    %c0_44 = arith.constant 0 : index
    %c96 = arith.constant 96 : index
    %91 = vector.load %arg23[%c0_44, %c96] : memref<8x128xf32, #tpu.memory_space<vmem>>, vector<8x32xf32>
    tpu.vector_store %arg23[%c0_44, %c96], %90 {strides = array<i32>} : memref<8x128xf32, #tpu.memory_space<vmem>>, vector<8x32xf32>,
    %c0_45 = arith.constant 0 : index
    %c0_46 = arith.constant 0 : index
    %92 = vector.load %arg23[%c0_45, %c0_46] : memref<8x128xf32, #tpu.memory_space<vmem>>, vector<8x128xf32>
    %93 = arith.truncf %92 : vector<8x128xf32> to vector<8x128xbf16>
    %c0_47 = arith.constant 0 : index
    %c0_48 = arith.constant 0 : index
    %94 = vector.load %arg12[%c0_47, %c0_48] : memref<128x128xbf16, #tpu.memory_space<vmem>>, vector<128x128xbf16>
    %cst_49 = arith.constant dense<0.000000e+00> : vector<8x128xf32>
    %95 = tpu.matmul %93, %94, %cst_49 {dimension_numbers = #tpu.dot_dimension_numbers<[1], [0], [0], [1], [0, 0, 1, 1], [], []>} : vector<8x128xbf16>, vector<128x128xbf16>, vector<8x128xf32> -> vector<8x128xf32>
    %c0_50 = arith.constant 0 : index
    %c0_51 = arith.constant 0 : index
    %96 = vector.load %arg13[%c0_50, %c0_51] : memref<1x128xf32, #tpu.memory_space<vmem>>, vector<1x128xf32>
    %97 = vector.broadcast %96 : vector<1x128xf32> to vector<8x128xf32>
    %98 = arith.addf %95, %97 : vector<8x128xf32>
    %99 = arith.addf %32, %98 : vector<8x128xf32>
    %c0_52 = arith.constant 0 : index
    %c0_53 = arith.constant 0 : index
    %100 = vector.load %arg14[%c0_52, %c0_53] : memref<1x128xf32, #tpu.memory_space<vmem>>, vector<1x128xf32>
    %c0_54 = arith.constant 0 : index
    %c0_55 = arith.constant 0 : index
    %101 = vector.load %arg15[%c0_54, %c0_55] : memref<1x128xf32, #tpu.memory_space<vmem>>, vector<1x128xf32>
    %cst_56 = arith.constant dense<0.000000e+00> : vector<8xf32>
    %102 = vector.multi_reduction <add>, %99, %cst_56 [1] : vector<8x128xf32> to vector<8xf32>
    %103 = vector.shape_cast %102 : vector<8xf32> to vector<8x1xf32>
    %cst_57 = arith.constant 1.280000e+02 : f32
    %104 = vector.broadcast %cst_57 : f32 to vector<8x1xf32>
    %105 = arith.divf %103, %104 : vector<8x1xf32>
    %106 = vector.broadcast %105 : vector<8x1xf32> to vector<8x128xf32>
    %107 = arith.subf %99, %106 : vector<8x128xf32>
    %108 = arith.mulf %107, %107 : vector<8x128xf32>
    %cst_58 = arith.constant dense<0.000000e+00> : vector<8xf32>
    %109 = vector.multi_reduction <add>, %108, %cst_58 [1] : vector<8x128xf32> to vector<8xf32>
    %110 = vector.shape_cast %109 : vector<8xf32> to vector<8x1xf32>
    %cst_59 = arith.constant 1.280000e+02 : f32
    %111 = vector.broadcast %cst_59 : f32 to vector<8x1xf32>
    %112 = arith.divf %110, %111 : vector<8x1xf32>
    %cst_60 = arith.constant 9.99999974E-6 : f32
    %113 = vector.broadcast %cst_60 : f32 to vector<8x1xf32>
    %114 = arith.addf %112, %113 : vector<8x1xf32>
    %115 = math.rsqrt %114 : vector<8x1xf32>
    %116 = vector.broadcast %115 : vector<8x1xf32> to vector<8x128xf32>
    %117 = arith.mulf %107, %116 : vector<8x128xf32>
    %118 = vector.broadcast %100 : vector<1x128xf32> to vector<8x128xf32>
    %119 = arith.mulf %117, %118 : vector<8x128xf32>
    %120 = vector.broadcast %101 : vector<1x128xf32> to vector<8x128xf32>
    %121 = arith.addf %119, %120 : vector<8x128xf32>
    %122 = arith.truncf %121 : vector<8x128xf32> to vector<8x128xbf16>
    %c0_61 = arith.constant 0 : index
    %c0_62 = arith.constant 0 : index
    %123 = vector.load %arg16[%c0_61, %c0_62] : memref<128x256xbf16, #tpu.memory_space<vmem>>, vector<128x256xbf16>
    %cst_63 = arith.constant dense<0.000000e+00> : vector<8x256xf32>
    %124 = tpu.matmul %122, %123, %cst_63 {dimension_numbers = #tpu.dot_dimension_numbers<[1], [0], [0], [1], [0, 0, 1, 1], [], []>} : vector<8x128xbf16>, vector<128x256xbf16>, vector<8x256xf32> -> vector<8x256xf32>
    %c0_64 = arith.constant 0 : index
    %c0_65 = arith.constant 0 : index
    %125 = vector.load %arg17[%c0_64, %c0_65] : memref<1x256xf32, #tpu.memory_space<vmem>>, vector<1x256xf32>
    %126 = vector.broadcast %125 : vector<1x256xf32> to vector<8x256xf32>
    %127 = arith.addf %124, %126 : vector<8x256xf32>
    %128 = arith.mulf %127, %127 : vector<8x256xf32>
    %129 = arith.mulf %127, %128 : vector<8x256xf32>
    %cst_66 = arith.constant 4.471500e-02 : f32
    %130 = vector.broadcast %cst_66 : f32 to vector<8x256xf32>
    %131 = arith.mulf %130, %129 : vector<8x256xf32>
    %132 = arith.addf %127, %131 : vector<8x256xf32>
    %cst_67 = arith.constant 0.797884583 : f32
    %133 = vector.broadcast %cst_67 : f32 to vector<8x256xf32>
    %134 = arith.mulf %133, %132 : vector<8x256xf32>
    %135 = math.tanh %134 : vector<8x256xf32>
    %cst_68 = arith.constant 1.000000e+00 : f32
    %136 = vector.broadcast %cst_68 : f32 to vector<8x256xf32>
    %137 = arith.addf %136, %135 : vector<8x256xf32>
    %cst_69 = arith.constant 5.000000e-01 : f32
    %138 = vector.broadcast %cst_69 : f32 to vector<8x256xf32>
    %139 = arith.mulf %138, %137 : vector<8x256xf32>
    %140 = arith.mulf %127, %139 : vector<8x256xf32>
    %141 = arith.truncf %140 : vector<8x256xf32> to vector<8x256xbf16>
    %c0_70 = arith.constant 0 : index
    %c0_71 = arith.constant 0 : index
    %142 = vector.load %arg18[%c0_70, %c0_71] : memref<256x128xbf16, #tpu.memory_space<vmem>>, vector<256x128xbf16>
    %cst_72 = arith.constant dense<0.000000e+00> : vector<8x128xf32>
    %143 = tpu.matmul %141, %142, %cst_72 {dimension_numbers = #tpu.dot_dimension_numbers<[1], [0], [0], [1], [0, 0, 1, 1], [], []>} : vector<8x256xbf16>, vector<256x128xbf16>, vector<8x128xf32> -> vector<8x128xf32>
    %c0_73 = arith.constant 0 : index
    %c0_74 = arith.constant 0 : index
    %144 = vector.load %arg19[%c0_73, %c0_74] : memref<1x128xf32, #tpu.memory_space<vmem>>, vector<1x128xf32>
    %145 = vector.broadcast %144 : vector<1x128xf32> to vector<8x128xf32>
    %146 = arith.addf %143, %145 : vector<8x128xf32>
    %147 = arith.addf %121, %146 : vector<8x128xf32>
    %c0_75 = arith.constant 0 : index
    %c0_76 = arith.constant 0 : index
    %148 = vector.load %arg20[%c0_75, %c0_76] : memref<1x128xf32, #tpu.memory_space<vmem>>, vector<1x128xf32>
    %c0_77 = arith.constant 0 : index
    %c0_78 = arith.constant 0 : index
    %149 = vector.load %arg21[%c0_77, %c0_78] : memref<1x128xf32, #tpu.memory_space<vmem>>, vector<1x128xf32>
    %cst_79 = arith.constant dense<0.000000e+00> : vector<8xf32>
    %150 = vector.multi_reduction <add>, %147, %cst_79 [1] : vector<8x128xf32> to vector<8xf32>
    %151 = vector.shape_cast %150 : vector<8xf32> to vector<8x1xf32>
    %cst_80 = arith.constant 1.280000e+02 : f32
    %152 = vector.broadcast %cst_80 : f32 to vector<8x1xf32>
    %153 = arith.divf %151, %152 : vector<8x1xf32>
    %154 = vector.broadcast %153 : vector<8x1xf32> to vector<8x128xf32>
    %155 = arith.subf %147, %154 : vector<8x128xf32>
    %156 = arith.mulf %155, %155 : vector<8x128xf32>
    %cst_81 = arith.constant dense<0.000000e+00> : vector<8xf32>
    %157 = vector.multi_reduction <add>, %156, %cst_81 [1] : vector<8x128xf32> to vector<8xf32>
    %158 = vector.shape_cast %157 : vector<8xf32> to vector<8x1xf32>
    %cst_82 = arith.constant 1.280000e+02 : f32
    %159 = vector.broadcast %cst_82 : f32 to vector<8x1xf32>
    %160 = arith.divf %158, %159 : vector<8x1xf32>
    %cst_83 = arith.constant 9.99999974E-6 : f32
    %161 = vector.broadcast %cst_83 : f32 to vector<8x1xf32>
    %162 = arith.addf %160, %161 : vector<8x1xf32>
    %163 = math.rsqrt %162 : vector<8x1xf32>
    %164 = vector.broadcast %163 : vector<8x1xf32> to vector<8x128xf32>
    %165 = arith.mulf %155, %164 : vector<8x128xf32>
    %166 = vector.broadcast %148 : vector<1x128xf32> to vector<8x128xf32>
    %167 = arith.mulf %165, %166 : vector<8x128xf32>
    %168 = vector.broadcast %149 : vector<1x128xf32> to vector<8x128xf32>
    %169 = arith.addf %167, %168 : vector<8x128xf32>
    %170 = arith.truncf %169 : vector<8x128xf32> to vector<8x128xbf16>
    %c0_84 = arith.constant 0 : index
    %c0_85 = arith.constant 0 : index
    %c0_86 = arith.constant 0 : index
    %171 = vector.load %arg22[%c0_84, %c0_85, %c0_86] : memref<1x8x128xbf16, #tpu.memory_space<vmem>>, vector<1x8x128xbf16>
    %172 = vector.shape_cast %171 : vector<1x8x128xbf16> to vector<8x128xbf16>
    %173 = vector.shape_cast %170 : vector<8x128xbf16> to vector<1x8x128xbf16>
    tpu.vector_store %arg22[%c0_84, %c0_85, %c0_86], %173 {strides = array<i32>} : memref<1x8x128xbf16, #tpu.memory_space<vmem>>, vector<1x8x128xbf16>,
    return
  }
  func.func @transform_0(%arg0: i32) -> (i32, i32, i32) {
    %c0_i32 = arith.constant 0 : i32
    %c0_i32_0 = arith.constant 0 : i32
    %c0_i32_1 = arith.constant 0 : i32
    return %arg0, %c0_i32, %c0_i32_0 : i32, i32, i32
  }
  func.func @transform_1(%arg0: i32) -> (i32, i32) {
    %c0_i32 = arith.constant 0 : i32
    %c0_i32_0 = arith.constant 0 : i32
    %c0_i32_1 = arith.constant 0 : i32
    return %c0_i32, %c0_i32_0 : i32, i32
  }
  func.func @transform_2(%arg0: i32) -> (i32, i32) {
    %c0_i32 = arith.constant 0 : i32
    %c0_i32_0 = arith.constant 0 : i32
    %c0_i32_1 = arith.constant 0 : i32
    return %c0_i32, %c0_i32_0 : i32, i32
  }
  func.func @transform_3(%arg0: i32) -> (i32, i32) {
    %c0_i32 = arith.constant 0 : i32
    %c0_i32_0 = arith.constant 0 : i32
    %c0_i32_1 = arith.constant 0 : i32
    return %c0_i32, %c0_i32_0 : i32, i32
  }
  func.func @transform_4(%arg0: i32) -> (i32, i32) {
    %c0_i32 = arith.constant 0 : i32
    %c0_i32_0 = arith.constant 0 : i32
    %c0_i32_1 = arith.constant 0 : i32
    return %c0_i32, %c0_i32_0 : i32, i32
  }
  func.func @transform_5(%arg0: i32) -> (i32, i32) {
    %c0_i32 = arith.constant 0 : i32
    %c0_i32_0 = arith.constant 0 : i32
    %c0_i32_1 = arith.constant 0 : i32
    return %c0_i32, %c0_i32_0 : i32, i32
  }
  func.func @transform_6(%arg0: i32) -> (i32, i32) {
    %c0_i32 = arith.constant 0 : i32
    %c0_i32_0 = arith.constant 0 : i32
    %c0_i32_1 = arith.constant 0 : i32
    return %c0_i32, %c0_i32_0 : i32, i32
  }
  func.func @transform_7(%arg0: i32) -> (i32, i32) {
    %c0_i32 = arith.constant 0 : i32
    %c0_i32_0 = arith.constant 0 : i32
    %c0_i32_1 = arith.constant 0 : i32
    return %c0_i32, %c0_i32_0 : i32, i32
  }
  func.func @transform_8(%arg0: i32) -> (i32, i32) {
    %c0_i32 = arith.constant 0 : i32
    %c0_i32_0 = arith.constant 0 : i32
    %c0_i32_1 = arith.constant 0 : i32
    return %c0_i32, %c0_i32_0 : i32, i32
  }
  func.func @transform_9(%arg0: i32) -> (i32, i32) {
    %c0_i32 = arith.constant 0 : i32
    %c0_i32_0 = arith.constant 0 : i32
    %c0_i32_1 = arith.constant 0 : i32
    return %c0_i32, %c0_i32_0 : i32, i32
  }
  func.func @transform_10(%arg0: i32) -> (i32, i32) {
    %c0_i32 = arith.constant 0 : i32
    %c0_i32_0 = arith.constant 0 : i32
    %c0_i32_1 = arith.constant 0 : i32
    return %c0_i32, %c0_i32_0 : i32, i32
  }
  func.func @transform_11(%arg0: i32) -> (i32, i32) {
    %c0_i32 = arith.constant 0 : i32
    %c0_i32_0 = arith.constant 0 : i32
    %c0_i32_1 = arith.constant 0 : i32
    return %c0_i32, %c0_i32_0 : i32, i32
  }
  func.func @transform_12(%arg0: i32) -> (i32, i32) {
    %c0_i32 = arith.constant 0 : i32
    %c0_i32_0 = arith.constant 0 : i32
    %c0_i32_1 = arith.constant 0 : i32
    return %c0_i32, %c0_i32_0 : i32, i32
  }
  func.func @transform_13(%arg0: i32) -> (i32, i32) {
    %c0_i32 = arith.constant 0 : i32
    %c0_i32_0 = arith.constant 0 : i32
    %c0_i32_1 = arith.constant 0 : i32
    return %c0_i32, %c0_i32_0 : i32, i32
  }
  func.func @transform_14(%arg0: i32) -> (i32, i32) {
    %c0_i32 = arith.constant 0 : i32
    %c0_i32_0 = arith.constant 0 : i32
    %c0_i32_1 = arith.constant 0 : i32
    return %c0_i32, %c0_i32_0 : i32, i32
  }
  func.func @transform_15(%arg0: i32) -> (i32, i32) {
    %c0_i32 = arith.constant 0 : i32
    %c0_i32_0 = arith.constant 0 : i32
    %c0_i32_1 = arith.constant 0 : i32
    return %c0_i32, %c0_i32_0 : i32, i32
  }
  func.func @transform_16(%arg0: i32) -> (i32, i32) {
    %c0_i32 = arith.constant 0 : i32
    %c0_i32_0 = arith.constant 0 : i32
    %c0_i32_1 = arith.constant 0 : i32
    return %c0_i32, %c0_i32_0 : i32, i32
  }
  func.func @transform_17(%arg0: i32) -> (i32, i32) {
    %c0_i32 = arith.constant 0 : i32
    %c0_i32_0 = arith.constant 0 : i32
    %c0_i32_1 = arith.constant 0 : i32
    return %c0_i32, %c0_i32_0 : i32, i32
  }
  func.func @transform_18(%arg0: i32) -> (i32, i32) {
    %c0_i32 = arith.constant 0 : i32
    %c0_i32_0 = arith.constant 0 : i32
    %c0_i32_1 = arith.constant 0 : i32
    return %c0_i32, %c0_i32_0 : i32, i32
  }
  func.func @transform_19(%arg0: i32) -> (i32, i32) {
    %c0_i32 = arith.constant 0 : i32
    %c0_i32_0 = arith.constant 0 : i32
    %c0_i32_1 = arith.constant 0 : i32
    return %c0_i32, %c0_i32_0 : i32, i32
  }
  func.func @transform_20(%arg0: i32) -> (i32, i32) {
    %c0_i32 = arith.constant 0 : i32
    %c0_i32_0 = arith.constant 0 : i32
    %c0_i32_1 = arith.constant 0 : i32
    return %c0_i32, %c0_i32_0 : i32, i32
  }
  func.func @transform_21(%arg0: i32) -> (i32, i32, i32) {
    %c0_i32 = arith.constant 0 : i32
    %c0_i32_0 = arith.constant 0 : i32
    %c0_i32_1 = arith.constant 0 : i32
    return %arg0, %c0_i32, %c0_i32_0 : i32, i32, i32
  }
}

module attributes {stable_mosaic.version = 11 : i64} {
  func.func @_decoder_kernel(%arg0: i32, %arg1: memref<1x8x128xf32, #tpu.memory_space<vmem>>, %arg2: memref<1x8x128xbf16, #tpu.memory_space<vmem>>, %arg3: memref<8x8xf32, #tpu.memory_space<vmem>>, %arg4: memref<1x1x8xf32, #tpu.memory_space<vmem>>, %arg5: memref<128x384xbf16, #tpu.memory_space<vmem>>, %arg6: memref<1x384xf32, #tpu.memory_space<vmem>>, %arg7: memref<128x128xbf16, #tpu.memory_space<vmem>>, %arg8: memref<1x128xf32, #tpu.memory_space<vmem>>, %arg9: memref<1x128xf32, #tpu.memory_space<vmem>>, %arg10: memref<1x128xf32, #tpu.memory_space<vmem>>, %arg11: memref<128x128xbf16, #tpu.memory_space<vmem>>, %arg12: memref<1x128xf32, #tpu.memory_space<vmem>>, %arg13: memref<128x256xbf16, #tpu.memory_space<vmem>>, %arg14: memref<1x256xf32, #tpu.memory_space<vmem>>, %arg15: memref<128x128xbf16, #tpu.memory_space<vmem>>, %arg16: memref<1x128xf32, #tpu.memory_space<vmem>>, %arg17: memref<1x128xf32, #tpu.memory_space<vmem>>, %arg18: memref<1x128xf32, #tpu.memory_space<vmem>>, %arg19: memref<128x256xbf16, #tpu.memory_space<vmem>>, %arg20: memref<1x256xf32, #tpu.memory_space<vmem>>, %arg21: memref<256x128xbf16, #tpu.memory_space<vmem>>, %arg22: memref<1x128xf32, #tpu.memory_space<vmem>>, %arg23: memref<1x128xf32, #tpu.memory_space<vmem>>, %arg24: memref<1x128xf32, #tpu.memory_space<vmem>>, %arg25: memref<1x8x128xbf16, #tpu.memory_space<vmem>>, %arg26: memref<8x128xf32, #tpu.memory_space<vmem>>) attributes {dimension_semantics = [#tpu.dimension_semantics<parallel>], iteration_bounds = array<i64: 2>, scalar_prefetch = 0 : i64, scratch_operands = 1 : i64, tpu.core_type = #tpu.core_type<tc>, window_params = [{transform_indices = @transform_0, window_bounds = array<i64: 1, 8, 128>}, {transform_indices = @transform_1, window_bounds = array<i64: 1, 8, 128>}, {pipeline_mode = #tpu.pipeline_mode<synchronous>, transform_indices = @transform_2, window_bounds = array<i64: 8, 8>}, {transform_indices = @transform_3, window_bounds = array<i64: 1, 1, 8>}, {pipeline_mode = #tpu.pipeline_mode<synchronous>, transform_indices = @transform_4, window_bounds = array<i64: 128, 384>}, {pipeline_mode = #tpu.pipeline_mode<synchronous>, transform_indices = @transform_5, window_bounds = array<i64: 1, 384>}, {pipeline_mode = #tpu.pipeline_mode<synchronous>, transform_indices = @transform_6, window_bounds = array<i64: 128, 128>}, {pipeline_mode = #tpu.pipeline_mode<synchronous>, transform_indices = @transform_7, window_bounds = array<i64: 1, 128>}, {pipeline_mode = #tpu.pipeline_mode<synchronous>, transform_indices = @transform_8, window_bounds = array<i64: 1, 128>}, {pipeline_mode = #tpu.pipeline_mode<synchronous>, transform_indices = @transform_9, window_bounds = array<i64: 1, 128>}, {pipeline_mode = #tpu.pipeline_mode<synchronous>, transform_indices = @transform_10, window_bounds = array<i64: 128, 128>}, {pipeline_mode = #tpu.pipeline_mode<synchronous>, transform_indices = @transform_11, window_bounds = array<i64: 1, 128>}, {pipeline_mode = #tpu.pipeline_mode<synchronous>, transform_indices = @transform_12, window_bounds = array<i64: 128, 256>}, {pipeline_mode = #tpu.pipeline_mode<synchronous>, transform_indices = @transform_13, window_bounds = array<i64: 1, 256>}, {pipeline_mode = #tpu.pipeline_mode<synchronous>, transform_indices = @transform_14, window_bounds = array<i64: 128, 128>}, {pipeline_mode = #tpu.pipeline_mode<synchronous>, transform_indices = @transform_15, window_bounds = array<i64: 1, 128>}, {pipeline_mode = #tpu.pipeline_mode<synchronous>, transform_indices = @transform_16, window_bounds = array<i64: 1, 128>}, {pipeline_mode = #tpu.pipeline_mode<synchronous>, transform_indices = @transform_17, window_bounds = array<i64: 1, 128>}, {pipeline_mode = #tpu.pipeline_mode<synchronous>, transform_indices = @transform_18, window_bounds = array<i64: 128, 256>}, {pipeline_mode = #tpu.pipeline_mode<synchronous>, transform_indices = @transform_19, window_bounds = array<i64: 1, 256>}, {pipeline_mode = #tpu.pipeline_mode<synchronous>, transform_indices = @transform_20, window_bounds = array<i64: 256, 128>}, {pipeline_mode = #tpu.pipeline_mode<synchronous>, transform_indices = @transform_21, window_bounds = array<i64: 1, 128>}, {pipeline_mode = #tpu.pipeline_mode<synchronous>, transform_indices = @transform_22, window_bounds = array<i64: 1, 128>}, {pipeline_mode = #tpu.pipeline_mode<synchronous>, transform_indices = @transform_23, window_bounds = array<i64: 1, 128>}, {transform_indices = @transform_24, window_bounds = array<i64: 1, 8, 128>}]} {
    %c0 = arith.constant 0 : index
    %c0_0 = arith.constant 0 : index
    %c0_1 = arith.constant 0 : index
    %0 = vector.load %arg1[%c0, %c0_0, %c0_1] : memref<1x8x128xf32, #tpu.memory_space<vmem>>, vector<1x8x128xf32>
    %1 = vector.shape_cast %0 : vector<1x8x128xf32> to vector<8x128xf32>
    %c0_2 = arith.constant 0 : index
    %c0_3 = arith.constant 0 : index
    %2 = vector.load %arg3[%c0_2, %c0_3] : memref<8x8xf32, #tpu.memory_space<vmem>>, vector<8x8xf32>
    %c0_4 = arith.constant 0 : index
    %c0_5 = arith.constant 0 : index
    %c0_6 = arith.constant 0 : index
    %3 = vector.load %arg4[%c0_4, %c0_5, %c0_6] : memref<1x1x8xf32, #tpu.memory_space<vmem>>, vector<1x1x8xf32>
    %4 = vector.shape_cast %3 : vector<1x1x8xf32> to vector<1x8xf32>
    %5 = vector.broadcast %4 : vector<1x8xf32> to vector<8x8xf32>
    %6 = arith.addf %2, %5 : vector<8x8xf32>
    %7 = arith.truncf %1 : vector<8x128xf32> to vector<8x128xbf16>
    %c0_7 = arith.constant 0 : index
    %c0_8 = arith.constant 0 : index
    %8 = vector.load %arg5[%c0_7, %c0_8] : memref<128x384xbf16, #tpu.memory_space<vmem>>, vector<128x384xbf16>
    %cst = arith.constant dense<0.000000e+00> : vector<8x384xf32>
    %9 = tpu.matmul %7, %8, %cst {dimension_numbers = #tpu.dot_dimension_numbers<[1], [0], [0], [1], [0, 0, 1, 1], [], []>} : vector<8x128xbf16>, vector<128x384xbf16>, vector<8x384xf32> -> vector<8x384xf32>
    %c0_9 = arith.constant 0 : index
    %c0_10 = arith.constant 0 : index
    %10 = vector.load %arg6[%c0_9, %c0_10] : memref<1x384xf32, #tpu.memory_space<vmem>>, vector<1x384xf32>
    %11 = vector.broadcast %10 : vector<1x384xf32> to vector<8x384xf32>
    %12 = arith.addf %9, %11 : vector<8x384xf32>
    %13 = vector.extract_strided_slice %12 {offsets = [0, 0], sizes = [8, 128], strides = [1, 1]} : vector<8x384xf32> to vector<8x128xf32>
    %14 = vector.extract_strided_slice %12 {offsets = [0, 128], sizes = [8, 128], strides = [1, 1]} : vector<8x384xf32> to vector<8x128xf32>
    %15 = vector.extract_strided_slice %12 {offsets = [0, 256], sizes = [8, 128], strides = [1, 1]} : vector<8x384xf32> to vector<8x128xf32>
    %16 = arith.truncf %13 : vector<8x128xf32> to vector<8x128xbf16>
    %17 = arith.truncf %14 : vector<8x128xf32> to vector<8x128xbf16>
    %18 = arith.truncf %15 : vector<8x128xf32> to vector<8x128xbf16>
    %19 = vector.extract_strided_slice %16 {offsets = [0, 0], sizes = [8, 32], strides = [1, 1]} : vector<8x128xbf16> to vector<8x32xbf16>
    %20 = vector.extract_strided_slice %17 {offsets = [0, 0], sizes = [8, 32], strides = [1, 1]} : vector<8x128xbf16> to vector<8x32xbf16>
    %cst_11 = arith.constant dense<0.000000e+00> : vector<8x8xf32>
    %21 = tpu.matmul %19, %20, %cst_11 {dimension_numbers = #tpu.dot_dimension_numbers<[1], [1], [0], [0], [0, 0, 1, 0], [], []>} : vector<8x32xbf16>, vector<8x32xbf16>, vector<8x8xf32> -> vector<8x8xf32>
    %22 = vector.extract_strided_slice %16 {offsets = [0, 32], sizes = [8, 32], strides = [1, 1]} : vector<8x128xbf16> to vector<8x32xbf16>
    %23 = vector.extract_strided_slice %17 {offsets = [0, 32], sizes = [8, 32], strides = [1, 1]} : vector<8x128xbf16> to vector<8x32xbf16>
    %cst_12 = arith.constant dense<0.000000e+00> : vector<8x8xf32>
    %24 = tpu.matmul %22, %23, %cst_12 {dimension_numbers = #tpu.dot_dimension_numbers<[1], [1], [0], [0], [0, 0, 1, 0], [], []>} : vector<8x32xbf16>, vector<8x32xbf16>, vector<8x8xf32> -> vector<8x8xf32>
    %25 = vector.extract_strided_slice %16 {offsets = [0, 64], sizes = [8, 32], strides = [1, 1]} : vector<8x128xbf16> to vector<8x32xbf16>
    %26 = vector.extract_strided_slice %17 {offsets = [0, 64], sizes = [8, 32], strides = [1, 1]} : vector<8x128xbf16> to vector<8x32xbf16>
    %cst_13 = arith.constant dense<0.000000e+00> : vector<8x8xf32>
    %27 = tpu.matmul %25, %26, %cst_13 {dimension_numbers = #tpu.dot_dimension_numbers<[1], [1], [0], [0], [0, 0, 1, 0], [], []>} : vector<8x32xbf16>, vector<8x32xbf16>, vector<8x8xf32> -> vector<8x8xf32>
    %28 = vector.extract_strided_slice %16 {offsets = [0, 96], sizes = [8, 32], strides = [1, 1]} : vector<8x128xbf16> to vector<8x32xbf16>
    %29 = vector.extract_strided_slice %17 {offsets = [0, 96], sizes = [8, 32], strides = [1, 1]} : vector<8x128xbf16> to vector<8x32xbf16>
    %cst_14 = arith.constant dense<0.000000e+00> : vector<8x8xf32>
    %30 = tpu.matmul %28, %29, %cst_14 {dimension_numbers = #tpu.dot_dimension_numbers<[1], [1], [0], [0], [0, 0, 1, 0], [], []>} : vector<8x32xbf16>, vector<8x32xbf16>, vector<8x8xf32> -> vector<8x8xf32>
    %31 = tpu.concatenate %21, %24, %27, %30 in 0 : vector<8x8xf32>, vector<8x8xf32>, vector<8x8xf32>, vector<8x8xf32> -> vector<32x8xf32>
    %cst_15 = arith.constant 0.176776692 : f32
    %32 = vector.broadcast %cst_15 : f32 to vector<32x8xf32>
    %33 = arith.mulf %31, %32 : vector<32x8xf32>
    %34 = tpu.concatenate %6, %6, %6, %6 in 0 : vector<8x8xf32>, vector<8x8xf32>, vector<8x8xf32>, vector<8x8xf32> -> vector<32x8xf32>
    %35 = arith.addf %33, %34 : vector<32x8xf32>
    %cst_16 = arith.constant dense<0xFF800000> : vector<32xf32>
    %36 = vector.multi_reduction <maximumf>, %35, %cst_16 [1] : vector<32x8xf32> to vector<32xf32>
    %37 = vector.shape_cast %36 : vector<32xf32> to vector<32x1xf32>
    %38 = vector.broadcast %37 : vector<32x1xf32> to vector<32x8xf32>
    %39 = arith.subf %35, %38 : vector<32x8xf32>
    %40 = math.exp %39 : vector<32x8xf32>
    %cst_17 = arith.constant dense<0.000000e+00> : vector<32xf32>
    %41 = vector.multi_reduction <add>, %40, %cst_17 [1] : vector<32x8xf32> to vector<32xf32>
    %42 = vector.shape_cast %41 : vector<32xf32> to vector<32x1xf32>
    %43 = tpu.reciprocal %42 {approx = true} : vector<32x1xf32> -> vector<32x1xf32>
    %44 = vector.broadcast %43 : vector<32x1xf32> to vector<32x8xf32>
    %45 = arith.mulf %40, %44 : vector<32x8xf32>
    %46 = arith.truncf %45 : vector<32x8xf32> to vector<32x8xbf16>
    %47 = vector.extract_strided_slice %46 {offsets = [0, 0], sizes = [8, 8], strides = [1, 1]} : vector<32x8xbf16> to vector<8x8xbf16>
    %48 = vector.extract_strided_slice %18 {offsets = [0, 0], sizes = [8, 32], strides = [1, 1]} : vector<8x128xbf16> to vector<8x32xbf16>
    %cst_18 = arith.constant dense<0.000000e+00> : vector<8x32xf32>
    %49 = tpu.matmul %47, %48, %cst_18 {dimension_numbers = #tpu.dot_dimension_numbers<[1], [0], [0], [1], [0, 0, 1, 1], [], []>} : vector<8x8xbf16>, vector<8x32xbf16>, vector<8x32xf32> -> vector<8x32xf32>
    %c0_19 = arith.constant 0 : index
    %c0_20 = arith.constant 0 : index
    %50 = vector.load %arg26[%c0_19, %c0_20] : memref<8x128xf32, #tpu.memory_space<vmem>>, vector<8x32xf32>
    tpu.vector_store %arg26[%c0_19, %c0_20], %49 {strides = array<i32>} : memref<8x128xf32, #tpu.memory_space<vmem>>, vector<8x32xf32>,
    %51 = vector.extract_strided_slice %46 {offsets = [8, 0], sizes = [8, 8], strides = [1, 1]} : vector<32x8xbf16> to vector<8x8xbf16>
    %52 = vector.extract_strided_slice %18 {offsets = [0, 32], sizes = [8, 32], strides = [1, 1]} : vector<8x128xbf16> to vector<8x32xbf16>
    %cst_21 = arith.constant dense<0.000000e+00> : vector<8x32xf32>
    %53 = tpu.matmul %51, %52, %cst_21 {dimension_numbers = #tpu.dot_dimension_numbers<[1], [0], [0], [1], [0, 0, 1, 1], [], []>} : vector<8x8xbf16>, vector<8x32xbf16>, vector<8x32xf32> -> vector<8x32xf32>
    %c0_22 = arith.constant 0 : index
    %c32 = arith.constant 32 : index
    %54 = vector.load %arg26[%c0_22, %c32] : memref<8x128xf32, #tpu.memory_space<vmem>>, vector<8x32xf32>
    tpu.vector_store %arg26[%c0_22, %c32], %53 {strides = array<i32>} : memref<8x128xf32, #tpu.memory_space<vmem>>, vector<8x32xf32>,
    %55 = vector.extract_strided_slice %46 {offsets = [16, 0], sizes = [8, 8], strides = [1, 1]} : vector<32x8xbf16> to vector<8x8xbf16>
    %56 = vector.extract_strided_slice %18 {offsets = [0, 64], sizes = [8, 32], strides = [1, 1]} : vector<8x128xbf16> to vector<8x32xbf16>
    %cst_23 = arith.constant dense<0.000000e+00> : vector<8x32xf32>
    %57 = tpu.matmul %55, %56, %cst_23 {dimension_numbers = #tpu.dot_dimension_numbers<[1], [0], [0], [1], [0, 0, 1, 1], [], []>} : vector<8x8xbf16>, vector<8x32xbf16>, vector<8x32xf32> -> vector<8x32xf32>
    %c0_24 = arith.constant 0 : index
    %c64 = arith.constant 64 : index
    %58 = vector.load %arg26[%c0_24, %c64] : memref<8x128xf32, #tpu.memory_space<vmem>>, vector<8x32xf32>
    tpu.vector_store %arg26[%c0_24, %c64], %57 {strides = array<i32>} : memref<8x128xf32, #tpu.memory_space<vmem>>, vector<8x32xf32>,
    %59 = vector.extract_strided_slice %46 {offsets = [24, 0], sizes = [8, 8], strides = [1, 1]} : vector<32x8xbf16> to vector<8x8xbf16>
    %60 = vector.extract_strided_slice %18 {offsets = [0, 96], sizes = [8, 32], strides = [1, 1]} : vector<8x128xbf16> to vector<8x32xbf16>
    %cst_25 = arith.constant dense<0.000000e+00> : vector<8x32xf32>
    %61 = tpu.matmul %59, %60, %cst_25 {dimension_numbers = #tpu.dot_dimension_numbers<[1], [0], [0], [1], [0, 0, 1, 1], [], []>} : vector<8x8xbf16>, vector<8x32xbf16>, vector<8x32xf32> -> vector<8x32xf32>
    %c0_26 = arith.constant 0 : index
    %c96 = arith.constant 96 : index
    %62 = vector.load %arg26[%c0_26, %c96] : memref<8x128xf32, #tpu.memory_space<vmem>>, vector<8x32xf32>
    tpu.vector_store %arg26[%c0_26, %c96], %61 {strides = array<i32>} : memref<8x128xf32, #tpu.memory_space<vmem>>, vector<8x32xf32>,
    %c0_27 = arith.constant 0 : index
    %c0_28 = arith.constant 0 : index
    %63 = vector.load %arg26[%c0_27, %c0_28] : memref<8x128xf32, #tpu.memory_space<vmem>>, vector<8x128xf32>
    %64 = arith.truncf %63 : vector<8x128xf32> to vector<8x128xbf16>
    %c0_29 = arith.constant 0 : index
    %c0_30 = arith.constant 0 : index
    %65 = vector.load %arg7[%c0_29, %c0_30] : memref<128x128xbf16, #tpu.memory_space<vmem>>, vector<128x128xbf16>
    %cst_31 = arith.constant dense<0.000000e+00> : vector<8x128xf32>
    %66 = tpu.matmul %64, %65, %cst_31 {dimension_numbers = #tpu.dot_dimension_numbers<[1], [0], [0], [1], [0, 0, 1, 1], [], []>} : vector<8x128xbf16>, vector<128x128xbf16>, vector<8x128xf32> -> vector<8x128xf32>
    %c0_32 = arith.constant 0 : index
    %c0_33 = arith.constant 0 : index
    %67 = vector.load %arg8[%c0_32, %c0_33] : memref<1x128xf32, #tpu.memory_space<vmem>>, vector<1x128xf32>
    %68 = vector.broadcast %67 : vector<1x128xf32> to vector<8x128xf32>
    %69 = arith.addf %66, %68 : vector<8x128xf32>
    %70 = arith.addf %1, %69 : vector<8x128xf32>
    %c0_34 = arith.constant 0 : index
    %c0_35 = arith.constant 0 : index
    %71 = vector.load %arg9[%c0_34, %c0_35] : memref<1x128xf32, #tpu.memory_space<vmem>>, vector<1x128xf32>
    %c0_36 = arith.constant 0 : index
    %c0_37 = arith.constant 0 : index
    %72 = vector.load %arg10[%c0_36, %c0_37] : memref<1x128xf32, #tpu.memory_space<vmem>>, vector<1x128xf32>
    %cst_38 = arith.constant dense<0.000000e+00> : vector<8xf32>
    %73 = vector.multi_reduction <add>, %70, %cst_38 [1] : vector<8x128xf32> to vector<8xf32>
    %74 = vector.shape_cast %73 : vector<8xf32> to vector<8x1xf32>
    %cst_39 = arith.constant 1.280000e+02 : f32
    %75 = vector.broadcast %cst_39 : f32 to vector<8x1xf32>
    %76 = arith.divf %74, %75 : vector<8x1xf32>
    %77 = vector.broadcast %76 : vector<8x1xf32> to vector<8x128xf32>
    %78 = arith.subf %70, %77 : vector<8x128xf32>
    %79 = arith.mulf %78, %78 : vector<8x128xf32>
    %cst_40 = arith.constant dense<0.000000e+00> : vector<8xf32>
    %80 = vector.multi_reduction <add>, %79, %cst_40 [1] : vector<8x128xf32> to vector<8xf32>
    %81 = vector.shape_cast %80 : vector<8xf32> to vector<8x1xf32>
    %cst_41 = arith.constant 1.280000e+02 : f32
    %82 = vector.broadcast %cst_41 : f32 to vector<8x1xf32>
    %83 = arith.divf %81, %82 : vector<8x1xf32>
    %cst_42 = arith.constant 9.99999974E-6 : f32
    %84 = vector.broadcast %cst_42 : f32 to vector<8x1xf32>
    %85 = arith.addf %83, %84 : vector<8x1xf32>
    %86 = math.rsqrt %85 : vector<8x1xf32>
    %87 = vector.broadcast %86 : vector<8x1xf32> to vector<8x128xf32>
    %88 = arith.mulf %78, %87 : vector<8x128xf32>
    %89 = vector.broadcast %71 : vector<1x128xf32> to vector<8x128xf32>
    %90 = arith.mulf %88, %89 : vector<8x128xf32>
    %91 = vector.broadcast %72 : vector<1x128xf32> to vector<8x128xf32>
    %92 = arith.addf %90, %91 : vector<8x128xf32>
    %93 = arith.truncf %92 : vector<8x128xf32> to vector<8x128xbf16>
    %c0_43 = arith.constant 0 : index
    %c0_44 = arith.constant 0 : index
    %94 = vector.load %arg11[%c0_43, %c0_44] : memref<128x128xbf16, #tpu.memory_space<vmem>>, vector<128x128xbf16>
    %cst_45 = arith.constant dense<0.000000e+00> : vector<8x128xf32>
    %95 = tpu.matmul %93, %94, %cst_45 {dimension_numbers = #tpu.dot_dimension_numbers<[1], [0], [0], [1], [0, 0, 1, 1], [], []>} : vector<8x128xbf16>, vector<128x128xbf16>, vector<8x128xf32> -> vector<8x128xf32>
    %c0_46 = arith.constant 0 : index
    %c0_47 = arith.constant 0 : index
    %96 = vector.load %arg12[%c0_46, %c0_47] : memref<1x128xf32, #tpu.memory_space<vmem>>, vector<1x128xf32>
    %97 = vector.broadcast %96 : vector<1x128xf32> to vector<8x128xf32>
    %98 = arith.addf %95, %97 : vector<8x128xf32>
    %c0_48 = arith.constant 0 : index
    %c0_49 = arith.constant 0 : index
    %c0_50 = arith.constant 0 : index
    %99 = vector.load %arg2[%c0_48, %c0_49, %c0_50] : memref<1x8x128xbf16, #tpu.memory_space<vmem>>, vector<1x8x128xbf16>
    %100 = vector.shape_cast %99 : vector<1x8x128xbf16> to vector<8x128xbf16>
    %c0_51 = arith.constant 0 : index
    %c0_52 = arith.constant 0 : index
    %101 = vector.load %arg13[%c0_51, %c0_52] : memref<128x256xbf16, #tpu.memory_space<vmem>>, vector<128x256xbf16>
    %cst_53 = arith.constant dense<0.000000e+00> : vector<8x256xf32>
    %102 = tpu.matmul %100, %101, %cst_53 {dimension_numbers = #tpu.dot_dimension_numbers<[1], [0], [0], [1], [0, 0, 1, 1], [], []>} : vector<8x128xbf16>, vector<128x256xbf16>, vector<8x256xf32> -> vector<8x256xf32>
    %c0_54 = arith.constant 0 : index
    %c0_55 = arith.constant 0 : index
    %103 = vector.load %arg14[%c0_54, %c0_55] : memref<1x256xf32, #tpu.memory_space<vmem>>, vector<1x256xf32>
    %104 = vector.broadcast %103 : vector<1x256xf32> to vector<8x256xf32>
    %105 = arith.addf %102, %104 : vector<8x256xf32>
    %106 = vector.extract_strided_slice %105 {offsets = [0, 0], sizes = [8, 128], strides = [1, 1]} : vector<8x256xf32> to vector<8x128xf32>
    %107 = vector.extract_strided_slice %105 {offsets = [0, 128], sizes = [8, 128], strides = [1, 1]} : vector<8x256xf32> to vector<8x128xf32>
    %108 = arith.truncf %98 : vector<8x128xf32> to vector<8x128xbf16>
    %109 = arith.truncf %106 : vector<8x128xf32> to vector<8x128xbf16>
    %110 = arith.truncf %107 : vector<8x128xf32> to vector<8x128xbf16>
    %111 = vector.extract_strided_slice %108 {offsets = [0, 0], sizes = [8, 32], strides = [1, 1]} : vector<8x128xbf16> to vector<8x32xbf16>
    %112 = vector.extract_strided_slice %109 {offsets = [0, 0], sizes = [8, 32], strides = [1, 1]} : vector<8x128xbf16> to vector<8x32xbf16>
    %cst_56 = arith.constant dense<0.000000e+00> : vector<8x8xf32>
    %113 = tpu.matmul %111, %112, %cst_56 {dimension_numbers = #tpu.dot_dimension_numbers<[1], [1], [0], [0], [0, 0, 1, 0], [], []>} : vector<8x32xbf16>, vector<8x32xbf16>, vector<8x8xf32> -> vector<8x8xf32>
    %114 = vector.extract_strided_slice %108 {offsets = [0, 32], sizes = [8, 32], strides = [1, 1]} : vector<8x128xbf16> to vector<8x32xbf16>
    %115 = vector.extract_strided_slice %109 {offsets = [0, 32], sizes = [8, 32], strides = [1, 1]} : vector<8x128xbf16> to vector<8x32xbf16>
    %cst_57 = arith.constant dense<0.000000e+00> : vector<8x8xf32>
    %116 = tpu.matmul %114, %115, %cst_57 {dimension_numbers = #tpu.dot_dimension_numbers<[1], [1], [0], [0], [0, 0, 1, 0], [], []>} : vector<8x32xbf16>, vector<8x32xbf16>, vector<8x8xf32> -> vector<8x8xf32>
    %117 = vector.extract_strided_slice %108 {offsets = [0, 64], sizes = [8, 32], strides = [1, 1]} : vector<8x128xbf16> to vector<8x32xbf16>
    %118 = vector.extract_strided_slice %109 {offsets = [0, 64], sizes = [8, 32], strides = [1, 1]} : vector<8x128xbf16> to vector<8x32xbf16>
    %cst_58 = arith.constant dense<0.000000e+00> : vector<8x8xf32>
    %119 = tpu.matmul %117, %118, %cst_58 {dimension_numbers = #tpu.dot_dimension_numbers<[1], [1], [0], [0], [0, 0, 1, 0], [], []>} : vector<8x32xbf16>, vector<8x32xbf16>, vector<8x8xf32> -> vector<8x8xf32>
    %120 = vector.extract_strided_slice %108 {offsets = [0, 96], sizes = [8, 32], strides = [1, 1]} : vector<8x128xbf16> to vector<8x32xbf16>
    %121 = vector.extract_strided_slice %109 {offsets = [0, 96], sizes = [8, 32], strides = [1, 1]} : vector<8x128xbf16> to vector<8x32xbf16>
    %cst_59 = arith.constant dense<0.000000e+00> : vector<8x8xf32>
    %122 = tpu.matmul %120, %121, %cst_59 {dimension_numbers = #tpu.dot_dimension_numbers<[1], [1], [0], [0], [0, 0, 1, 0], [], []>} : vector<8x32xbf16>, vector<8x32xbf16>, vector<8x8xf32> -> vector<8x8xf32>
    %123 = tpu.concatenate %113, %116, %119, %122 in 0 : vector<8x8xf32>, vector<8x8xf32>, vector<8x8xf32>, vector<8x8xf32> -> vector<32x8xf32>
    %cst_60 = arith.constant 0.176776692 : f32
    %124 = vector.broadcast %cst_60 : f32 to vector<32x8xf32>
    %125 = arith.mulf %123, %124 : vector<32x8xf32>
    %cst_61 = arith.constant dense<0xFF800000> : vector<32xf32>
    %126 = vector.multi_reduction <maximumf>, %125, %cst_61 [1] : vector<32x8xf32> to vector<32xf32>
    %127 = vector.shape_cast %126 : vector<32xf32> to vector<32x1xf32>
    %128 = vector.broadcast %127 : vector<32x1xf32> to vector<32x8xf32>
    %129 = arith.subf %125, %128 : vector<32x8xf32>
    %130 = math.exp %129 : vector<32x8xf32>
    %cst_62 = arith.constant dense<0.000000e+00> : vector<32xf32>
    %131 = vector.multi_reduction <add>, %130, %cst_62 [1] : vector<32x8xf32> to vector<32xf32>
    %132 = vector.shape_cast %131 : vector<32xf32> to vector<32x1xf32>
    %133 = tpu.reciprocal %132 {approx = true} : vector<32x1xf32> -> vector<32x1xf32>
    %134 = vector.broadcast %133 : vector<32x1xf32> to vector<32x8xf32>
    %135 = arith.mulf %130, %134 : vector<32x8xf32>
    %136 = arith.truncf %135 : vector<32x8xf32> to vector<32x8xbf16>
    %137 = vector.extract_strided_slice %136 {offsets = [0, 0], sizes = [8, 8], strides = [1, 1]} : vector<32x8xbf16> to vector<8x8xbf16>
    %138 = vector.extract_strided_slice %110 {offsets = [0, 0], sizes = [8, 32], strides = [1, 1]} : vector<8x128xbf16> to vector<8x32xbf16>
    %cst_63 = arith.constant dense<0.000000e+00> : vector<8x32xf32>
    %139 = tpu.matmul %137, %138, %cst_63 {dimension_numbers = #tpu.dot_dimension_numbers<[1], [0], [0], [1], [0, 0, 1, 1], [], []>} : vector<8x8xbf16>, vector<8x32xbf16>, vector<8x32xf32> -> vector<8x32xf32>
    %c0_64 = arith.constant 0 : index
    %c0_65 = arith.constant 0 : index
    %140 = vector.load %arg26[%c0_64, %c0_65] : memref<8x128xf32, #tpu.memory_space<vmem>>, vector<8x32xf32>
    tpu.vector_store %arg26[%c0_64, %c0_65], %139 {strides = array<i32>} : memref<8x128xf32, #tpu.memory_space<vmem>>, vector<8x32xf32>,
    %141 = vector.extract_strided_slice %136 {offsets = [8, 0], sizes = [8, 8], strides = [1, 1]} : vector<32x8xbf16> to vector<8x8xbf16>
    %142 = vector.extract_strided_slice %110 {offsets = [0, 32], sizes = [8, 32], strides = [1, 1]} : vector<8x128xbf16> to vector<8x32xbf16>
    %cst_66 = arith.constant dense<0.000000e+00> : vector<8x32xf32>
    %143 = tpu.matmul %141, %142, %cst_66 {dimension_numbers = #tpu.dot_dimension_numbers<[1], [0], [0], [1], [0, 0, 1, 1], [], []>} : vector<8x8xbf16>, vector<8x32xbf16>, vector<8x32xf32> -> vector<8x32xf32>
    %c0_67 = arith.constant 0 : index
    %c32_68 = arith.constant 32 : index
    %144 = vector.load %arg26[%c0_67, %c32_68] : memref<8x128xf32, #tpu.memory_space<vmem>>, vector<8x32xf32>
    tpu.vector_store %arg26[%c0_67, %c32_68], %143 {strides = array<i32>} : memref<8x128xf32, #tpu.memory_space<vmem>>, vector<8x32xf32>,
    %145 = vector.extract_strided_slice %136 {offsets = [16, 0], sizes = [8, 8], strides = [1, 1]} : vector<32x8xbf16> to vector<8x8xbf16>
    %146 = vector.extract_strided_slice %110 {offsets = [0, 64], sizes = [8, 32], strides = [1, 1]} : vector<8x128xbf16> to vector<8x32xbf16>
    %cst_69 = arith.constant dense<0.000000e+00> : vector<8x32xf32>
    %147 = tpu.matmul %145, %146, %cst_69 {dimension_numbers = #tpu.dot_dimension_numbers<[1], [0], [0], [1], [0, 0, 1, 1], [], []>} : vector<8x8xbf16>, vector<8x32xbf16>, vector<8x32xf32> -> vector<8x32xf32>
    %c0_70 = arith.constant 0 : index
    %c64_71 = arith.constant 64 : index
    %148 = vector.load %arg26[%c0_70, %c64_71] : memref<8x128xf32, #tpu.memory_space<vmem>>, vector<8x32xf32>
    tpu.vector_store %arg26[%c0_70, %c64_71], %147 {strides = array<i32>} : memref<8x128xf32, #tpu.memory_space<vmem>>, vector<8x32xf32>,
    %149 = vector.extract_strided_slice %136 {offsets = [24, 0], sizes = [8, 8], strides = [1, 1]} : vector<32x8xbf16> to vector<8x8xbf16>
    %150 = vector.extract_strided_slice %110 {offsets = [0, 96], sizes = [8, 32], strides = [1, 1]} : vector<8x128xbf16> to vector<8x32xbf16>
    %cst_72 = arith.constant dense<0.000000e+00> : vector<8x32xf32>
    %151 = tpu.matmul %149, %150, %cst_72 {dimension_numbers = #tpu.dot_dimension_numbers<[1], [0], [0], [1], [0, 0, 1, 1], [], []>} : vector<8x8xbf16>, vector<8x32xbf16>, vector<8x32xf32> -> vector<8x32xf32>
    %c0_73 = arith.constant 0 : index
    %c96_74 = arith.constant 96 : index
    %152 = vector.load %arg26[%c0_73, %c96_74] : memref<8x128xf32, #tpu.memory_space<vmem>>, vector<8x32xf32>
    tpu.vector_store %arg26[%c0_73, %c96_74], %151 {strides = array<i32>} : memref<8x128xf32, #tpu.memory_space<vmem>>, vector<8x32xf32>,
    %c0_75 = arith.constant 0 : index
    %c0_76 = arith.constant 0 : index
    %153 = vector.load %arg26[%c0_75, %c0_76] : memref<8x128xf32, #tpu.memory_space<vmem>>, vector<8x128xf32>
    %154 = arith.truncf %153 : vector<8x128xf32> to vector<8x128xbf16>
    %c0_77 = arith.constant 0 : index
    %c0_78 = arith.constant 0 : index
    %155 = vector.load %arg15[%c0_77, %c0_78] : memref<128x128xbf16, #tpu.memory_space<vmem>>, vector<128x128xbf16>
    %cst_79 = arith.constant dense<0.000000e+00> : vector<8x128xf32>
    %156 = tpu.matmul %154, %155, %cst_79 {dimension_numbers = #tpu.dot_dimension_numbers<[1], [0], [0], [1], [0, 0, 1, 1], [], []>} : vector<8x128xbf16>, vector<128x128xbf16>, vector<8x128xf32> -> vector<8x128xf32>
    %c0_80 = arith.constant 0 : index
    %c0_81 = arith.constant 0 : index
    %157 = vector.load %arg16[%c0_80, %c0_81] : memref<1x128xf32, #tpu.memory_space<vmem>>, vector<1x128xf32>
    %158 = vector.broadcast %157 : vector<1x128xf32> to vector<8x128xf32>
    %159 = arith.addf %156, %158 : vector<8x128xf32>
    %160 = arith.addf %92, %159 : vector<8x128xf32>
    %c0_82 = arith.constant 0 : index
    %c0_83 = arith.constant 0 : index
    %161 = vector.load %arg17[%c0_82, %c0_83] : memref<1x128xf32, #tpu.memory_space<vmem>>, vector<1x128xf32>
    %c0_84 = arith.constant 0 : index
    %c0_85 = arith.constant 0 : index
    %162 = vector.load %arg18[%c0_84, %c0_85] : memref<1x128xf32, #tpu.memory_space<vmem>>, vector<1x128xf32>
    %cst_86 = arith.constant dense<0.000000e+00> : vector<8xf32>
    %163 = vector.multi_reduction <add>, %160, %cst_86 [1] : vector<8x128xf32> to vector<8xf32>
    %164 = vector.shape_cast %163 : vector<8xf32> to vector<8x1xf32>
    %cst_87 = arith.constant 1.280000e+02 : f32
    %165 = vector.broadcast %cst_87 : f32 to vector<8x1xf32>
    %166 = arith.divf %164, %165 : vector<8x1xf32>
    %167 = vector.broadcast %166 : vector<8x1xf32> to vector<8x128xf32>
    %168 = arith.subf %160, %167 : vector<8x128xf32>
    %169 = arith.mulf %168, %168 : vector<8x128xf32>
    %cst_88 = arith.constant dense<0.000000e+00> : vector<8xf32>
    %170 = vector.multi_reduction <add>, %169, %cst_88 [1] : vector<8x128xf32> to vector<8xf32>
    %171 = vector.shape_cast %170 : vector<8xf32> to vector<8x1xf32>
    %cst_89 = arith.constant 1.280000e+02 : f32
    %172 = vector.broadcast %cst_89 : f32 to vector<8x1xf32>
    %173 = arith.divf %171, %172 : vector<8x1xf32>
    %cst_90 = arith.constant 9.99999974E-6 : f32
    %174 = vector.broadcast %cst_90 : f32 to vector<8x1xf32>
    %175 = arith.addf %173, %174 : vector<8x1xf32>
    %176 = math.rsqrt %175 : vector<8x1xf32>
    %177 = vector.broadcast %176 : vector<8x1xf32> to vector<8x128xf32>
    %178 = arith.mulf %168, %177 : vector<8x128xf32>
    %179 = vector.broadcast %161 : vector<1x128xf32> to vector<8x128xf32>
    %180 = arith.mulf %178, %179 : vector<8x128xf32>
    %181 = vector.broadcast %162 : vector<1x128xf32> to vector<8x128xf32>
    %182 = arith.addf %180, %181 : vector<8x128xf32>
    %183 = arith.truncf %182 : vector<8x128xf32> to vector<8x128xbf16>
    %c0_91 = arith.constant 0 : index
    %c0_92 = arith.constant 0 : index
    %184 = vector.load %arg19[%c0_91, %c0_92] : memref<128x256xbf16, #tpu.memory_space<vmem>>, vector<128x256xbf16>
    %cst_93 = arith.constant dense<0.000000e+00> : vector<8x256xf32>
    %185 = tpu.matmul %183, %184, %cst_93 {dimension_numbers = #tpu.dot_dimension_numbers<[1], [0], [0], [1], [0, 0, 1, 1], [], []>} : vector<8x128xbf16>, vector<128x256xbf16>, vector<8x256xf32> -> vector<8x256xf32>
    %c0_94 = arith.constant 0 : index
    %c0_95 = arith.constant 0 : index
    %186 = vector.load %arg20[%c0_94, %c0_95] : memref<1x256xf32, #tpu.memory_space<vmem>>, vector<1x256xf32>
    %187 = vector.broadcast %186 : vector<1x256xf32> to vector<8x256xf32>
    %188 = arith.addf %185, %187 : vector<8x256xf32>
    %189 = arith.mulf %188, %188 : vector<8x256xf32>
    %190 = arith.mulf %188, %189 : vector<8x256xf32>
    %cst_96 = arith.constant 4.471500e-02 : f32
    %191 = vector.broadcast %cst_96 : f32 to vector<8x256xf32>
    %192 = arith.mulf %191, %190 : vector<8x256xf32>
    %193 = arith.addf %188, %192 : vector<8x256xf32>
    %cst_97 = arith.constant 0.797884583 : f32
    %194 = vector.broadcast %cst_97 : f32 to vector<8x256xf32>
    %195 = arith.mulf %194, %193 : vector<8x256xf32>
    %196 = math.tanh %195 : vector<8x256xf32>
    %cst_98 = arith.constant 1.000000e+00 : f32
    %197 = vector.broadcast %cst_98 : f32 to vector<8x256xf32>
    %198 = arith.addf %197, %196 : vector<8x256xf32>
    %cst_99 = arith.constant 5.000000e-01 : f32
    %199 = vector.broadcast %cst_99 : f32 to vector<8x256xf32>
    %200 = arith.mulf %199, %198 : vector<8x256xf32>
    %201 = arith.mulf %188, %200 : vector<8x256xf32>
    %202 = arith.truncf %201 : vector<8x256xf32> to vector<8x256xbf16>
    %c0_100 = arith.constant 0 : index
    %c0_101 = arith.constant 0 : index
    %203 = vector.load %arg21[%c0_100, %c0_101] : memref<256x128xbf16, #tpu.memory_space<vmem>>, vector<256x128xbf16>
    %cst_102 = arith.constant dense<0.000000e+00> : vector<8x128xf32>
    %204 = tpu.matmul %202, %203, %cst_102 {dimension_numbers = #tpu.dot_dimension_numbers<[1], [0], [0], [1], [0, 0, 1, 1], [], []>} : vector<8x256xbf16>, vector<256x128xbf16>, vector<8x128xf32> -> vector<8x128xf32>
    %c0_103 = arith.constant 0 : index
    %c0_104 = arith.constant 0 : index
    %205 = vector.load %arg22[%c0_103, %c0_104] : memref<1x128xf32, #tpu.memory_space<vmem>>, vector<1x128xf32>
    %206 = vector.broadcast %205 : vector<1x128xf32> to vector<8x128xf32>
    %207 = arith.addf %204, %206 : vector<8x128xf32>
    %208 = arith.addf %182, %207 : vector<8x128xf32>
    %c0_105 = arith.constant 0 : index
    %c0_106 = arith.constant 0 : index
    %209 = vector.load %arg23[%c0_105, %c0_106] : memref<1x128xf32, #tpu.memory_space<vmem>>, vector<1x128xf32>
    %c0_107 = arith.constant 0 : index
    %c0_108 = arith.constant 0 : index
    %210 = vector.load %arg24[%c0_107, %c0_108] : memref<1x128xf32, #tpu.memory_space<vmem>>, vector<1x128xf32>
    %cst_109 = arith.constant dense<0.000000e+00> : vector<8xf32>
    %211 = vector.multi_reduction <add>, %208, %cst_109 [1] : vector<8x128xf32> to vector<8xf32>
    %212 = vector.shape_cast %211 : vector<8xf32> to vector<8x1xf32>
    %cst_110 = arith.constant 1.280000e+02 : f32
    %213 = vector.broadcast %cst_110 : f32 to vector<8x1xf32>
    %214 = arith.divf %212, %213 : vector<8x1xf32>
    %215 = vector.broadcast %214 : vector<8x1xf32> to vector<8x128xf32>
    %216 = arith.subf %208, %215 : vector<8x128xf32>
    %217 = arith.mulf %216, %216 : vector<8x128xf32>
    %cst_111 = arith.constant dense<0.000000e+00> : vector<8xf32>
    %218 = vector.multi_reduction <add>, %217, %cst_111 [1] : vector<8x128xf32> to vector<8xf32>
    %219 = vector.shape_cast %218 : vector<8xf32> to vector<8x1xf32>
    %cst_112 = arith.constant 1.280000e+02 : f32
    %220 = vector.broadcast %cst_112 : f32 to vector<8x1xf32>
    %221 = arith.divf %219, %220 : vector<8x1xf32>
    %cst_113 = arith.constant 9.99999974E-6 : f32
    %222 = vector.broadcast %cst_113 : f32 to vector<8x1xf32>
    %223 = arith.addf %221, %222 : vector<8x1xf32>
    %224 = math.rsqrt %223 : vector<8x1xf32>
    %225 = vector.broadcast %224 : vector<8x1xf32> to vector<8x128xf32>
    %226 = arith.mulf %216, %225 : vector<8x128xf32>
    %227 = vector.broadcast %209 : vector<1x128xf32> to vector<8x128xf32>
    %228 = arith.mulf %226, %227 : vector<8x128xf32>
    %229 = vector.broadcast %210 : vector<1x128xf32> to vector<8x128xf32>
    %230 = arith.addf %228, %229 : vector<8x128xf32>
    %231 = arith.truncf %230 : vector<8x128xf32> to vector<8x128xbf16>
    %c0_114 = arith.constant 0 : index
    %c0_115 = arith.constant 0 : index
    %c0_116 = arith.constant 0 : index
    %232 = vector.load %arg25[%c0_114, %c0_115, %c0_116] : memref<1x8x128xbf16, #tpu.memory_space<vmem>>, vector<1x8x128xbf16>
    %233 = vector.shape_cast %232 : vector<1x8x128xbf16> to vector<8x128xbf16>
    %234 = vector.shape_cast %231 : vector<8x128xbf16> to vector<1x8x128xbf16>
    tpu.vector_store %arg25[%c0_114, %c0_115, %c0_116], %234 {strides = array<i32>} : memref<1x8x128xbf16, #tpu.memory_space<vmem>>, vector<1x8x128xbf16>,
    return
  }
  func.func @transform_0(%arg0: i32) -> (i32, i32, i32) {
    %c0_i32 = arith.constant 0 : i32
    %c0_i32_0 = arith.constant 0 : i32
    %c0_i32_1 = arith.constant 0 : i32
    return %arg0, %c0_i32, %c0_i32_0 : i32, i32, i32
  }
  func.func @transform_1(%arg0: i32) -> (i32, i32, i32) {
    %c0_i32 = arith.constant 0 : i32
    %c0_i32_0 = arith.constant 0 : i32
    %c0_i32_1 = arith.constant 0 : i32
    return %arg0, %c0_i32, %c0_i32_0 : i32, i32, i32
  }
  func.func @transform_2(%arg0: i32) -> (i32, i32) {
    %c0_i32 = arith.constant 0 : i32
    %c0_i32_0 = arith.constant 0 : i32
    %c0_i32_1 = arith.constant 0 : i32
    return %c0_i32, %c0_i32_0 : i32, i32
  }
  func.func @transform_3(%arg0: i32) -> (i32, i32, i32) {
    %c0_i32 = arith.constant 0 : i32
    %c0_i32_0 = arith.constant 0 : i32
    %c0_i32_1 = arith.constant 0 : i32
    return %arg0, %c0_i32, %c0_i32_0 : i32, i32, i32
  }
  func.func @transform_4(%arg0: i32) -> (i32, i32) {
    %c0_i32 = arith.constant 0 : i32
    %c0_i32_0 = arith.constant 0 : i32
    %c0_i32_1 = arith.constant 0 : i32
    return %c0_i32, %c0_i32_0 : i32, i32
  }
  func.func @transform_5(%arg0: i32) -> (i32, i32) {
    %c0_i32 = arith.constant 0 : i32
    %c0_i32_0 = arith.constant 0 : i32
    %c0_i32_1 = arith.constant 0 : i32
    return %c0_i32, %c0_i32_0 : i32, i32
  }
  func.func @transform_6(%arg0: i32) -> (i32, i32) {
    %c0_i32 = arith.constant 0 : i32
    %c0_i32_0 = arith.constant 0 : i32
    %c0_i32_1 = arith.constant 0 : i32
    return %c0_i32, %c0_i32_0 : i32, i32
  }
  func.func @transform_7(%arg0: i32) -> (i32, i32) {
    %c0_i32 = arith.constant 0 : i32
    %c0_i32_0 = arith.constant 0 : i32
    %c0_i32_1 = arith.constant 0 : i32
    return %c0_i32, %c0_i32_0 : i32, i32
  }
  func.func @transform_8(%arg0: i32) -> (i32, i32) {
    %c0_i32 = arith.constant 0 : i32
    %c0_i32_0 = arith.constant 0 : i32
    %c0_i32_1 = arith.constant 0 : i32
    return %c0_i32, %c0_i32_0 : i32, i32
  }
  func.func @transform_9(%arg0: i32) -> (i32, i32) {
    %c0_i32 = arith.constant 0 : i32
    %c0_i32_0 = arith.constant 0 : i32
    %c0_i32_1 = arith.constant 0 : i32
    return %c0_i32, %c0_i32_0 : i32, i32
  }
  func.func @transform_10(%arg0: i32) -> (i32, i32) {
    %c0_i32 = arith.constant 0 : i32
    %c0_i32_0 = arith.constant 0 : i32
    %c0_i32_1 = arith.constant 0 : i32
    return %c0_i32, %c0_i32_0 : i32, i32
  }
  func.func @transform_11(%arg0: i32) -> (i32, i32) {
    %c0_i32 = arith.constant 0 : i32
    %c0_i32_0 = arith.constant 0 : i32
    %c0_i32_1 = arith.constant 0 : i32
    return %c0_i32, %c0_i32_0 : i32, i32
  }
  func.func @transform_12(%arg0: i32) -> (i32, i32) {
    %c0_i32 = arith.constant 0 : i32
    %c0_i32_0 = arith.constant 0 : i32
    %c0_i32_1 = arith.constant 0 : i32
    return %c0_i32, %c0_i32_0 : i32, i32
  }
  func.func @transform_13(%arg0: i32) -> (i32, i32) {
    %c0_i32 = arith.constant 0 : i32
    %c0_i32_0 = arith.constant 0 : i32
    %c0_i32_1 = arith.constant 0 : i32
    return %c0_i32, %c0_i32_0 : i32, i32
  }
  func.func @transform_14(%arg0: i32) -> (i32, i32) {
    %c0_i32 = arith.constant 0 : i32
    %c0_i32_0 = arith.constant 0 : i32
    %c0_i32_1 = arith.constant 0 : i32
    return %c0_i32, %c0_i32_0 : i32, i32
  }
  func.func @transform_15(%arg0: i32) -> (i32, i32) {
    %c0_i32 = arith.constant 0 : i32
    %c0_i32_0 = arith.constant 0 : i32
    %c0_i32_1 = arith.constant 0 : i32
    return %c0_i32, %c0_i32_0 : i32, i32
  }
  func.func @transform_16(%arg0: i32) -> (i32, i32) {
    %c0_i32 = arith.constant 0 : i32
    %c0_i32_0 = arith.constant 0 : i32
    %c0_i32_1 = arith.constant 0 : i32
    return %c0_i32, %c0_i32_0 : i32, i32
  }
  func.func @transform_17(%arg0: i32) -> (i32, i32) {
    %c0_i32 = arith.constant 0 : i32
    %c0_i32_0 = arith.constant 0 : i32
    %c0_i32_1 = arith.constant 0 : i32
    return %c0_i32, %c0_i32_0 : i32, i32
  }
  func.func @transform_18(%arg0: i32) -> (i32, i32) {
    %c0_i32 = arith.constant 0 : i32
    %c0_i32_0 = arith.constant 0 : i32
    %c0_i32_1 = arith.constant 0 : i32
    return %c0_i32, %c0_i32_0 : i32, i32
  }
  func.func @transform_19(%arg0: i32) -> (i32, i32) {
    %c0_i32 = arith.constant 0 : i32
    %c0_i32_0 = arith.constant 0 : i32
    %c0_i32_1 = arith.constant 0 : i32
    return %c0_i32, %c0_i32_0 : i32, i32
  }
  func.func @transform_20(%arg0: i32) -> (i32, i32) {
    %c0_i32 = arith.constant 0 : i32
    %c0_i32_0 = arith.constant 0 : i32
    %c0_i32_1 = arith.constant 0 : i32
    return %c0_i32, %c0_i32_0 : i32, i32
  }
  func.func @transform_21(%arg0: i32) -> (i32, i32) {
    %c0_i32 = arith.constant 0 : i32
    %c0_i32_0 = arith.constant 0 : i32
    %c0_i32_1 = arith.constant 0 : i32
    return %c0_i32, %c0_i32_0 : i32, i32
  }
  func.func @transform_22(%arg0: i32) -> (i32, i32) {
    %c0_i32 = arith.constant 0 : i32
    %c0_i32_0 = arith.constant 0 : i32
    %c0_i32_1 = arith.constant 0 : i32
    return %c0_i32, %c0_i32_0 : i32, i32
  }
  func.func @transform_23(%arg0: i32) -> (i32, i32) {
    %c0_i32 = arith.constant 0 : i32
    %c0_i32_0 = arith.constant 0 : i32
    %c0_i32_1 = arith.constant 0 : i32
    return %c0_i32, %c0_i32_0 : i32, i32
  }
  func.func @transform_24(%arg0: i32) -> (i32, i32, i32) {
    %c0_i32 = arith.constant 0 : i32
    %c0_i32_0 = arith.constant 0 : i32
    %c0_i32_1 = arith.constant 0 : i32
    return %arg0, %c0_i32, %c0_i32_0 : i32, i32, i32
  }
}

module attributes {stable_mosaic.version = 11 : i64} {
  func.func @_lm_head_kernel(%arg0: i32, %arg1: memref<16x128xbf16, #tpu.memory_space<vmem>>, %arg2: memref<128x256xbf16, #tpu.memory_space<vmem>>, %arg3: memref<1x256xf32, #tpu.memory_space<vmem>>, %arg4: memref<16x256xf32, #tpu.memory_space<vmem>>) attributes {dimension_semantics = [#tpu.dimension_semantics<parallel>], iteration_bounds = array<i64: 2>, scalar_prefetch = 0 : i64, scratch_operands = 0 : i64, tpu.core_type = #tpu.core_type<tc>, window_params = [{pipeline_mode = #tpu.pipeline_mode<synchronous>, transform_indices = @transform_0, window_bounds = array<i64: 16, 128>}, {transform_indices = @transform_1, window_bounds = array<i64: 128, 256>}, {transform_indices = @transform_2, window_bounds = array<i64: 1, 256>}, {transform_indices = @transform_3, window_bounds = array<i64: 16, 256>}]} {
    %c0 = arith.constant 0 : index
    %c0_0 = arith.constant 0 : index
    %0 = vector.load %arg1[%c0, %c0_0] : memref<16x128xbf16, #tpu.memory_space<vmem>>, vector<16x128xbf16>
    %c0_1 = arith.constant 0 : index
    %c0_2 = arith.constant 0 : index
    %1 = vector.load %arg2[%c0_1, %c0_2] : memref<128x256xbf16, #tpu.memory_space<vmem>>, vector<128x256xbf16>
    %cst = arith.constant dense<0.000000e+00> : vector<16x256xf32>
    %2 = tpu.matmul %0, %1, %cst {dimension_numbers = #tpu.dot_dimension_numbers<[1], [0], [0], [1], [0, 0, 1, 1], [], []>} : vector<16x128xbf16>, vector<128x256xbf16>, vector<16x256xf32> -> vector<16x256xf32>
    %c0_3 = arith.constant 0 : index
    %c0_4 = arith.constant 0 : index
    %3 = vector.load %arg3[%c0_3, %c0_4] : memref<1x256xf32, #tpu.memory_space<vmem>>, vector<1x256xf32>
    %4 = vector.broadcast %3 : vector<1x256xf32> to vector<16x256xf32>
    %5 = arith.addf %2, %4 : vector<16x256xf32>
    %c0_5 = arith.constant 0 : index
    %c0_6 = arith.constant 0 : index
    %6 = vector.load %arg4[%c0_5, %c0_6] : memref<16x256xf32, #tpu.memory_space<vmem>>, vector<16x256xf32>
    tpu.vector_store %arg4[%c0_5, %c0_6], %5 {strides = array<i32>} : memref<16x256xf32, #tpu.memory_space<vmem>>, vector<16x256xf32>,
    return
  }
  func.func @transform_0(%arg0: i32) -> (i32, i32) {
    %c0_i32 = arith.constant 0 : i32
    %c0_i32_0 = arith.constant 0 : i32
    %c0_i32_1 = arith.constant 0 : i32
    return %c0_i32, %c0_i32_0 : i32, i32
  }
  func.func @transform_1(%arg0: i32) -> (i32, i32) {
    %c0_i32 = arith.constant 0 : i32
    %c0_i32_0 = arith.constant 0 : i32
    return %c0_i32, %arg0 : i32, i32
  }
  func.func @transform_2(%arg0: i32) -> (i32, i32) {
    %c0_i32 = arith.constant 0 : i32
    %c0_i32_0 = arith.constant 0 : i32
    return %c0_i32, %arg0 : i32, i32
  }
  func.func @transform_3(%arg0: i32) -> (i32, i32) {
    %c0_i32 = arith.constant 0 : i32
    %c0_i32_0 = arith.constant 0 : i32
    return %c0_i32, %arg0 : i32, i32
  }
}

</mosaic_0001>

<llo_original>
// kernel: blip_forward.5
$region0: #{blip_forward.5}
  #allocation0 [shape = 'u32[]', space=smem, size = 0x4, offset = 0x4, fixed_abs, tag = 'smem constant byte address 0x4 - core index']
  #allocation1 [shape = 'u32[72,128]{1,0:T(1,128)}', space=vmem, size = 0x9000, scoped, tag = 'internal scratch']
  %s0 = inlined_call_operand.vmem [shape: bf16[16,128], index: 0, kind: input, shape index: {}]
  %s1 = inlined_call_operand.vmem [shape: bf16[128,512], index: 1, kind: input, shape index: {}]
  %s2 = inlined_call_operand.vmem [shape: f32[1,512], index: 2, kind: input, shape index: {}]
  %s3 = inlined_call_operand.hbm [shape: f32[16,512], index: 3, kind: output, shape index: {}]
  %s4 = sld [smem:[#allocation0]]
  $region83: #{blip_forward.5} parent=0
    _
  %s6 = ssub.s32 1, %s4
  %s7 = scalar_select 0, %s6, %s4
  $region1: #{blip_forward.5} parent=0
    #allocation2 [shape = 'u8[131072]{0}', space=vmem, size = 0x20000, scoped, tag = 'input window, operand 1']
    #allocation3 [shape = 'u8[32768]{0}', space=vmem, size = 0x8000, scoped, tag = 'output window, operand 0']
    #allocation4 [shape = 's32[2]{0}', space=sflag, size = 0x8, scoped, tag = 'scoped memory for blip_forward.5']
    %8 = vsyncpa [#allocation4], 0
    %s9 = scalar_lea.sflag [#allocation4], 1
    %10 = vsyncpa %s9, 0
    loop: start=0, step=1, limit=4
    $region2: #{blip_forward.5} parent=1 // loop_pre_header
      _
    $region3: #{blip_forward.5} parent=1 // loop_header
      %s12 = sphi 0, %s16
      %p13 = scmp.ge.s32.totalorder %s12, 4
      %s20 = sphi 0, %s20
      %s22 = sphi 0, %s20
      %s23 = sphi 0, %s22
      %s37 = sphi 0, %s23
      %s43 = sphi 0, %s45
      %s46 = sphi 0, %s43
      %s47 = sphi 0, %s46
      %s63 = sphi 0, %s47
      %s69 = sphi 0, %s71
      %s72 = sphi 0, %s69
      %s73 = sphi 0, %s72
      %s89 = sphi 0, %s73
      %s95 = sphi 0, %s97
      %s98 = sphi 0, %s95
      %s99 = sphi 0, %s98
      %s115 = sphi 0, %s99
    $region4: #{blip_forward.5} parent=1 // loop_header_branch
      %15 = sbr.rel (%p13) target = $region8
    $region5: #{blip_forward.5} parent=1 // loop_body
      %s17 = ssub.s32 %s12, 1
      %s18 = ssub.s32 %s12, 2
      %s19 = sadd.s32 %s12, 1
      %s21 = sadd.s32 %s20, 1
      %p24 = scmp.eq.s32.totalorder %s12, 1
      %p25 = scmp.ne.s32.totalorder %s20, %s22
      %p26 = scmp.eq.s32.totalorder %s12, 0
      %p27 = por %p25, %p26
      %p28 = scmp.ne.s32.totalorder %s20, %s22
      %p29 = scmp.eq.s32.totalorder %s17, 1
      %p30 = por %p28, %p29
      %p31 = scmp.ne.s32.totalorder %s22, %s23
      %p32 = scmp.eq.s32.totalorder %s17, 0
      %p33 = por %p31, %p32
      %p34 = scmp.ne.s32.totalorder %s22, %s23
      %p35 = scmp.eq.s32.totalorder %s18, 1
      %p36 = por %p34, %p35
      %p38 = scmp.ne.s32.totalorder %s23, %s37
      %p39 = scmp.eq.s32.totalorder %s18, 0
      %p40 = por %p38, %p39
      %s41 = ssub.s32 %s12, %s19
      %p42 = scmp.eq.s32.totalorder %s41, 0
      %s44 = sadd.s32 %s43, 1
      %s45 = scalar_select %p42, %s43, %s44
      %p48 = pneg %p42
      %p49 = scmp.eq.s32.totalorder %s12, 1
      %p50 = por %p48, %p49
      %p51 = scmp.ne.s32.totalorder %s43, %s46
      %p52 = scmp.eq.s32.totalorder %s12, 0
      %p53 = por %p51, %p52
      %p54 = scmp.ne.s32.totalorder %s43, %s46
      %p55 = scmp.eq.s32.totalorder %s17, 1
      %p56 = por %p54, %p55
      %p57 = scmp.ne.s32.totalorder %s46, %s47
      %p58 = scmp.eq.s32.totalorder %s17, 0
      %p59 = por %p57, %p58
      %p60 = scmp.ne.s32.totalorder %s46, %s47
      %p61 = scmp.eq.s32.totalorder %s18, 1
      %p62 = por %p60, %p61
      %p64 = scmp.ne.s32.totalorder %s47, %s63
      %p65 = scmp.eq.s32.totalorder %s18, 0
      %p66 = por %p64, %p65
      %s67 = ssub.s32 %s12, %s19
      %p68 = scmp.eq.s32.totalorder %s67, 0
      %s70 = sadd.s32 %s69, 1
      %s71 = scalar_select %p68, %s69, %s70
      %p74 = pneg %p68
      %p75 = scmp.eq.s32.totalorder %s12, 1
      %p76 = por %p74, %p75
      %p77 = scmp.ne.s32.totalorder %s69, %s72
      %p78 = scmp.eq.s32.totalorder %s12, 0
      %p79 = por %p77, %p78
      %p80 = scmp.ne.s32.totalorder %s69, %s72
      %p81 = scmp.eq.s32.totalorder %s17, 1
      %p82 = por %p80, %p81
      %p83 = scmp.ne.s32.totalorder %s72, %s73
      %p84 = scmp.eq.s32.totalorder %s17, 0
      %p85 = por %p83, %p84
      %p86 = scmp.ne.s32.totalorder %s72, %s73
      %p87 = scmp.eq.s32.totalorder %s18, 1
      %p88 = por %p86, %p87
      %p90 = scmp.ne.s32.totalorder %s73, %s89
      %p91 = scmp.eq.s32.totalorder %s18, 0
      %p92 = por %p90, %p91
      %s93 = ssub.s32 %s12, %s19
      %p94 = scmp.eq.s32.totalorder %s93, 0
      %s96 = sadd.s32 %s95, 1
      %s97 = scalar_select %p94, %s95, %s96
      %p100 = pneg %p94
      %p101 = scmp.eq.s32.totalorder %s12, 1
      %p102 = por %p100, %p101
      %p103 = scmp.ne.s32.totalorder %s95, %s98
      %p104 = scmp.eq.s32.totalorder %s12, 0
      %p105 = por %p103, %p104
      %p106 = scmp.ne.s32.totalorder %s95, %s98
      %p107 = scmp.eq.s32.totalorder %s17, 1
      %p108 = por %p106, %p107
      %p109 = scmp.ne.s32.totalorder %s98, %s99
      %p110 = scmp.eq.s32.totalorder %s17, 0
      %p111 = por %p109, %p110
      %p112 = scmp.ne.s32.totalorder %s98, %s99
      %p113 = scmp.eq.s32.totalorder %s18, 1
      %p114 = por %p112, %p113
      %p116 = scmp.ne.s32.totalorder %s99, %s115
      %p117 = scmp.eq.s32.totalorder %s18, 0
      %p118 = por %p116, %p117
      %p119 = scmp.le.s32.totalorder 1, %s12
      %p120 = scmp.lt.s32.totalorder %s12, 3
      %p121 = pnand %p119, %p120
      %p122 = pneg %p121
      // Predicated region
      $region9: #{blip_forward.5} parent=5 // pred_check
        _
      $region10: #{blip_forward.5} parent=5 // pred_check_branch
        %124 = sbr.rel (%p121) target = $region12
      $region11: #{blip_forward.5} parent=5 // pred_region
        %s125 = ssub.s32 %s12, 1
        // Predicated region
        $region13: #{blip_forward.5} parent=11 // pred_check
          %p126 = pneg %p33
        $region14: #{blip_forward.5} parent=11 // pred_check_branch
          %128 = sbr.rel (%p126) target = $region16
        $region15: #{blip_forward.5} parent=11 // pred_region
          _
        $region16: #{blip_forward.5} parent=11 // pred_fallthru
          _
      $region12: #{blip_forward.5} parent=5 // pred_fallthru
        _
      %p129 = scmp.lt.s32.totalorder %s12, 2
      // Predicated region
      $region17: #{blip_forward.5} parent=5 // pred_check
        %p130 = pneg %p129
      $region18: #{blip_forward.5} parent=5 // pred_check_branch
        %132 = sbr.rel (%p130) target = $region20
      $region19: #{blip_forward.5} parent=5 // pred_region
        // Predicated region
        $region21: #{blip_forward.5} parent=19 // pred_check
          %p133 = pneg %p53
        $region22: #{blip_forward.5} parent=19 // pred_check_branch
          %135 = sbr.rel (%p133) target = $region24
        $region23: #{blip_forward.5} parent=19 // pred_region
          %s136 = sand.u32 %s43, 1
          %s137 = sand.u32 %s43, 1
          %s138 = smul.addr %s137, 128
          %s139 = scalar_lea.vmem [#allocation2], %s138
          %s140 = smul.u32 2, %s12
          %s141 = smul.addr %s140, 4
          %s142 = scalar_lea.vmem %s1, %s141
          // Predicated region
          $region25: #{blip_forward.5} parent=23 // pred_check
            _
          $region26: #{blip_forward.5} parent=23 // pred_check_branch
            %144 = sbr.rel (0) target = $region28
          $region27: #{blip_forward.5} parent=23 // pred_region
            // Predicated region
            $region29: #{blip_forward.5} parent=27 // pred_check
              _
            $region30: #{blip_forward.5} parent=27 // pred_check_branch
              %146 = sbr.rel (0) target = $region32
            $region31: #{blip_forward.5} parent=27 // pred_region
              // Predicated region
              $region44: #{blip_forward.5} parent=31 // pred_check
                _
              $region45: #{blip_forward.5} parent=31 // pred_check_branch
                %192 = sbr.rel (0) target = $region47
              $region46: #{blip_forward.5} parent=31 // pred_region
                loop: start=0, step=1, limit=1
                $region48: #{blip_forward.5} parent=46 // loop_pre_header
                  _
                $region49: #{blip_forward.5} parent=46 // loop_header
                  %s194 = sphi 0, %s198
                  %p195 = scmp.ge.s32.totalorder %s194, 1
                  %s199 = sphi %s142, %s142
                  %s200 = sphi %s139, %s139
                $region50: #{blip_forward.5} parent=46 // loop_header_branch
                  %197 = sbr.rel (%p195) target = $region54
                $region51: #{blip_forward.5} parent=46 // loop_body
                  %v201 = vld [vmem:[%s199] sm:$0xff]
                  %202 = vst [vmem:[%s200] sm:$0xff] %v201
                  %v203 = vld [vmem:[%s199 + $0x10] sm:$0xff]
                  %204 = vst [vmem:[%s200 + $0x8] sm:$0xff] %v203
                  %v205 = vld [vmem:[%s199 + $0x20] sm:$0xff]
                  %206 = vst [vmem:[%s200 + $0x10] sm:$0xff] %v205
                  %v207 = vld [vmem:[%s199 + $0x30] sm:$0xff]
                  %208 = vst [vmem:[%s200 + $0x18] sm:$0xff] %v207
                  %v209 = vld [vmem:[%s199 + $0x40] sm:$0xff]
                  %210 = vst [vmem:[%s200 + $0x20] sm:$0xff] %v209
                  %v211 = vld [vmem:[%s199 + $0x50] sm:$0xff]
                  %212 = vst [vmem:[%s200 + $0x28] sm:$0xff] %v211
                  %v213 = vld [vmem:[%s199 + $0x60] sm:$0xff]
                  %214 = vst [vmem:[%s200 + $0x30] sm:$0xff] %v213
                  %v215 = vld [vmem:[%s199 + $0x70] sm:$0xff]
                  %216 = vst [vmem:[%s200 + $0x38] sm:$0xff] %v215
                  %v217 = vld [vmem:[%s199 + $0x80] sm:$0xff]
                  %218 = vst [vmem:[%s200 + $0x40] sm:$0xff] %v217
                  %v219 = vld [vmem:[%s199 + $0x90] sm:$0xff]
                  %220 = vst [vmem:[%s200 + $0x48] sm:$0xff] %v219
                  %v221 = vld [vmem:[%s199 + $0xa0] sm:$0xff]
                  %222 = vst [vmem:[%s200 + $0x50] sm:$0xff] %v221
                  %v223 = vld [vmem:[%s199 + $0xb0] sm:$0xff]
                  %224 = vst [vmem:[%s200 + $0x58] sm:$0xff] %v223
                  %v225 = vld [vmem:[%s199 + $0xc0] sm:$0xff]
                  %226 = vst [vmem:[%s200 + $0x60] sm:$0xff] %v225
                  %v227 = vld [vmem:[%s199 + $0xd0] sm:$0xff]
                  %228 = vst [vmem:[%s200 + $0x68] sm:$0xff] %v227
                  %v229 = vld [vmem:[%s199 + $0xe0] sm:$0xff]
                  %230 = vst [vmem:[%s200 + $0x70] sm:$0xff] %v229
                  %v231 = vld [vmem:[%s199 + $0xf0] sm:$0xff]
                  %232 = vst [vmem:[%s200 + $0x78] sm:$0xff] %v231
                $region52: #{blip_forward.5} parent=46 // loop_footer
                  %s198 = sadd.s32 1, %s194
                $region53: #{blip_forward.5} parent=46 // loop_footer_branch
                  %193 = sbr.rel target = $region49
                $region54: #{blip_forward.5} parent=46 // loop_exit
                  _
              $region47: #{blip_forward.5} parent=31 // pred_fallthru
                _
              // Predicated region
              $region55: #{blip_forward.5} parent=31 // pred_check
                _
              $region56: #{blip_forward.5} parent=31 // pred_check_branch
                %234 = sbr.rel target = $region58
              $region57: #{blip_forward.5} parent=31 // pred_region
                _
              $region58: #{blip_forward.5} parent=31 // pred_fallthru
                _
            $region32: #{blip_forward.5} parent=27 // pred_fallthru
              _
            // Predicated region
            $region33: #{blip_forward.5} parent=27 // pred_check
              _
            $region34: #{blip_forward.5} parent=27 // pred_check_branch
              %148 = sbr.rel target = $region36
            $region35: #{blip_forward.5} parent=27 // pred_region
              %s150 = ssub.s32 256, 1
              loop: start=0, step=1, limit=1
              $region37: #{blip_forward.5} parent=35 // loop_pre_header
                _
              $region38: #{blip_forward.5} parent=35 // loop_header
                %s152 = sphi 0, %s156
                %p153 = scmp.ge.s32.totalorder %s152, 1
                %s157 = sphi %s142, %s142
                %s158 = sphi %s139, %s139
              $region39: #{blip_forward.5} parent=35 // loop_header_branch
                %155 = sbr.rel (%p153) target = $region43
              $region40: #{blip_forward.5} parent=35 // loop_body
                %v159 = vld [vmem:[%s157] sm:%s150]
                %160 = vst [vmem:[%s158] sm:%s150] %v159
                %v161 = vld [vmem:[%s157 + $0x10] sm:%s150]
                %162 = vst [vmem:[%s158 + $0x8] sm:%s150] %v161
                %v163 = vld [vmem:[%s157 + $0x20] sm:%s150]
                %164 = vst [vmem:[%s158 + $0x10] sm:%s150] %v163
                %v165 = vld [vmem:[%s157 + $0x30] sm:%s150]
                %166 = vst [vmem:[%s158 + $0x18] sm:%s150] %v165
                %v167 = vld [vmem:[%s157 + $0x40] sm:%s150]
                %168 = vst [vmem:[%s158 + $0x20] sm:%s150] %v167
                %v169 = vld [vmem:[%s157 + $0x50] sm:%s150]
                %170 = vst [vmem:[%s158 + $0x28] sm:%s150] %v169
                %v171 = vld [vmem:[%s157 + $0x60] sm:%s150]
                %172 = vst [vmem:[%s158 + $0x30] sm:%s150] %v171
                %v173 = vld [vmem:[%s157 + $0x70] sm:%s150]
                %174 = vst [vmem:[%s158 + $0x38] sm:%s150] %v173
                %v175 = vld [vmem:[%s157 + $0x80] sm:%s150]
                %176 = vst [vmem:[%s158 + $0x40] sm:%s150] %v175
                %v177 = vld [vmem:[%s157 + $0x90] sm:%s150]
                %178 = vst [vmem:[%s158 + $0x48] sm:%s150] %v177
                %v179 = vld [vmem:[%s157 + $0xa0] sm:%s150]
                %180 = vst [vmem:[%s158 + $0x50] sm:%s150] %v179
                %v181 = vld [vmem:[%s157 + $0xb0] sm:%s150]
                %182 = vst [vmem:[%s158 + $0x58] sm:%s150] %v181
                %v183 = vld [vmem:[%s157 + $0xc0] sm:%s150]
                %184 = vst [vmem:[%s158 + $0x60] sm:%s150] %v183
                %v185 = vld [vmem:[%s157 + $0xd0] sm:%s150]
                %186 = vst [vmem:[%s158 + $0x68] sm:%s150] %v185
                %v187 = vld [vmem:[%s157 + $0xe0] sm:%s150]
                %188 = vst [vmem:[%s158 + $0x70] sm:%s150] %v187
                %v189 = vld [vmem:[%s157 + $0xf0] sm:%s150]
                %190 = vst [vmem:[%s158 + $0x78] sm:%s150] %v189
              $region41: #{blip_forward.5} parent=35 // loop_footer
                %s156 = sadd.s32 1, %s152
              $region42: #{blip_forward.5} parent=35 // loop_footer_branch
                %151 = sbr.rel target = $region38
              $region43: #{blip_forward.5} parent=35 // loop_exit
                _
            $region36: #{blip_forward.5} parent=27 // pred_fallthru
              _
          $region28: #{blip_forward.5} parent=23 // pred_fallthru
            _
          %235 = vnop
        $region24: #{blip_forward.5} parent=19 // pred_fallthru
          _
        // Predicated region
        $region59: #{blip_forward.5} parent=19 // pred_check
          %p236 = pneg %p79
        $region60: #{blip_forward.5} parent=19 // pred_check_branch
          %238 = sbr.rel (%p236) target = $region62
        $region61: #{blip_forward.5} parent=19 // pred_region
          %s239 = smul.u32 2, %s12
          %p240 = scmp.lt.s32.totalorder %s239, 3
          %s241 = scalar_select %p240, %s239, 3
          %s242 = scalar_lea.vmem %s2, %s241
          %s243 = smul.u32 2, %s12
        $region62: #{blip_forward.5} parent=19 // pred_fallthru
          _
      $region20: #{blip_forward.5} parent=5 // pred_fallthru
        _
      %p244 = scmp.le.s32.totalorder 1, %s12
      %p245 = scmp.lt.s32.totalorder %s12, 3
      %p246 = pnand %p244, %p245
      %p247 = pneg %p246
      // Predicated region
      $region63: #{blip_forward.5} parent=5 // pred_check
        _
      $region64: #{blip_forward.5} parent=5 // pred_check_branch
        %249 = sbr.rel (%p246) target = $region66
      $region65: #{blip_forward.5} parent=5 // pred_region
        %s250 = ssub.s32 %s12, 1
        %s251 = sand.u32 %s46, 1
        %s252 = sand.u32 %s46, 1
        %s253 = smul.addr %s252, 128
        %s254 = scalar_lea.vmem [#allocation2], %s253
        // Predicated region
        $region67: #{blip_forward.5} parent=65 // pred_check
          %p255 = pneg %p59
        $region68: #{blip_forward.5} parent=65 // pred_check_branch
          %257 = sbr.rel (%p255) target = $region70
        $region69: #{blip_forward.5} parent=65 // pred_region
          _
        $region70: #{blip_forward.5} parent=65 // pred_fallthru
          _
        %p258 = pneg %p33
        %p259 = pneg %p30
        %s260 = sand.u32 %s46, 1
        %s261 = sand.u32 %s46, 1
        %s262 = smul.addr %s261, 128
        %s263 = scalar_lea.vmem [#allocation2], %s262
        %p264 = pneg %p59
        %p265 = pneg %p56
        %s266 = smul.u32 2, %s17
        %p267 = scmp.lt.s32.totalorder %s266, 3
        %s268 = scalar_select %p267, %s266, 3
        %s269 = scalar_lea.vmem %s2, %s268
        %p270 = pneg %p85
        %p271 = pneg %p82
        %p272 = pneg %p111
        %p273 = pneg %p108
        %s274 = sand.u32 %s98, 1
        %s275 = scalar_lea.sflag [#allocation4], %s274
        %s276 = sand.u32 %s98, 1
        %s277 = smul.addr %s276, 32
        %s278 = scalar_lea.vmem [#allocation3], %s277
        %s279 = smul.u32 2, %s17
        %s280 = smul.u32 2, %s17
        %p281 = scmp.lt.s32.totalorder %s280, 3
        %s282 = scalar_select %p281, %s280, 3
        %s283 = scalar_lea.vmem %s2, %s282
        %s284 = smul.u32 2, %s17
        %s285 = smul.u32 2, %s17
        %v286 = vld [vmem:[%s0] sm:$0xf]
        %v287 = vld [vmem:[%s0 + $0x4] sm:$0xf]
        %v288 = vld [vmem:[%s254] sm:$0xff]
        %v289 = vld [vmem:[%s254 + $0x8] sm:$0xff]
        %v290 = vld [vmem:[%s254 + $0x10] sm:$0xff]
        %v291 = vld [vmem:[%s254 + $0x18] sm:$0xff]
        %v292 = vld [vmem:[%s254 + $0x20] sm:$0xff]
        %v293 = vld [vmem:[%s254 + $0x28] sm:$0xff]
        %v294 = vld [vmem:[%s254 + $0x30] sm:$0xff]
        %v295 = vld [vmem:[%s254 + $0x38] sm:$0xff]
        %v296 = vld [vmem:[%s254 + $0x40] sm:$0xff]
        %v297 = vld [vmem:[%s254 + $0x48] sm:$0xff]
        %v298 = vld [vmem:[%s254 + $0x50] sm:$0xff]
        %v299 = vld [vmem:[%s254 + $0x58] sm:$0xff]
        %v300 = vld [vmem:[%s254 + $0x60] sm:$0xff]
        %v301 = vld [vmem:[%s254 + $0x68] sm:$0xff]
        %v302 = vld [vmem:[%s254 + $0x70] sm:$0xff]
        %v303 = vld [vmem:[%s254 + $0x78] sm:$0xff]
        %v304 = vld [vmem:[%s283] sm:$0x3]
        %v306 = vperm.slane %v304, 0
        %v307 = vperm.slane %v304, 1
        %v312 = vunpack.c.l.b16 %v286
        %v313 = vunpack.c.l.b16 %v287
        %v314 = vpack.c.b16 %v313, %v312
        %v332 = vunpack.c.l.b16 %v288
        %v333 = vunpack.c.h.b16 %v288
        %v334 = vunpack.c.l.b16 %v289
        %v335 = vunpack.c.h.b16 %v289
        %v336 = vunpack.c.l.b16 %v290
        %v337 = vunpack.c.h.b16 %v290
        %v338 = vunpack.c.l.b16 %v291
        %v339 = vunpack.c.h.b16 %v291
        %v340 = vunpack.c.l.b16 %v292
        %v341 = vunpack.c.h.b16 %v292
        %v342 = vunpack.c.l.b16 %v293
        %v343 = vunpack.c.h.b16 %v293
        %v344 = vunpack.c.l.b16 %v294
        %v345 = vunpack.c.h.b16 %v294
        %v346 = vunpack.c.l.b16 %v295
        %v347 = vunpack.c.h.b16 %v295
        %v348 = vunpack.c.l.b16 %v296
        %v349 = vunpack.c.h.b16 %v296
        %v350 = vunpack.c.l.b16 %v297
        %v351 = vunpack.c.h.b16 %v297
        %v352 = vunpack.c.l.b16 %v298
        %v353 = vunpack.c.h.b16 %v298
        %v354 = vunpack.c.l.b16 %v299
        %v355 = vunpack.c.h.b16 %v299
        %v356 = vunpack.c.l.b16 %v300
        %v357 = vunpack.c.h.b16 %v300
        %v358 = vunpack.c.l.b16 %v301
        %v359 = vunpack.c.h.b16 %v301
        %v360 = vunpack.c.l.b16 %v302
        %v361 = vunpack.c.h.b16 %v302
        %v362 = vunpack.c.l.b16 %v303
        %v363 = vunpack.c.h.b16 %v303
        %v364 = vpack.c.b16 %v334, %v332
        %v365 = vpack.c.b16 %v335, %v333
        %v366 = vpack.c.b16 %v338, %v336
        %v367 = vpack.c.b16 %v339, %v337
        %v368 = vpack.c.b16 %v342, %v340
        %v369 = vpack.c.b16 %v343, %v341
        %v370 = vpack.c.b16 %v346, %v344
        %v371 = vpack.c.b16 %v347, %v345
        %v372 = vpack.c.b16 %v350, %v348
        %v373 = vpack.c.b16 %v351, %v349
        %v374 = vpack.c.b16 %v354, %v352
        %v375 = vpack.c.b16 %v355, %v353
        %v376 = vpack.c.b16 %v358, %v356
        %v377 = vpack.c.b16 %v359, %v357
        %v378 = vpack.c.b16 %v362, %v360
        %v379 = vpack.c.b16 %v363, %v361
        %396 = vmatpush.bf16.msra.mxu0 %v378
        %397 = vmatpush.bf16.msra.mxu0 %v376
        %398 = vmatpush.bf16.msra.mxu0 %v374
        %399 = vmatpush.bf16.msra.mxu0 %v372
        %400 = vmatpush.bf16.msra.mxu0 %v370
        %401 = vmatpush.bf16.msra.mxu0 %v368
        %402 = vmatpush.bf16.msra.mxu0 %v366
        %403 = vmatpush.bf16.msra.mxu0 %v364
        %404 = vmatmul.bf16.gmra.mxu0 %v314
        %v405 = vpop.f32.mrf.mxu0
        %v406 = vadd.f32 %v306, %v405
        %v407 = vpop.f32.mrf.mxu0
        %v408 = vadd.f32 %v306, %v407
        %409 = vdwg.mxu0
        %410 = vmatpush.bf16.msra.mxu0 %v379
        %411 = vmatpush.bf16.msra.mxu0 %v377
        %412 = vmatpush.bf16.msra.mxu0 %v375
        %413 = vmatpush.bf16.msra.mxu0 %v373
        %414 = vmatpush.bf16.msra.mxu0 %v371
        %415 = vmatpush.bf16.msra.mxu0 %v369
        %416 = vmatpush.bf16.msra.mxu0 %v367
        %417 = vmatpush.bf16.msra.mxu0 %v365
        %418 = vmatmul.bf16.gmra.mxu0 %v314
        %v419 = vpop.f32.mrf.mxu0
        %v420 = vadd.f32 %v307, %v419
        %v421 = vpop.f32.mrf.mxu0
        %v422 = vadd.f32 %v307, %v421
        %423 = vdwg.mxu0
        %424 = vst [vmem:[%s278] sm:$0xff] %v406
        %425 = vst [vmem:[%s278 + $0x8] sm:$0xff] %v420
        %426 = vst [vmem:[%s278 + $0x10] sm:$0xff] %v408
        %427 = vst [vmem:[%s278 + $0x18] sm:$0xff] %v422
        %s428 = sand.u32 %s98, 1
        %s429 = scalar_lea.sflag [#allocation4], %s428
        %s430 = sand.u32 %s98, 1
        %s431 = smul.addr %s430, 32
        %s432 = scalar_lea.vmem [#allocation3], %s431
        // Predicated region
        $region71: #{blip_forward.5} parent=65 // pred_check
          %p433 = pneg %p108
        $region72: #{blip_forward.5} parent=65 // pred_check_branch
          %435 = sbr.rel (%p433) target = $region74
        $region73: #{blip_forward.5} parent=65 // pred_region
          %s436 = smul.u32 2, %s17
          %438 = vsyncadd %s429, 0
          %s439 = smul.addr %s436, 8
          %s440 = scalar_lea.hbm %s3, %s439
          %s441 = sshll.u32 %s432, 4
          %s442 = int_to_ptr.vmem [resolvable:$true] %s441
          %s443 = sshll.u32 %s440, 4
          %s444 = int_to_ptr.hbm [resolvable:$true] %s443
          %449 = dma.vmem_to_hbm [thread:$0]  %s442, 512, %s444, %s429, 256, 512, 16
        $region74: #{blip_forward.5} parent=65 // pred_fallthru
          _
      $region66: #{blip_forward.5} parent=5 // pred_fallthru
        _
      %p450 = scmp.le.s32.totalorder 2, %s12
      // Predicated region
      $region75: #{blip_forward.5} parent=5 // pred_check
        %p451 = pneg %p450
      $region76: #{blip_forward.5} parent=5 // pred_check_branch
        %453 = sbr.rel (%p451) target = $region78
      $region77: #{blip_forward.5} parent=5 // pred_region
        %s454 = ssub.s32 %s12, 2
        // Predicated region
        $region79: #{blip_forward.5} parent=77 // pred_check
          %p455 = pneg %p114
        $region80: #{blip_forward.5} parent=77 // pred_check_branch
          %457 = sbr.rel (%p455) target = $region82
        $region81: #{blip_forward.5} parent=77 // pred_region
          %s458 = sand.u32 %s99, 1
          %s459 = scalar_lea.sflag [#allocation4], %s458
          %s460 = sand.u32 %s99, 1
          %s461 = smul.addr %s460, 32
          %s462 = scalar_lea.vmem [#allocation3], %s461
          %464 = dma.done %s459, 512
        $region82: #{blip_forward.5} parent=77 // pred_fallthru
          _
      $region78: #{blip_forward.5} parent=5 // pred_fallthru
        _
    $region6: #{blip_forward.5} parent=1 // loop_footer
      %s16 = sadd.s32 1, %s12
    $region7: #{blip_forward.5} parent=1 // loop_footer_branch
      %11 = sbr.rel target = $region3
    $region8: #{blip_forward.5} parent=1 // loop_exit
      _
    %465 = vsyncpa [#allocation4], 1
    %s466 = scalar_lea.sflag [#allocation4], 1
    %467 = vsyncpa %s466, 1

// kernel: blip_forward.3
$region0: #{blip_forward.3}
  #allocation0 [shape = 'u32[]', space=smem, size = 0x4, offset = 0x4, fixed_abs, tag = 'smem constant byte address 0x4 - core index']
  #allocation1 [shape = 'u32[72,128]{1,0:T(1,128)}', space=vmem, size = 0x9000, scoped, tag = 'internal scratch']
  #allocation2 [shape = 'f32[8,128]{1,0:T(8,128)}', space=vmem, size = 0x1000, scoped, tag = 'scratch operand']
  %s0 = inlined_call_operand.vmem [shape: f32[2,16,192], index: 0, kind: input, shape index: {}]
  %s1 = inlined_call_operand.vmem [shape: bf16[192,128], index: 1, kind: input, shape index: {}]
  %s2 = inlined_call_operand.vmem [shape: f32[1,128], index: 2, kind: input, shape index: {}]
  %s3 = inlined_call_operand.vmem [shape: f32[16,128], index: 3, kind: input, shape index: {}]
  %s4 = inlined_call_operand.vmem [shape: f32[1,128], index: 4, kind: input, shape index: {}]
  %s5 = inlined_call_operand.vmem [shape: f32[1,128], index: 5, kind: input, shape index: {}]
  %s6 = inlined_call_operand.vmem [shape: f32[8,128], index: 6, kind: input, shape index: {}]
  %s7 = inlined_call_operand.vmem [shape: bf16[128,128], index: 7, kind: input, shape index: {}]
  %s8 = inlined_call_operand.vmem [shape: f32[1,128], index: 8, kind: input, shape index: {}]
  %s9 = inlined_call_operand.vmem [shape: bf16[128,256], index: 9, kind: input, shape index: {}]
  %s10 = inlined_call_operand.vmem [shape: f32[1,256], index: 10, kind: input, shape index: {}]
  %s11 = inlined_call_operand.vmem [shape: bf16[128,128], index: 11, kind: input, shape index: {}]
  %s12 = inlined_call_operand.vmem [shape: f32[1,128], index: 12, kind: input, shape index: {}]
  %s13 = inlined_call_operand.vmem [shape: f32[1,128], index: 13, kind: input, shape index: {}]
  %s14 = inlined_call_operand.vmem [shape: f32[1,128], index: 14, kind: input, shape index: {}]
  %s15 = inlined_call_operand.vmem [shape: bf16[128,256], index: 15, kind: input, shape index: {}]
  %s16 = inlined_call_operand.vmem [shape: f32[1,256], index: 16, kind: input, shape index: {}]
  %s17 = inlined_call_operand.vmem [shape: bf16[256,128], index: 17, kind: input, shape index: {}]
  %s18 = inlined_call_operand.vmem [shape: f32[1,128], index: 18, kind: input, shape index: {}]
  %s19 = inlined_call_operand.vmem [shape: f32[1,128], index: 19, kind: input, shape index: {}]
  %s20 = inlined_call_operand.vmem [shape: f32[1,128], index: 20, kind: input, shape index: {}]
  %s21 = inlined_call_operand.vmem [shape: bf16[2,8,128], index: 21, kind: output, shape index: {}]
  %s22 = sld [smem:[#allocation0]]
  $region117: #{blip_forward.3} parent=0
    _
  %s24 = ssub.s32 1, %s22
  %s25 = scalar_select 0, %s24, %s22
  loop: start=0, step=1, limit=4
  $region2: #{blip_forward.3} parent=0 // loop_pre_header
    _
  $region3: #{blip_forward.3} parent=0 // loop_header
    %s27 = sphi 0, %s31
    %p28 = scmp.ge.s32.totalorder %s27, 4
    %s37 = sphi 0, %s39
    %s40 = sphi 0, %s37
    %s41 = sphi 0, %s40
    %s57 = sphi 0, %s41
    %s61 = sphi 0, %s61
    %s63 = sphi 0, %s61
    %s64 = sphi 0, %s63
    %s78 = sphi 0, %s64
    %s82 = sphi 0, %s82
    %s84 = sphi 0, %s82
    %s85 = sphi 0, %s84
    %s99 = sphi 0, %s85
    %s103 = sphi 0, %s103
    %s105 = sphi 0, %s103
    %s106 = sphi 0, %s105
    %s120 = sphi 0, %s106
    %s124 = sphi 0, %s124
    %s126 = sphi 0, %s124
    %s127 = sphi 0, %s126
    %s141 = sphi 0, %s127
    %s145 = sphi 0, %s145
    %s147 = sphi 0, %s145
    %s148 = sphi 0, %s147
    %s162 = sphi 0, %s148
    %s166 = sphi 0, %s166
    %s168 = sphi 0, %s166
    %s169 = sphi 0, %s168
    %s183 = sphi 0, %s169
    %s187 = sphi 0, %s187
    %s189 = sphi 0, %s187
    %s190 = sphi 0, %s189
    %s204 = sphi 0, %s190
    %s208 = sphi 0, %s208
    %s210 = sphi 0, %s208
    %s211 = sphi 0, %s210
    %s225 = sphi 0, %s211
    %s229 = sphi 0, %s229
    %s231 = sphi 0, %s229
    %s232 = sphi 0, %s231
    %s246 = sphi 0, %s232
    %s250 = sphi 0, %s250
    %s252 = sphi 0, %s250
    %s253 = sphi 0, %s252
    %s267 = sphi 0, %s253
    %s271 = sphi 0, %s271
    %s273 = sphi 0, %s271
    %s274 = sphi 0, %s273
    %s288 = sphi 0, %s274
    %s292 = sphi 0, %s292
    %s294 = sphi 0, %s292
    %s295 = sphi 0, %s294
    %s309 = sphi 0, %s295
    %s313 = sphi 0, %s313
    %s315 = sphi 0, %s313
    %s316 = sphi 0, %s315
    %s330 = sphi 0, %s316
    %s334 = sphi 0, %s334
    %s336 = sphi 0, %s334
    %s337 = sphi 0, %s336
    %s351 = sphi 0, %s337
    %s355 = sphi 0, %s355
    %s357 = sphi 0, %s355
    %s358 = sphi 0, %s357
    %s372 = sphi 0, %s358
    %s376 = sphi 0, %s376
    %s378 = sphi 0, %s376
    %s379 = sphi 0, %s378
    %s393 = sphi 0, %s379
    %s397 = sphi 0, %s397
    %s399 = sphi 0, %s397
    %s400 = sphi 0, %s399
    %s414 = sphi 0, %s400
    %s418 = sphi 0, %s418
    %s420 = sphi 0, %s418
    %s421 = sphi 0, %s420
    %s435 = sphi 0, %s421
    %s439 = sphi 0, %s439
    %s441 = sphi 0, %s439
    %s442 = sphi 0, %s441
    %s456 = sphi 0, %s442
    %s460 = sphi 0, %s460
    %s462 = sphi 0, %s460
    %s463 = sphi 0, %s462
    %s477 = sphi 0, %s463
    %s483 = sphi 0, %s485
    %s486 = sphi 0, %s483
    %s487 = sphi 0, %s486
    %s503 = sphi 0, %s487
  $region4: #{blip_forward.3} parent=0 // loop_header_branch
    %30 = sbr.rel (%p28) target = $region8
  $region5: #{blip_forward.3} parent=0 // loop_body
    %s32 = ssub.s32 %s27, 1
    %s33 = ssub.s32 %s27, 2
    %s34 = sadd.s32 %s27, 1
    %s35 = ssub.s32 %s27, %s34
    %p36 = scmp.eq.s32.totalorder %s35, 0
    %s38 = sadd.s32 %s37, 1
    %s39 = scalar_select %p36, %s37, %s38
    %p42 = pneg %p36
    %p43 = scmp.eq.s32.totalorder %s27, 1
    %p44 = por %p42, %p43
    %p45 = scmp.ne.s32.totalorder %s37, %s40
    %p46 = scmp.eq.s32.totalorder %s27, 0
    %p47 = por %p45, %p46
    %p48 = scmp.ne.s32.totalorder %s37, %s40
    %p49 = scmp.eq.s32.totalorder %s32, 1
    %p50 = por %p48, %p49
    %p51 = scmp.ne.s32.totalorder %s40, %s41
    %p52 = scmp.eq.s32.totalorder %s32, 0
    %p53 = por %p51, %p52
    %p54 = scmp.ne.s32.totalorder %s40, %s41
    %p55 = scmp.eq.s32.totalorder %s33, 1
    %p56 = por %p54, %p55
    %p58 = scmp.ne.s32.totalorder %s41, %s57
    %p59 = scmp.eq.s32.totalorder %s33, 0
    %p60 = por %p58, %p59
    %s62 = sadd.s32 %s61, 1
    %p65 = scmp.eq.s32.totalorder %s27, 1
    %p66 = scmp.ne.s32.totalorder %s61, %s63
    %p67 = scmp.eq.s32.totalorder %s27, 0
    %p68 = por %p66, %p67
    %p69 = scmp.ne.s32.totalorder %s61, %s63
    %p70 = scmp.eq.s32.totalorder %s32, 1
    %p71 = por %p69, %p70
    %p72 = scmp.ne.s32.totalorder %s63, %s64
    %p73 = scmp.eq.s32.totalorder %s32, 0
    %p74 = por %p72, %p73
    %p75 = scmp.ne.s32.totalorder %s63, %s64
    %p76 = scmp.eq.s32.totalorder %s33, 1
    %p77 = por %p75, %p76
    %p79 = scmp.ne.s32.totalorder %s64, %s78
    %p80 = scmp.eq.s32.totalorder %s33, 0
    %p81 = por %p79, %p80
    %s83 = sadd.s32 %s82, 1
    %p86 = scmp.eq.s32.totalorder %s27, 1
    %p87 = scmp.ne.s32.totalorder %s82, %s84
    %p88 = scmp.eq.s32.totalorder %s27, 0
    %p89 = por %p87, %p88
    %p90 = scmp.ne.s32.totalorder %s82, %s84
    %p91 = scmp.eq.s32.totalorder %s32, 1
    %p92 = por %p90, %p91
    %p93 = scmp.ne.s32.totalorder %s84, %s85
    %p94 = scmp.eq.s32.totalorder %s32, 0
    %p95 = por %p93, %p94
    %p96 = scmp.ne.s32.totalorder %s84, %s85
    %p97 = scmp.eq.s32.totalorder %s33, 1
    %p98 = por %p96, %p97
    %p100 = scmp.ne.s32.totalorder %s85, %s99
    %p101 = scmp.eq.s32.totalorder %s33, 0
    %p102 = por %p100, %p101
    %s104 = sadd.s32 %s103, 1
    %p107 = scmp.eq.s32.totalorder %s27, 1
    %p108 = scmp.ne.s32.totalorder %s103, %s105
    %p109 = scmp.eq.s32.totalorder %s27, 0
    %p110 = por %p108, %p109
    %p111 = scmp.ne.s32.totalorder %s103, %s105
    %p112 = scmp.eq.s32.totalorder %s32, 1
    %p113 = por %p111, %p112
    %p114 = scmp.ne.s32.totalorder %s105, %s106
    %p115 = scmp.eq.s32.totalorder %s32, 0
    %p116 = por %p114, %p115
    %p117 = scmp.ne.s32.totalorder %s105, %s106
    %p118 = scmp.eq.s32.totalorder %s33, 1
    %p119 = por %p117, %p118
    %p121 = scmp.ne.s32.totalorder %s106, %s120
    %p122 = scmp.eq.s32.totalorder %s33, 0
    %p123 = por %p121, %p122
    %s125 = sadd.s32 %s124, 1
    %p128 = scmp.eq.s32.totalorder %s27, 1
    %p129 = scmp.ne.s32.totalorder %s124, %s126
    %p130 = scmp.eq.s32.totalorder %s27, 0
    %p131 = por %p129, %p130
    %p132 = scmp.ne.s32.totalorder %s124, %s126
    %p133 = scmp.eq.s32.totalorder %s32, 1
    %p134 = por %p132, %p133
    %p135 = scmp.ne.s32.totalorder %s126, %s127
    %p136 = scmp.eq.s32.totalorder %s32, 0
    %p137 = por %p135, %p136
    %p138 = scmp.ne.s32.totalorder %s126, %s127
    %p139 = scmp.eq.s32.totalorder %s33, 1
    %p140 = por %p138, %p139
    %p142 = scmp.ne.s32.totalorder %s127, %s141
    %p143 = scmp.eq.s32.totalorder %s33, 0
    %p144 = por %p142, %p143
    %s146 = sadd.s32 %s145, 1
    %p149 = scmp.eq.s32.totalorder %s27, 1
    %p150 = scmp.ne.s32.totalorder %s145, %s147
    %p151 = scmp.eq.s32.totalorder %s27, 0
    %p152 = por %p150, %p151
    %p153 = scmp.ne.s32.totalorder %s145, %s147
    %p154 = scmp.eq.s32.totalorder %s32, 1
    %p155 = por %p153, %p154
    %p156 = scmp.ne.s32.totalorder %s147, %s148
    %p157 = scmp.eq.s32.totalorder %s32, 0
    %p158 = por %p156, %p157
    %p159 = scmp.ne.s32.totalorder %s147, %s148
    %p160 = scmp.eq.s32.totalorder %s33, 1
    %p161 = por %p159, %p160
    %p163 = scmp.ne.s32.totalorder %s148, %s162
    %p164 = scmp.eq.s32.totalorder %s33, 0
    %p165 = por %p163, %p164
    %s167 = sadd.s32 %s166, 1
    %p170 = scmp.eq.s32.totalorder %s27, 1
    %p171 = scmp.ne.s32.totalorder %s166, %s168
    %p172 = scmp.eq.s32.totalorder %s27, 0
    %p173 = por %p171, %p172
    %p174 = scmp.ne.s32.totalorder %s166, %s168
    %p175 = scmp.eq.s32.totalorder %s32, 1
    %p176 = por %p174, %p175
    %p177 = scmp.ne.s32.totalorder %s168, %s169
    %p178 = scmp.eq.s32.totalorder %s32, 0
    %p179 = por %p177, %p178
    %p180 = scmp.ne.s32.totalorder %s168, %s169
    %p181 = scmp.eq.s32.totalorder %s33, 1
    %p182 = por %p180, %p181
    %p184 = scmp.ne.s32.totalorder %s169, %s183
    %p185 = scmp.eq.s32.totalorder %s33, 0
    %p186 = por %p184, %p185
    %s188 = sadd.s32 %s187, 1
    %p191 = scmp.eq.s32.totalorder %s27, 1
    %p192 = scmp.ne.s32.totalorder %s187, %s189
    %p193 = scmp.eq.s32.totalorder %s27, 0
    %p194 = por %p192, %p193
    %p195 = scmp.ne.s32.totalorder %s187, %s189
    %p196 = scmp.eq.s32.totalorder %s32, 1
    %p197 = por %p195, %p196
    %p198 = scmp.ne.s32.totalorder %s189, %s190
    %p199 = scmp.eq.s32.totalorder %s32, 0
    %p200 = por %p198, %p199
    %p201 = scmp.ne.s32.totalorder %s189, %s190
    %p202 = scmp.eq.s32.totalorder %s33, 1
    %p203 = por %p201, %p202
    %p205 = scmp.ne.s32.totalorder %s190, %s204
    %p206 = scmp.eq.s32.totalorder %s33, 0
    %p207 = por %p205, %p206
    %s209 = sadd.s32 %s208, 1
    %p212 = scmp.eq.s32.totalorder %s27, 1
    %p213 = scmp.ne.s32.totalorder %s208, %s210
    %p214 = scmp.eq.s32.totalorder %s27, 0
    %p215 = por %p213, %p214
    %p216 = scmp.ne.s32.totalorder %s208, %s210
    %p217 = scmp.eq.s32.totalorder %s32, 1
    %p218 = por %p216, %p217
    %p219 = scmp.ne.s32.totalorder %s210, %s211
    %p220 = scmp.eq.s32.totalorder %s32, 0
    %p221 = por %p219, %p220
    %p222 = scmp.ne.s32.totalorder %s210, %s211
    %p223 = scmp.eq.s32.totalorder %s33, 1
    %p224 = por %p222, %p223
    %p226 = scmp.ne.s32.totalorder %s211, %s225
    %p227 = scmp.eq.s32.totalorder %s33, 0
    %p228 = por %p226, %p227
    %s230 = sadd.s32 %s229, 1
    %p233 = scmp.eq.s32.totalorder %s27, 1
    %p234 = scmp.ne.s32.totalorder %s229, %s231
    %p235 = scmp.eq.s32.totalorder %s27, 0
    %p236 = por %p234, %p235
    %p237 = scmp.ne.s32.totalorder %s229, %s231
    %p238 = scmp.eq.s32.totalorder %s32, 1
    %p239 = por %p237, %p238
    %p240 = scmp.ne.s32.totalorder %s231, %s232
    %p241 = scmp.eq.s32.totalorder %s32, 0
    %p242 = por %p240, %p241
    %p243 = scmp.ne.s32.totalorder %s231, %s232
    %p244 = scmp.eq.s32.totalorder %s33, 1
    %p245 = por %p243, %p244
    %p247 = scmp.ne.s32.totalorder %s232, %s246
    %p248 = scmp.eq.s32.totalorder %s33, 0
    %p249 = por %p247, %p248
    %s251 = sadd.s32 %s250, 1
    %p254 = scmp.eq.s32.totalorder %s27, 1
    %p255 = scmp.ne.s32.totalorder %s250, %s252
    %p256 = scmp.eq.s32.totalorder %s27, 0
    %p257 = por %p255, %p256
    %p258 = scmp.ne.s32.totalorder %s250, %s252
    %p259 = scmp.eq.s32.totalorder %s32, 1
    %p260 = por %p258, %p259
    %p261 = scmp.ne.s32.totalorder %s252, %s253
    %p262 = scmp.eq.s32.totalorder %s32, 0
    %p263 = por %p261, %p262
    %p264 = scmp.ne.s32.totalorder %s252, %s253
    %p265 = scmp.eq.s32.totalorder %s33, 1
    %p266 = por %p264, %p265
    %p268 = scmp.ne.s32.totalorder %s253, %s267
    %p269 = scmp.eq.s32.totalorder %s33, 0
    %p270 = por %p268, %p269
    %s272 = sadd.s32 %s271, 1
    %p275 = scmp.eq.s32.totalorder %s27, 1
    %p276 = scmp.ne.s32.totalorder %s271, %s273
    %p277 = scmp.eq.s32.totalorder %s27, 0
    %p278 = por %p276, %p277
    %p279 = scmp.ne.s32.totalorder %s271, %s273
    %p280 = scmp.eq.s32.totalorder %s32, 1
    %p281 = por %p279, %p280
    %p282 = scmp.ne.s32.totalorder %s273, %s274
    %p283 = scmp.eq.s32.totalorder %s32, 0
    %p284 = por %p282, %p283
    %p285 = scmp.ne.s32.totalorder %s273, %s274
    %p286 = scmp.eq.s32.totalorder %s33, 1
    %p287 = por %p285, %p286
    %p289 = scmp.ne.s32.totalorder %s274, %s288
    %p290 = scmp.eq.s32.totalorder %s33, 0
    %p291 = por %p289, %p290
    %s293 = sadd.s32 %s292, 1
    %p296 = scmp.eq.s32.totalorder %s27, 1
    %p297 = scmp.ne.s32.totalorder %s292, %s294
    %p298 = scmp.eq.s32.totalorder %s27, 0
    %p299 = por %p297, %p298
    %p300 = scmp.ne.s32.totalorder %s292, %s294
    %p301 = scmp.eq.s32.totalorder %s32, 1
    %p302 = por %p300, %p301
    %p303 = scmp.ne.s32.totalorder %s294, %s295
    %p304 = scmp.eq.s32.totalorder %s32, 0
    %p305 = por %p303, %p304
    %p306 = scmp.ne.s32.totalorder %s294, %s295
    %p307 = scmp.eq.s32.totalorder %s33, 1
    %p308 = por %p306, %p307
    %p310 = scmp.ne.s32.totalorder %s295, %s309
    %p311 = scmp.eq.s32.totalorder %s33, 0
    %p312 = por %p310, %p311
    %s314 = sadd.s32 %s313, 1
    %p317 = scmp.eq.s32.totalorder %s27, 1
    %p318 = scmp.ne.s32.totalorder %s313, %s315
    %p319 = scmp.eq.s32.totalorder %s27, 0
    %p320 = por %p318, %p319
    %p321 = scmp.ne.s32.totalorder %s313, %s315
    %p322 = scmp.eq.s32.totalorder %s32, 1
    %p323 = por %p321, %p322
    %p324 = scmp.ne.s32.totalorder %s315, %s316
    %p325 = scmp.eq.s32.totalorder %s32, 0
    %p326 = por %p324, %p325
    %p327 = scmp.ne.s32.totalorder %s315, %s316
    %p328 = scmp.eq.s32.totalorder %s33, 1
    %p329 = por %p327, %p328
    %p331 = scmp.ne.s32.totalorder %s316, %s330
    %p332 = scmp.eq.s32.totalorder %s33, 0
    %p333 = por %p331, %p332
    %s335 = sadd.s32 %s334, 1
    %p338 = scmp.eq.s32.totalorder %s27, 1
    %p339 = scmp.ne.s32.totalorder %s334, %s336
    %p340 = scmp.eq.s32.totalorder %s27, 0
    %p341 = por %p339, %p340
    %p342 = scmp.ne.s32.totalorder %s334, %s336
    %p343 = scmp.eq.s32.totalorder %s32, 1
    %p344 = por %p342, %p343
    %p345 = scmp.ne.s32.totalorder %s336, %s337
    %p346 = scmp.eq.s32.totalorder %s32, 0
    %p347 = por %p345, %p346
    %p348 = scmp.ne.s32.totalorder %s336, %s337
    %p349 = scmp.eq.s32.totalorder %s33, 1
    %p350 = por %p348, %p349
    %p352 = scmp.ne.s32.totalorder %s337, %s351
    %p353 = scmp.eq.s32.totalorder %s33, 0
    %p354 = por %p352, %p353
    %s356 = sadd.s32 %s355, 1
    %p359 = scmp.eq.s32.totalorder %s27, 1
    %p360 = scmp.ne.s32.totalorder %s355, %s357
    %p361 = scmp.eq.s32.totalorder %s27, 0
    %p362 = por %p360, %p361
    %p363 = scmp.ne.s32.totalorder %s355, %s357
    %p364 = scmp.eq.s32.totalorder %s32, 1
    %p365 = por %p363, %p364
    %p366 = scmp.ne.s32.totalorder %s357, %s358
    %p367 = scmp.eq.s32.totalorder %s32, 0
    %p368 = por %p366, %p367
    %p369 = scmp.ne.s32.totalorder %s357, %s358
    %p370 = scmp.eq.s32.totalorder %s33, 1
    %p371 = por %p369, %p370
    %p373 = scmp.ne.s32.totalorder %s358, %s372
    %p374 = scmp.eq.s32.totalorder %s33, 0
    %p375 = por %p373, %p374
    %s377 = sadd.s32 %s376, 1
    %p380 = scmp.eq.s32.totalorder %s27, 1
    %p381 = scmp.ne.s32.totalorder %s376, %s378
    %p382 = scmp.eq.s32.totalorder %s27, 0
    %p383 = por %p381, %p382
    %p384 = scmp.ne.s32.totalorder %s376, %s378
    %p385 = scmp.eq.s32.totalorder %s32, 1
    %p386 = por %p384, %p385
    %p387 = scmp.ne.s32.totalorder %s378, %s379
    %p388 = scmp.eq.s32.totalorder %s32, 0
    %p389 = por %p387, %p388
    %p390 = scmp.ne.s32.totalorder %s378, %s379
    %p391 = scmp.eq.s32.totalorder %s33, 1
    %p392 = por %p390, %p391
    %p394 = scmp.ne.s32.totalorder %s379, %s393
    %p395 = scmp.eq.s32.totalorder %s33, 0
    %p396 = por %p394, %p395
    %s398 = sadd.s32 %s397, 1
    %p401 = scmp.eq.s32.totalorder %s27, 1
    %p402 = scmp.ne.s32.totalorder %s397, %s399
    %p403 = scmp.eq.s32.totalorder %s27, 0
    %p404 = por %p402, %p403
    %p405 = scmp.ne.s32.totalorder %s397, %s399
    %p406 = scmp.eq.s32.totalorder %s32, 1
    %p407 = por %p405, %p406
    %p408 = scmp.ne.s32.totalorder %s399, %s400
    %p409 = scmp.eq.s32.totalorder %s32, 0
    %p410 = por %p408, %p409
    %p411 = scmp.ne.s32.totalorder %s399, %s400
    %p412 = scmp.eq.s32.totalorder %s33, 1
    %p413 = por %p411, %p412
    %p415 = scmp.ne.s32.totalorder %s400, %s414
    %p416 = scmp.eq.s32.totalorder %s33, 0
    %p417 = por %p415, %p416
    %s419 = sadd.s32 %s418, 1
    %p422 = scmp.eq.s32.totalorder %s27, 1
    %p423 = scmp.ne.s32.totalorder %s418, %s420
    %p424 = scmp.eq.s32.totalorder %s27, 0
    %p425 = por %p423, %p424
    %p426 = scmp.ne.s32.totalorder %s418, %s420
    %p427 = scmp.eq.s32.totalorder %s32, 1
    %p428 = por %p426, %p427
    %p429 = scmp.ne.s32.totalorder %s420, %s421
    %p430 = scmp.eq.s32.totalorder %s32, 0
    %p431 = por %p429, %p430
    %p432 = scmp.ne.s32.totalorder %s420, %s421
    %p433 = scmp.eq.s32.totalorder %s33, 1
    %p434 = por %p432, %p433
    %p436 = scmp.ne.s32.totalorder %s421, %s435
    %p437 = scmp.eq.s32.totalorder %s33, 0
    %p438 = por %p436, %p437
    %s440 = sadd.s32 %s439, 1
    %p443 = scmp.eq.s32.totalorder %s27, 1
    %p444 = scmp.ne.s32.totalorder %s439, %s441
    %p445 = scmp.eq.s32.totalorder %s27, 0
    %p446 = por %p444, %p445
    %p447 = scmp.ne.s32.totalorder %s439, %s441
    %p448 = scmp.eq.s32.totalorder %s32, 1
    %p449 = por %p447, %p448
    %p450 = scmp.ne.s32.totalorder %s441, %s442
    %p451 = scmp.eq.s32.totalorder %s32, 0
    %p452 = por %p450, %p451
    %p453 = scmp.ne.s32.totalorder %s441, %s442
    %p454 = scmp.eq.s32.totalorder %s33, 1
    %p455 = por %p453, %p454
    %p457 = scmp.ne.s32.totalorder %s442, %s456
    %p458 = scmp.eq.s32.totalorder %s33, 0
    %p459 = por %p457, %p458
    %s461 = sadd.s32 %s460, 1
    %p464 = scmp.eq.s32.totalorder %s27, 1
    %p465 = scmp.ne.s32.totalorder %s460, %s462
    %p466 = scmp.eq.s32.totalorder %s27, 0
    %p467 = por %p465, %p466
    %p468 = scmp.ne.s32.totalorder %s460, %s462
    %p469 = scmp.eq.s32.totalorder %s32, 1
    %p470 = por %p468, %p469
    %p471 = scmp.ne.s32.totalorder %s462, %s463
    %p472 = scmp.eq.s32.totalorder %s32, 0
    %p473 = por %p471, %p472
    %p474 = scmp.ne.s32.totalorder %s462, %s463
    %p475 = scmp.eq.s32.totalorder %s33, 1
    %p476 = por %p474, %p475
    %p478 = scmp.ne.s32.totalorder %s463, %s477
    %p479 = scmp.eq.s32.totalorder %s33, 0
    %p480 = por %p478, %p479
    %s481 = ssub.s32 %s27, %s34
    %p482 = scmp.eq.s32.totalorder %s481, 0
    %s484 = sadd.s32 %s483, 1
    %s485 = scalar_select %p482, %s483, %s484
    %p488 = pneg %p482
    %p489 = scmp.eq.s32.totalorder %s27, 1
    %p490 = por %p488, %p489
    %p491 = scmp.ne.s32.totalorder %s483, %s486
    %p492 = scmp.eq.s32.totalorder %s27, 0
    %p493 = por %p491, %p492
    %p494 = scmp.ne.s32.totalorder %s483, %s486
    %p495 = scmp.eq.s32.totalorder %s32, 1
    %p496 = por %p494, %p495
    %p497 = scmp.ne.s32.totalorder %s486, %s487
    %p498 = scmp.eq.s32.totalorder %s32, 0
    %p499 = por %p497, %p498
    %p500 = scmp.ne.s32.totalorder %s486, %s487
    %p501 = scmp.eq.s32.totalorder %s33, 1
    %p502 = por %p500, %p501
    %p504 = scmp.ne.s32.totalorder %s487, %s503
    %p505 = scmp.eq.s32.totalorder %s33, 0
    %p506 = por %p504, %p505
    %p507 = scmp.le.s32.totalorder 1, %s27
    %p508 = scmp.lt.s32.totalorder %s27, 3
    %p509 = pnand %p507, %p508
    %p510 = pneg %p509
    // Predicated region
    $region9: #{blip_forward.3} parent=5 // pred_check
      _
    $region10: #{blip_forward.3} parent=5 // pred_check_branch
      %512 = sbr.rel (%p509) target = $region12
    $region11: #{blip_forward.3} parent=5 // pred_region
      %s513 = ssub.s32 %s27, 1
      // Predicated region
      $region13: #{blip_forward.3} parent=11 // pred_check
        %p514 = pneg %p74
      $region14: #{blip_forward.3} parent=11 // pred_check_branch
        %516 = sbr.rel (%p514) target = $region16
      $region15: #{blip_forward.3} parent=11 // pred_region
        _
      $region16: #{blip_forward.3} parent=11 // pred_fallthru
        _
      // Predicated region
      $region17: #{blip_forward.3} parent=11 // pred_check
        %p517 = pneg %p95
      $region18: #{blip_forward.3} parent=11 // pred_check_branch
        %519 = sbr.rel (%p517) target = $region20
      $region19: #{blip_forward.3} parent=11 // pred_region
        _
      $region20: #{blip_forward.3} parent=11 // pred_fallthru
        _
      // Predicated region
      $region21: #{blip_forward.3} parent=11 // pred_check
        %p520 = pneg %p116
      $region22: #{blip_forward.3} parent=11 // pred_check_branch
        %522 = sbr.rel (%p520) target = $region24
      $region23: #{blip_forward.3} parent=11 // pred_region
        _
      $region24: #{blip_forward.3} parent=11 // pred_fallthru
        _
      // Predicated region
      $region25: #{blip_forward.3} parent=11 // pred_check
        %p523 = pneg %p137
      $region26: #{blip_forward.3} parent=11 // pred_check_branch
        %525 = sbr.rel (%p523) target = $region28
      $region27: #{blip_forward.3} parent=11 // pred_region
        _
      $region28: #{blip_forward.3} parent=11 // pred_fallthru
        _
      // Predicated region
      $region29: #{blip_forward.3} parent=11 // pred_check
        %p526 = pneg %p158
      $region30: #{blip_forward.3} parent=11 // pred_check_branch
        %528 = sbr.rel (%p526) target = $region32
      $region31: #{blip_forward.3} parent=11 // pred_region
        _
      $region32: #{blip_forward.3} parent=11 // pred_fallthru
        _
      // Predicated region
      $region33: #{blip_forward.3} parent=11 // pred_check
        %p529 = pneg %p179
      $region34: #{blip_forward.3} parent=11 // pred_check_branch
        %531 = sbr.rel (%p529) target = $region36
      $region35: #{blip_forward.3} parent=11 // pred_region
        _
      $region36: #{blip_forward.3} parent=11 // pred_fallthru
        _
      // Predicated region
      $region37: #{blip_forward.3} parent=11 // pred_check
        %p532 = pneg %p200
      $region38: #{blip_forward.3} parent=11 // pred_check_branch
        %534 = sbr.rel (%p532) target = $region40
      $region39: #{blip_forward.3} parent=11 // pred_region
        _
      $region40: #{blip_forward.3} parent=11 // pred_fallthru
        _
      // Predicated region
      $region41: #{blip_forward.3} parent=11 // pred_check
        %p535 = pneg %p221
      $region42: #{blip_forward.3} parent=11 // pred_check_branch
        %537 = sbr.rel (%p535) target = $region44
      $region43: #{blip_forward.3} parent=11 // pred_region
        _
      $region44: #{blip_forward.3} parent=11 // pred_fallthru
        _
      // Predicated region
      $region45: #{blip_forward.3} parent=11 // pred_check
        %p538 = pneg %p242
      $region46: #{blip_forward.3} parent=11 // pred_check_branch
        %540 = sbr.rel (%p538) target = $region48
      $region47: #{blip_forward.3} parent=11 // pred_region
        _
      $region48: #{blip_forward.3} parent=11 // pred_fallthru
        _
      // Predicated region
      $region49: #{blip_forward.3} parent=11 // pred_check
        %p541 = pneg %p263
      $region50: #{blip_forward.3} parent=11 // pred_check_branch
        %543 = sbr.rel (%p541) target = $region52
      $region51: #{blip_forward.3} parent=11 // pred_region
        _
      $region52: #{blip_forward.3} parent=11 // pred_fallthru
        _
      // Predicated region
      $region53: #{blip_forward.3} parent=11 // pred_check
        %p544 = pneg %p284
      $region54: #{blip_forward.3} parent=11 // pred_check_branch
        %546 = sbr.rel (%p544) target = $region56
      $region55: #{blip_forward.3} parent=11 // pred_region
        _
      $region56: #{blip_forward.3} parent=11 // pred_fallthru
        _
      // Predicated region
      $region57: #{blip_forward.3} parent=11 // pred_check
        %p547 = pneg %p305
      $region58: #{blip_forward.3} parent=11 // pred_check_branch
        %549 = sbr.rel (%p547) target = $region60
      $region59: #{blip_forward.3} parent=11 // pred_region
        _
      $region60: #{blip_forward.3} parent=11 // pred_fallthru
        _
      // Predicated region
      $region61: #{blip_forward.3} parent=11 // pred_check
        %p550 = pneg %p326
      $region62: #{blip_forward.3} parent=11 // pred_check_branch
        %552 = sbr.rel (%p550) target = $region64
      $region63: #{blip_forward.3} parent=11 // pred_region
        _
      $region64: #{blip_forward.3} parent=11 // pred_fallthru
        _
      // Predicated region
      $region65: #{blip_forward.3} parent=11 // pred_check
        %p553 = pneg %p347
      $region66: #{blip_forward.3} parent=11 // pred_check_branch
        %555 = sbr.rel (%p553) target = $region68
      $region67: #{blip_forward.3} parent=11 // pred_region
        _
      $region68: #{blip_forward.3} parent=11 // pred_fallthru
        _
      // Predicated region
      $region69: #{blip_forward.3} parent=11 // pred_check
        %p556 = pneg %p368
      $region70: #{blip_forward.3} parent=11 // pred_check_branch
        %558 = sbr.rel (%p556) target = $region72
      $region71: #{blip_forward.3} parent=11 // pred_region
        _
      $region72: #{blip_forward.3} parent=11 // pred_fallthru
        _
      // Predicated region
      $region73: #{blip_forward.3} parent=11 // pred_check
        %p559 = pneg %p389
      $region74: #{blip_forward.3} parent=11 // pred_check_branch
        %561 = sbr.rel (%p559) target = $region76
      $region75: #{blip_forward.3} parent=11 // pred_region
        _
      $region76: #{blip_forward.3} parent=11 // pred_fallthru
        _
      // Predicated region
      $region77: #{blip_forward.3} parent=11 // pred_check
        %p562 = pneg %p410
      $region78: #{blip_forward.3} parent=11 // pred_check_branch
        %564 = sbr.rel (%p562) target = $region80
      $region79: #{blip_forward.3} parent=11 // pred_region
        _
      $region80: #{blip_forward.3} parent=11 // pred_fallthru
        _
      // Predicated region
      $region81: #{blip_forward.3} parent=11 // pred_check
        %p565 = pneg %p431
      $region82: #{blip_forward.3} parent=11 // pred_check_branch
        %567 = sbr.rel (%p565) target = $region84
      $region83: #{blip_forward.3} parent=11 // pred_region
        _
      $region84: #{blip_forward.3} parent=11 // pred_fallthru
        _
      // Predicated region
      $region85: #{blip_forward.3} parent=11 // pred_check
        %p568 = pneg %p452
      $region86: #{blip_forward.3} parent=11 // pred_check_branch
        %570 = sbr.rel (%p568) target = $region88
      $region87: #{blip_forward.3} parent=11 // pred_region
        _
      $region88: #{blip_forward.3} parent=11 // pred_fallthru
        _
      // Predicated region
      $region89: #{blip_forward.3} parent=11 // pred_check
        %p571 = pneg %p473
      $region90: #{blip_forward.3} parent=11 // pred_check_branch
        %573 = sbr.rel (%p571) target = $region92
      $region91: #{blip_forward.3} parent=11 // pred_region
        _
      $region92: #{blip_forward.3} parent=11 // pred_fallthru
        _
    $region12: #{blip_forward.3} parent=5 // pred_fallthru
      _
    %p574 = scmp.lt.s32.totalorder %s27, 2
    // Predicated region
    $region93: #{blip_forward.3} parent=5 // pred_check
      %p575 = pneg %p574
    $region94: #{blip_forward.3} parent=5 // pred_check_branch
      %577 = sbr.rel (%p575) target = $region96
    $region95: #{blip_forward.3} parent=5 // pred_region
      // Predicated region
      $region97: #{blip_forward.3} parent=95 // pred_check
        %p578 = pneg %p47
      $region98: #{blip_forward.3} parent=95 // pred_check_branch
        %580 = sbr.rel (%p578) target = $region100
      $region99: #{blip_forward.3} parent=95 // pred_region
        %p581 = scmp.lt.s32.totalorder %s27, 1
        %s582 = scalar_select %p581, %s27, 1
        %s583 = smul.addr %s582, 4
        %s584 = smul.addr %s583, 8
        %s585 = scalar_lea.vmem %s0, %s584
      $region100: #{blip_forward.3} parent=95 // pred_fallthru
        _
    $region96: #{blip_forward.3} parent=5 // pred_fallthru
      _
    %p586 = scmp.le.s32.totalorder 1, %s27
    %p587 = scmp.lt.s32.totalorder %s27, 3
    %p588 = pnand %p586, %p587
    %p589 = pneg %p588
    // Predicated region
    $region101: #{blip_forward.3} parent=5 // pred_check
      _
    $region102: #{blip_forward.3} parent=5 // pred_check_branch
      %591 = sbr.rel (%p588) target = $region104
    $region103: #{blip_forward.3} parent=5 // pred_region
      %s592 = ssub.s32 %s27, 1
      %p593 = scmp.lt.s32.totalorder %s32, 1
      %s594 = scalar_select %p593, %s32, 1
      %s595 = smul.addr %s594, 4
      %s596 = smul.addr %s595, 8
      %s597 = scalar_lea.vmem %s0, %s596
      %p598 = pneg %p53
      %p599 = pneg %p50
      %p600 = pneg %p74
      %p601 = pneg %p71
      %p602 = pneg %p95
      %p603 = pneg %p92
      %p604 = pneg %p116
      %p605 = pneg %p113
      %p606 = pneg %p137
      %p607 = pneg %p134
      %p608 = pneg %p158
      %p609 = pneg %p155
      %p610 = pneg %p179
      %p611 = pneg %p176
      %p612 = pneg %p200
      %p613 = pneg %p197
      %p614 = pneg %p221
      %p615 = pneg %p218
      %p616 = pneg %p242
      %p617 = pneg %p239
      %p618 = pneg %p263
      %p619 = pneg %p260
      %p620 = pneg %p284
      %p621 = pneg %p281
      %p622 = pneg %p305
      %p623 = pneg %p302
      %p624 = pneg %p326
      %p625 = pneg %p323
      %p626 = pneg %p347
      %p627 = pneg %p344
      %p628 = pneg %p368
      %p629 = pneg %p365
      %p630 = pneg %p389
      %p631 = pneg %p386
      %p632 = pneg %p410
      %p633 = pneg %p407
      %p634 = pneg %p431
      %p635 = pneg %p428
      %p636 = pneg %p452
      %p637 = pneg %p449
      %p638 = pneg %p473
      %p639 = pneg %p470
      %p640 = pneg %p499
      %p641 = pneg %p496
      %p642 = scmp.lt.s32.totalorder %s32, 1
      %s643 = scalar_select %p642, %s32, 1
      %s644 = smul.addr %s643, 4
      %s645 = scalar_lea.vmem %s21, %s644
      %p646 = scmp.lt.s32.totalorder %s32, 1
      %s647 = scalar_select %p646, %s32, 1
      %s648 = smul.addr %s647, 4
      %s649 = smul.addr %s648, 8
      %s650 = scalar_lea.vmem %s0, %s649
      %p651 = scmp.lt.s32.totalorder %s32, 1
      %s652 = scalar_select %p651, %s32, 1
      %s653 = smul.addr %s652, 4
      %s654 = scalar_lea.vmem %s21, %s653
      %v656 = vld [vmem:[%s650] sm:$0xff]
      %v657 = vld [vmem:[%s650 + $0x8] sm:$0xff]
      %v658 = vld [vmem:[%s650 + $0x10] sm:$0xff]
      %v659 = vld [vmem:[%s650 + $0x18] sm:$0xff]
      %v660 = vpack.c.bf16 %v658, %v656
      %v661 = vpack.c.bf16 %v659, %v657
      %v662 = vld [vmem:[%s1] sm:$0xf]
      %v663 = vld [vmem:[%s1 + $0x4] sm:$0xf]
      %v664 = vld [vmem:[%s1 + $0x8] sm:$0xf]
      %v665 = vld [vmem:[%s1 + $0xc] sm:$0xf]
      %v666 = vld [vmem:[%s1 + $0x10] sm:$0xf]
      %v667 = vld [vmem:[%s1 + $0x14] sm:$0xf]
      %v668 = vld [vmem:[%s1 + $0x18] sm:$0xf]
      %v669 = vld [vmem:[%s1 + $0x1c] sm:$0xf]
      %v670 = vld [vmem:[%s1 + $0x20] sm:$0xf]
      %v671 = vld [vmem:[%s1 + $0x24] sm:$0xf]
      %v672 = vld [vmem:[%s1 + $0x28] sm:$0xf]
      %v673 = vld [vmem:[%s1 + $0x2c] sm:$0xf]
      %v674 = vld [vmem:[%s1 + $0x30] sm:$0xf]
      %v675 = vld [vmem:[%s1 + $0x34] sm:$0xf]
      %v676 = vld [vmem:[%s1 + $0x38] sm:$0xf]
      %v677 = vld [vmem:[%s1 + $0x3c] sm:$0xf]
      %v678 = vld [vmem:[%s1 + $0x40] sm:$0xf]
      %v679 = vld [vmem:[%s1 + $0x44] sm:$0xf]
      %v680 = vld [vmem:[%s1 + $0x48] sm:$0xf]
      %v681 = vld [vmem:[%s1 + $0x4c] sm:$0xf]
      %v682 = vld [vmem:[%s1 + $0x50] sm:$0xf]
      %v683 = vld [vmem:[%s1 + $0x54] sm:$0xf]
      %v684 = vld [vmem:[%s1 + $0x58] sm:$0xf]
      %v685 = vld [vmem:[%s1 + $0x5c] sm:$0xf]
      %v686 = vld [vmem:[%s2] sm:$0x1]
      %v688 = vperm.slane %v686, 0
      %v714 = vunpack.c.l.b16 %v662
      %v715 = vunpack.c.l.b16 %v663
      %v716 = vunpack.c.l.b16 %v664
      %v717 = vunpack.c.l.b16 %v665
      %v718 = vunpack.c.l.b16 %v666
      %v719 = vunpack.c.l.b16 %v667
      %v720 = vunpack.c.l.b16 %v668
      %v721 = vunpack.c.l.b16 %v669
      %v722 = vunpack.c.l.b16 %v670
      %v723 = vunpack.c.l.b16 %v671
      %v724 = vunpack.c.l.b16 %v672
      %v725 = vunpack.c.l.b16 %v673
      %v726 = vunpack.c.l.b16 %v674
      %v727 = vunpack.c.l.b16 %v675
      %v728 = vunpack.c.l.b16 %v676
      %v729 = vunpack.c.l.b16 %v677
      %v730 = vunpack.c.l.b16 %v678
      %v731 = vunpack.c.l.b16 %v679
      %v732 = vunpack.c.l.b16 %v680
      %v733 = vunpack.c.l.b16 %v681
      %v734 = vunpack.c.l.b16 %v682
      %v735 = vunpack.c.l.b16 %v683
      %v736 = vunpack.c.l.b16 %v684
      %v737 = vunpack.c.l.b16 %v685
      %v738 = vpack.c.b16 %v715, %v714
      %v739 = vpack.c.b16 %v717, %v716
      %v740 = vpack.c.b16 %v719, %v718
      %v741 = vpack.c.b16 %v721, %v720
      %v742 = vpack.c.b16 %v723, %v722
      %v743 = vpack.c.b16 %v725, %v724
      %v744 = vpack.c.b16 %v727, %v726
      %v745 = vpack.c.b16 %v729, %v728
      %v746 = vpack.c.b16 %v731, %v730
      %v747 = vpack.c.b16 %v733, %v732
      %v748 = vpack.c.b16 %v735, %v734
      %v749 = vpack.c.b16 %v737, %v736
      %vm762 = vcmask 523264
      %v764 = vsel %vm762, %v661, 0
      %766 = vmatpush.bf16.msra.mxu0 %v745
      %767 = vmatpush.bf16.msra.mxu0 %v744
      %768 = vmatpush.bf16.msra.mxu0 %v743
      %769 = vmatpush.bf16.msra.mxu0 %v742
      %770 = vmatpush.bf16.msra.mxu0 %v741
      %771 = vmatpush.bf16.msra.mxu0 %v740
      %772 = vmatpush.bf16.msra.mxu0 %v739
      %773 = vmatpush.bf16.msra.mxu0 %v738
      %774 = vmatmul.bf16.gmra.mxu0 %v660
      %v775 = vpop.f32.mrf.mxu0
      %v776 = vadd.f32 %v688, %v775
      %v777 = vpop.f32.mrf.mxu0
      %v778 = vadd.f32 %v688, %v777
      %779 = vdwg.mxu0
      %780 = vmatpush.bf16.msra.mxu0 0
      %781 = vmatpush.bf16.msra.mxu0 0
      %782 = vmatpush.bf16.msra.mxu0 0
      %783 = vmatpush.bf16.msra.mxu0 0
      %784 = vmatpush.bf16.msra.mxu0 %v749
      %785 = vmatpush.bf16.msra.mxu0 %v748
      %786 = vmatpush.bf16.msra.mxu0 %v747
      %787 = vmatpush.bf16.msra.mxu0 %v746
      %788 = vmatmul.bf16.gmra.mxu0 %v764
      %v789 = vpop.f32.mrf.mxu0
      %v790 = vadd.f32 %v776, %v789
      %v791 = vpop.f32.mrf.mxu0
      %v792 = vadd.f32 %v778, %v791
      %793 = vdwg.mxu0
      %v794 = vld [vmem:[%s3] sm:$0xff]
      %v795 = vld [vmem:[%s3 + $0x8] sm:$0xff]
      %v796 = vadd.f32 %v790, %v794
      %v797 = vadd.f32 %v792, %v795
      %v798 = vld [vmem:[%s4] sm:$0x1]
      %v799 = vld [vmem:[%s5] sm:$0x1]
      %800 = vadd.xlane.f32.xlu0 %v796
      %v801 = vpop.xlane.xlu0 %800
      %802 = vadd.xlane.f32.xlu0 %v797
      %v803 = vpop.xlane.xlu0 %802
      %v804 = vrcp.pop 128.0
      %v805 = vmul.f32 128.0, %v804
      %v806 = vsub.f32 1.0, %v805
      %v807 = vmul.f32 %v804, %v806
      %v808 = vadd.f32 %v804, %v807
      %vm809 = vweird.f32 %v804
      %v810 = vsel %vm809, %v804, %v808
      %v811 = vmul.f32 %v801, %v810
      %v812 = vmul.f32 %v803, %v810
      %v813 = vsub.f32 %v796, %v811
      %v814 = vsub.f32 %v797, %v812
      %v815 = vmul.f32 %v813, %v813
      %v816 = vmul.f32 %v814, %v814
      %817 = vadd.xlane.f32.xlu0 %v815
      %v818 = vpop.xlane.xlu0 %817
      %819 = vadd.xlane.f32.xlu0 %v816
      %v820 = vpop.xlane.xlu0 %819
      %v821 = vmul.f32 %v818, %v810
      %v822 = vmul.f32 %v820, %v810
      %v823 = vadd.f32 %v821, 1e-05
      %v824 = vadd.f32 %v822, 1e-05
      %v825 = vrsqrt.pop %v823
      %v826 = vmul.f32 %v825, %v823
      %v827 = vmul.f32 %v826, %v825
      %v828 = vmul.f32 0.5, %v827
      %v829 = vsub.f32 1.5, %v828
      %v830 = vmul.f32 %v825, %v829
      %vm831 = vweird.f32 %v823
      %vm832 = vweird.f32 %v825
      %vm833 = vmor %vm831, %vm832
      %v834 = vsel %vm833, %v825, %v830
      %v835 = vrsqrt.pop %v824
      %v836 = vmul.f32 %v835, %v824
      %v837 = vmul.f32 %v836, %v835
      %v838 = vmul.f32 0.5, %v837
      %v839 = vsub.f32 1.5, %v838
      %v840 = vmul.f32 %v835, %v839
      %vm841 = vweird.f32 %v824
      %vm842 = vweird.f32 %v835
      %vm843 = vmor %vm841, %vm842
      %v844 = vsel %vm843, %v835, %v840
      %v845 = vmul.f32 %v813, %v834
      %v846 = vmul.f32 %v814, %v844
      %v848 = vperm.slane %v798, 0
      %v850 = vmul.f32 %v845, %v848
      %v851 = vmul.f32 %v846, %v848
      %v853 = vperm.slane %v799, 0
      %v855 = vadd.f32 %v850, %v853
      %v856 = vadd.f32 %v851, %v853
      %v857 = vld [vmem:[%s6] sm:$0xff]
      %v858 = vpack.c.bf16 %v857, %v857
      %v859 = vld [vmem:[%s7] sm:$0xf]
      %v860 = vld [vmem:[%s7 + $0x4] sm:$0xf]
      %v861 = vld [vmem:[%s7 + $0x8] sm:$0xf]
      %v862 = vld [vmem:[%s7 + $0xc] sm:$0xf]
      %v863 = vld [vmem:[%s7 + $0x10] sm:$0xf]
      %v864 = vld [vmem:[%s7 + $0x14] sm:$0xf]
      %v865 = vld [vmem:[%s7 + $0x18] sm:$0xf]
      %v866 = vld [vmem:[%s7 + $0x1c] sm:$0xf]
      %v867 = vld [vmem:[%s7 + $0x20] sm:$0xf]
      %v868 = vld [vmem:[%s7 + $0x24] sm:$0xf]
      %v869 = vld [vmem:[%s7 + $0x28] sm:$0xf]
      %v870 = vld [vmem:[%s7 + $0x2c] sm:$0xf]
      %v871 = vld [vmem:[%s7 + $0x30] sm:$0xf]
      %v872 = vld [vmem:[%s7 + $0x34] sm:$0xf]
      %v873 = vld [vmem:[%s7 + $0x38] sm:$0xf]
      %v874 = vld [vmem:[%s7 + $0x3c] sm:$0xf]
      %v875 = vld [vmem:[%s8] sm:$0x1]
      %v877 = vperm.slane %v875, 0
      %v895 = vunpack.c.l.b16 %v859
      %v896 = vunpack.c.l.b16 %v860
      %v897 = vunpack.c.l.b16 %v861
      %v898 = vunpack.c.l.b16 %v862
      %v899 = vunpack.c.l.b16 %v863
      %v900 = vunpack.c.l.b16 %v864
      %v901 = vunpack.c.l.b16 %v865
      %v902 = vunpack.c.l.b16 %v866
      %v903 = vunpack.c.l.b16 %v867
      %v904 = vunpack.c.l.b16 %v868
      %v905 = vunpack.c.l.b16 %v869
      %v906 = vunpack.c.l.b16 %v870
      %v907 = vunpack.c.l.b16 %v871
      %v908 = vunpack.c.l.b16 %v872
      %v909 = vunpack.c.l.b16 %v873
      %v910 = vunpack.c.l.b16 %v874
      %v911 = vpack.c.b16 %v896, %v895
      %v912 = vpack.c.b16 %v898, %v897
      %v913 = vpack.c.b16 %v900, %v899
      %v914 = vpack.c.b16 %v902, %v901
      %v915 = vpack.c.b16 %v904, %v903
      %v916 = vpack.c.b16 %v906, %v905
      %v917 = vpack.c.b16 %v908, %v907
      %v918 = vpack.c.b16 %v910, %v909
      %927 = vmatpush.bf16.msra.mxu0 %v918
      %928 = vmatpush.bf16.msra.mxu0 %v917
      %929 = vmatpush.bf16.msra.mxu0 %v916
      %930 = vmatpush.bf16.msra.mxu0 %v915
      %931 = vmatpush.bf16.msra.mxu0 %v914
      %932 = vmatpush.bf16.msra.mxu0 %v913
      %933 = vmatpush.bf16.msra.mxu0 %v912
      %934 = vmatpush.bf16.msra.mxu0 %v911
      %935 = vmatmul.bf16.gmra.mxu0 %v858
      %v936 = vpop.f32.mrf.mxu0
      %v937 = vadd.f32 %v877, %v936
      %v938 = vpop.f32.mrf.mxu0
      %939 = vdwg.mxu0
      %v940 = vpack.c.bf16 %v856, %v855
      %v941 = vld [vmem:[%s9] sm:$0xff]
      %v942 = vld [vmem:[%s9 + $0x8] sm:$0xff]
      %v943 = vld [vmem:[%s9 + $0x10] sm:$0xff]
      %v944 = vld [vmem:[%s9 + $0x18] sm:$0xff]
      %v945 = vld [vmem:[%s9 + $0x20] sm:$0xff]
      %v946 = vld [vmem:[%s9 + $0x28] sm:$0xff]
      %v947 = vld [vmem:[%s9 + $0x30] sm:$0xff]
      %v948 = vld [vmem:[%s9 + $0x38] sm:$0xff]
      %v949 = vld [vmem:[%s9 + $0x40] sm:$0xff]
      %v950 = vld [vmem:[%s9 + $0x48] sm:$0xff]
      %v951 = vld [vmem:[%s9 + $0x50] sm:$0xff]
      %v952 = vld [vmem:[%s9 + $0x58] sm:$0xff]
      %v953 = vld [vmem:[%s9 + $0x60] sm:$0xff]
      %v954 = vld [vmem:[%s9 + $0x68] sm:$0xff]
      %v955 = vld [vmem:[%s9 + $0x70] sm:$0xff]
      %v956 = vld [vmem:[%s9 + $0x78] sm:$0xff]
      %v957 = vld [vmem:[%s10] sm:$0x3]
      %v959 = vperm.slane %v957, 0
      %v960 = vperm.slane %v957, 1
      %v979 = vunpack.c.l.b16 %v941
      %v980 = vunpack.c.h.b16 %v941
      %v981 = vunpack.c.l.b16 %v942
      %v982 = vunpack.c.h.b16 %v942
      %v983 = vunpack.c.l.b16 %v943
      %v984 = vunpack.c.h.b16 %v943
      %v985 = vunpack.c.l.b16 %v944
      %v986 = vunpack.c.h.b16 %v944
      %v987 = vunpack.c.l.b16 %v945
      %v988 = vunpack.c.h.b16 %v945
      %v989 = vunpack.c.l.b16 %v946
      %v990 = vunpack.c.h.b16 %v946
      %v991 = vunpack.c.l.b16 %v947
      %v992 = vunpack.c.h.b16 %v947
      %v993 = vunpack.c.l.b16 %v948
      %v994 = vunpack.c.h.b16 %v948
      %v995 = vunpack.c.l.b16 %v949
      %v996 = vunpack.c.h.b16 %v949
      %v997 = vunpack.c.l.b16 %v950
      %v998 = vunpack.c.h.b16 %v950
      %v999 = vunpack.c.l.b16 %v951
      %v1000 = vunpack.c.h.b16 %v951
      %v1001 = vunpack.c.l.b16 %v952
      %v1002 = vunpack.c.h.b16 %v952
      %v1003 = vunpack.c.l.b16 %v953
      %v1004 = vunpack.c.h.b16 %v953
      %v1005 = vunpack.c.l.b16 %v954
      %v1006 = vunpack.c.h.b16 %v954
      %v1007 = vunpack.c.l.b16 %v955
      %v1008 = vunpack.c.h.b16 %v955
      %v1009 = vunpack.c.l.b16 %v956
      %v1010 = vunpack.c.h.b16 %v956
      %v1011 = vpack.c.b16 %v981, %v979
      %v1012 = vpack.c.b16 %v982, %v980
      %v1013 = vpack.c.b16 %v985, %v983
      %v1014 = vpack.c.b16 %v986, %v984
      %v1015 = vpack.c.b16 %v989, %v987
      %v1016 = vpack.c.b16 %v990, %v988
      %v1017 = vpack.c.b16 %v993, %v991
      %v1018 = vpack.c.b16 %v994, %v992
      %v1019 = vpack.c.b16 %v997, %v995
      %v1020 = vpack.c.b16 %v998, %v996
      %v1021 = vpack.c.b16 %v1001, %v999
      %v1022 = vpack.c.b16 %v1002, %v1000
      %v1023 = vpack.c.b16 %v1005, %v1003
      %v1024 = vpack.c.b16 %v1006, %v1004
      %v1025 = vpack.c.b16 %v1009, %v1007
      %v1026 = vpack.c.b16 %v1010, %v1008
      %1043 = vmatpush.bf16.msra.mxu0 %v1025
      %1044 = vmatpush.bf16.msra.mxu0 %v1023
      %1045 = vmatpush.bf16.msra.mxu0 %v1021
      %1046 = vmatpush.bf16.msra.mxu0 %v1019
      %1047 = vmatpush.bf16.msra.mxu0 %v1017
      %1048 = vmatpush.bf16.msra.mxu0 %v1015
      %1049 = vmatpush.bf16.msra.mxu0 %v1013
      %1050 = vmatpush.bf16.msra.mxu0 %v1011
      %1051 = vmatmul.bf16.gmra.mxu0 %v940
      %v1052 = vpop.f32.mrf.mxu0
      %v1053 = vadd.f32 %v959, %v1052
      %v1054 = vpop.f32.mrf.mxu0
      %v1055 = vadd.f32 %v959, %v1054
      %1056 = vdwg.mxu0
      %1057 = vmatpush.bf16.msra.mxu0 %v1026
      %1058 = vmatpush.bf16.msra.mxu0 %v1024
      %1059 = vmatpush.bf16.msra.mxu0 %v1022
      %1060 = vmatpush.bf16.msra.mxu0 %v1020
      %1061 = vmatpush.bf16.msra.mxu0 %v1018
      %1062 = vmatpush.bf16.msra.mxu0 %v1016
      %1063 = vmatpush.bf16.msra.mxu0 %v1014
      %1064 = vmatpush.bf16.msra.mxu0 %v1012
      %1065 = vmatmul.bf16.gmra.mxu0 %v940
      %v1066 = vpop.f32.mrf.mxu0
      %v1067 = vadd.f32 %v960, %v1066
      %v1068 = vpop.f32.mrf.mxu0
      %v1069 = vadd.f32 %v960, %v1068
      %1070 = vdwg.mxu0
      %v1071 = vpack.c.bf16 %v937, %v937
      %v1072 = vpack.c.bf16 %v1053, %v1053
      %v1073 = vpack.c.bf16 %v1055, %v1055
      %v1074 = vpack.c.bf16 %v1067, %v1067
      %v1075 = vpack.c.bf16 %v1069, %v1069
      %v1078 = vunpack.c.l.b16 %v1072
      %v1079 = vunpack.c.l.b16 %v1073
      %v1080 = vpack.c.b16 %v1079, %v1078
      %vm1081 = vcmask 261120
      %v1083 = vsel %vm1081, %v1071, 0
      %v1086 = vsel %vm1081, %v1080, 0
      %1088 = vmatpush.bf16.xpose.msra.mxu0 0
      %1089 = vmatpush.bf16.xpose.msra.mxu0 0
      %1090 = vmatpush.bf16.xpose.msra.mxu0 0
      %1091 = vmatpush.bf16.xpose.msra.mxu0 0
      %1092 = vmatpush.bf16.xpose.msra.mxu0 0
      %1093 = vmatpush.bf16.xpose.msra.mxu0 0
      %1094 = vmatpush.bf16.xpose.msra.mxu0 0
      %1095 = vmatpush.bf16.xpose.msra.mxu0 %v1086
      %1096 = vmatmul.bf16.gmra.mxu0 %v1083
      %v1097 = vpop.f32.mrf.mxu0
      %v1098 = vadd.f32 0.0, %v1097
      %v1099 = vpop.f32.mrf.mxu0
      %1100 = vdwg.mxu0
      %v1102 = vunpack.c.l.b16 %v1071
      %v1103 = vpack.c.b16 %v1102, %v1102
      %1104 = vrot.lane.b32.xlu0 %v1103, 96
      %v1105 = vpop.permute.xlu0 %1104
      %1106 = vrot.lane.b32.xlu0 %v1080, 96
      %v1107 = vpop.permute.xlu0 %1106
      %v1109 = vsel %vm1081, %v1105, 0
      %v1112 = vsel %vm1081, %v1107, 0
      %1114 = vmatpush.bf16.xpose.msra.mxu0 0
      %1115 = vmatpush.bf16.xpose.msra.mxu0 0
      %1116 = vmatpush.bf16.xpose.msra.mxu0 0
      %1117 = vmatpush.bf16.xpose.msra.mxu0 0
      %1118 = vmatpush.bf16.xpose.msra.mxu0 0
      %1119 = vmatpush.bf16.xpose.msra.mxu0 0
      %1120 = vmatpush.bf16.xpose.msra.mxu0 0
      %1121 = vmatpush.bf16.xpose.msra.mxu0 %v1112
      %1122 = vmatmul.bf16.gmra.mxu0 %v1109
      %v1123 = vpop.f32.mrf.mxu0
      %v1124 = vadd.f32 0.0, %v1123
      %v1125 = vpop.f32.mrf.mxu0
      %1126 = vdwg.mxu0
      %1127 = vrot.lane.b32.xlu0 %v1103, 64
      %v1128 = vpop.permute.xlu0 %1127
      %1129 = vrot.lane.b32.xlu0 %v1080, 64
      %v1130 = vpop.permute.xlu0 %1129
      %v1132 = vsel %vm1081, %v1128, 0
      %v1135 = vsel %vm1081, %v1130, 0
      %1137 = vmatpush.bf16.xpose.msra.mxu0 0
      %1138 = vmatpush.bf16.xpose.msra.mxu0 0
      %1139 = vmatpush.bf16.xpose.msra.mxu0 0
      %1140 = vmatpush.bf16.xpose.msra.mxu0 0
      %1141 = vmatpush.bf16.xpose.msra.mxu0 0
      %1142 = vmatpush.bf16.xpose.msra.mxu0 0
      %1143 = vmatpush.bf16.xpose.msra.mxu0 0
      %1144 = vmatpush.bf16.xpose.msra.mxu0 %v1135
      %1145 = vmatmul.bf16.gmra.mxu0 %v1132
      %v1146 = vpop.f32.mrf.mxu0
      %v1147 = vadd.f32 0.0, %v1146
      %v1148 = vpop.f32.mrf.mxu0
      %1149 = vdwg.mxu0
      %1150 = vrot.lane.b32.xlu0 %v1103, 32
      %v1151 = vpop.permute.xlu0 %1150
      %1152 = vrot.lane.b32.xlu0 %v1080, 32
      %v1153 = vpop.permute.xlu0 %1152
      %v1155 = vsel %vm1081, %v1151, 0
      %v1158 = vsel %vm1081, %v1153, 0
      %1160 = vmatpush.bf16.xpose.msra.mxu0 0
      %1161 = vmatpush.bf16.xpose.msra.mxu0 0
      %1162 = vmatpush.bf16.xpose.msra.mxu0 0
      %1163 = vmatpush.bf16.xpose.msra.mxu0 0
      %1164 = vmatpush.bf16.xpose.msra.mxu0 0
      %1165 = vmatpush.bf16.xpose.msra.mxu0 0
      %1166 = vmatpush.bf16.xpose.msra.mxu0 0
      %1167 = vmatpush.bf16.xpose.msra.mxu0 %v1158
      %1168 = vmatmul.bf16.gmra.mxu0 %v1155
      %v1169 = vpop.f32.mrf.mxu0
      %v1170 = vadd.f32 0.0, %v1169
      %v1171 = vpop.f32.mrf.mxu0
      %1172 = vdwg.mxu0
      %v1173 = vmul.f32 %v1098, 0.17677669
      %v1174 = vmul.f32 %v1124, 0.17677669
      %v1175 = vmul.f32 %v1147, 0.17677669
      %v1176 = vmul.f32 %v1170, 0.17677669
      %vm1177 = vcmask 130048
      %v1178 = vsel %vm1177, %v1173, -inf
      %1179 = vmax.xlane.f32.xlu0 %v1178
      %v1180 = vpop.xlane.xlu0 %1179
      %v1181 = vsel %vm1177, %v1174, -inf
      %1182 = vmax.xlane.f32.xlu0 %v1181
      %v1183 = vpop.xlane.xlu0 %1182
      %v1184 = vsel %vm1177, %v1175, -inf
      %1185 = vmax.xlane.f32.xlu0 %v1184
      %v1186 = vpop.xlane.xlu0 %1185
      %v1187 = vsel %vm1177, %v1176, -inf
      %1188 = vmax.xlane.f32.xlu0 %v1187
      %v1189 = vpop.xlane.xlu0 %1188
      %v1190 = vsub.f32 %v1173, %v1180
      %v1191 = vsub.f32 %v1174, %v1183
      %v1192 = vsub.f32 %v1175, %v1186
      %v1193 = vsub.f32 %v1176, %v1189
      %v1194 = vmul.f32 %v1190, 1.442695
      %v1195 = vpow.pop %v1194
      %v1196 = vmul.f32 %v1191, 1.442695
      %v1197 = vpow.pop %v1196
      %v1198 = vmul.f32 %v1192, 1.442695
      %v1199 = vpow.pop %v1198
      %v1200 = vmul.f32 %v1193, 1.442695
      %v1201 = vpow.pop %v1200
      %v1202 = vsel %vm1177, %v1195, 0.0
      %1203 = vadd.xlane.f32.xlu0 %v1202
      %v1204 = vpop.xlane.xlu0 %1203
      %v1205 = vsel %vm1177, %v1197, 0.0
      %1206 = vadd.xlane.f32.xlu0 %v1205
      %v1207 = vpop.xlane.xlu0 %1206
      %v1208 = vsel %vm1177, %v1199, 0.0
      %1209 = vadd.xlane.f32.xlu0 %v1208
      %v1210 = vpop.xlane.xlu0 %1209
      %v1211 = vsel %vm1177, %v1201, 0.0
      %1212 = vadd.xlane.f32.xlu0 %v1211
      %v1213 = vpop.xlane.xlu0 %1212
      %v1214 = vrcp.pop %v1204
      %v1215 = vrcp.pop %v1207
      %v1216 = vrcp.pop %v1210
      %v1217 = vrcp.pop %v1213
      %v1218 = vmul.f32 %v1195, %v1214
      %v1219 = vmul.f32 %v1197, %v1215
      %v1220 = vmul.f32 %v1199, %v1216
      %v1221 = vmul.f32 %v1201, %v1217
      %v1222 = vpack.c.bf16 %v1218, %v1218
      %v1223 = vpack.c.bf16 %v1219, %v1219
      %v1224 = vpack.c.bf16 %v1220, %v1220
      %v1225 = vpack.c.bf16 %v1221, %v1221
      %v1228 = vunpack.c.l.b16 %v1074
      %v1229 = vunpack.c.l.b16 %v1075
      %v1230 = vpack.c.b16 %v1229, %v1228
      %v1233 = vsel %vm1177, %v1222, 0
      %1235 = vmatpush.bf16.msra.mxu0 0
      %1236 = vmatpush.bf16.msra.mxu0 0
      %1237 = vmatpush.bf16.msra.mxu0 0
      %1238 = vmatpush.bf16.msra.mxu0 0
      %1239 = vmatpush.bf16.msra.mxu0 0
      %1240 = vmatpush.bf16.msra.mxu0 0
      %1241 = vmatpush.bf16.msra.mxu0 0
      %1242 = vmatpush.bf16.msra.mxu0 %v1230
      %1243 = vmatmul.bf16.gmra.mxu0 %v1233
      %v1244 = vpop.f32.mrf.mxu0
      %v1245 = vadd.f32 0.0, %v1244
      %v1246 = vpop.f32.mrf.mxu0
      %1247 = vdwg.mxu0
      %1248 = vst.msk [vmem:[#allocation2] sm:$0xff] %vm1081, %v1245
      %1249 = vrot.lane.b32.xlu0 %v1230, 96
      %v1250 = vpop.permute.xlu0 %1249
      %v1253 = vsel %vm1177, %v1223, 0
      %1255 = vmatpush.bf16.msra.mxu0 0
      %1256 = vmatpush.bf16.msra.mxu0 0
      %1257 = vmatpush.bf16.msra.mxu0 0
      %1258 = vmatpush.bf16.msra.mxu0 0
      %1259 = vmatpush.bf16.msra.mxu0 0
      %1260 = vmatpush.bf16.msra.mxu0 0
      %1261 = vmatpush.bf16.msra.mxu0 0
      %1262 = vmatpush.bf16.msra.mxu0 %v1250
      %1263 = vmatmul.bf16.gmra.mxu0 %v1253
      %v1264 = vpop.f32.mrf.mxu0
      %v1265 = vadd.f32 0.0, %v1264
      %v1266 = vpop.f32.mrf.mxu0
      %1267 = vdwg.mxu0
      %1269 = vrot.lane.b32.xlu0 %v1265, 32
      %v1270 = vpop.permute.xlu0 %1269
      %vm1272 = vcmask 523520
      %1273 = vst.msk [vmem:[#allocation2] sm:$0xff] %vm1272, %v1270
      %1274 = vrot.lane.b32.xlu0 %v1230, 64
      %v1275 = vpop.permute.xlu0 %1274
      %v1278 = vsel %vm1177, %v1224, 0
      %1280 = vmatpush.bf16.msra.mxu0 0
      %1281 = vmatpush.bf16.msra.mxu0 0
      %1282 = vmatpush.bf16.msra.mxu0 0
      %1283 = vmatpush.bf16.msra.mxu0 0
      %1284 = vmatpush.bf16.msra.mxu0 0
      %1285 = vmatpush.bf16.msra.mxu0 0
      %1286 = vmatpush.bf16.msra.mxu0 0
      %1287 = vmatpush.bf16.msra.mxu0 %v1275
      %1288 = vmatmul.bf16.gmra.mxu0 %v1278
      %v1289 = vpop.f32.mrf.mxu0
      %v1290 = vadd.f32 0.0, %v1289
      %v1291 = vpop.f32.mrf.mxu0
      %1292 = vdwg.mxu0
      %1294 = vrot.lane.b32.xlu0 %v1290, 64
      %v1295 = vpop.permute.xlu0 %1294
      %vm1297 = vcmask 785920
      %1298 = vst.msk [vmem:[#allocation2] sm:$0xff] %vm1297, %v1295
      %1299 = vrot.lane.b32.xlu0 %v1230, 32
      %v1300 = vpop.permute.xlu0 %1299
      %v1303 = vsel %vm1177, %v1225, 0
      %1305 = vmatpush.bf16.msra.mxu0 0
      %1306 = vmatpush.bf16.msra.mxu0 0
      %1307 = vmatpush.bf16.msra.mxu0 0
      %1308 = vmatpush.bf16.msra.mxu0 0
      %1309 = vmatpush.bf16.msra.mxu0 0
      %1310 = vmatpush.bf16.msra.mxu0 0
      %1311 = vmatpush.bf16.msra.mxu0 0
      %1312 = vmatpush.bf16.msra.mxu0 %v1300
      %1313 = vmatmul.bf16.gmra.mxu0 %v1303
      %v1314 = vpop.f32.mrf.mxu0
      %v1315 = vadd.f32 0.0, %v1314
      %v1316 = vpop.f32.mrf.mxu0
      %1317 = vdwg.mxu0
      %1319 = vrot.lane.b32.xlu0 %v1315, 96
      %v1320 = vpop.permute.xlu0 %1319
      %vm1322 = vcmask 1048320
      %1323 = vst.msk [vmem:[#allocation2] sm:$0xff] %vm1322, %v1320
      %v1324 = vld [vmem:[#allocation2] sm:$0xff]
      %v1325 = vpack.c.bf16 %v1324, %v1324
      %v1326 = vld [vmem:[%s11] sm:$0xf]
      %v1327 = vld [vmem:[%s11 + $0x4] sm:$0xf]
      %v1328 = vld [vmem:[%s11 + $0x8] sm:$0xf]
      %v1329 = vld [vmem:[%s11 + $0xc] sm:$0xf]
      %v1330 = vld [vmem:[%s11 + $0x10] sm:$0xf]
      %v1331 = vld [vmem:[%s11 + $0x14] sm:$0xf]
      %v1332 = vld [vmem:[%s11 + $0x18] sm:$0xf]
      %v1333 = vld [vmem:[%s11 + $0x1c] sm:$0xf]
      %v1334 = vld [vmem:[%s11 + $0x20] sm:$0xf]
      %v1335 = vld [vmem:[%s11 + $0x24] sm:$0xf]
      %v1336 = vld [vmem:[%s11 + $0x28] sm:$0xf]
      %v1337 = vld [vmem:[%s11 + $0x2c] sm:$0xf]
      %v1338 = vld [vmem:[%s11 + $0x30] sm:$0xf]
      %v1339 = vld [vmem:[%s11 + $0x34] sm:$0xf]
      %v1340 = vld [vmem:[%s11 + $0x38] sm:$0xf]
      %v1341 = vld [vmem:[%s11 + $0x3c] sm:$0xf]
      %v1342 = vld [vmem:[%s12] sm:$0x1]
      %v1344 = vperm.slane %v1342, 0
      %v1362 = vunpack.c.l.b16 %v1326
      %v1363 = vunpack.c.l.b16 %v1327
      %v1364 = vunpack.c.l.b16 %v1328
      %v1365 = vunpack.c.l.b16 %v1329
      %v1366 = vunpack.c.l.b16 %v1330
      %v1367 = vunpack.c.l.b16 %v1331
      %v1368 = vunpack.c.l.b16 %v1332
      %v1369 = vunpack.c.l.b16 %v1333
      %v1370 = vunpack.c.l.b16 %v1334
      %v1371 = vunpack.c.l.b16 %v1335
      %v1372 = vunpack.c.l.b16 %v1336
      %v1373 = vunpack.c.l.b16 %v1337
      %v1374 = vunpack.c.l.b16 %v1338
      %v1375 = vunpack.c.l.b16 %v1339
      %v1376 = vunpack.c.l.b16 %v1340
      %v1377 = vunpack.c.l.b16 %v1341
      %v1378 = vpack.c.b16 %v1363, %v1362
      %v1379 = vpack.c.b16 %v1365, %v1364
      %v1380 = vpack.c.b16 %v1367, %v1366
      %v1381 = vpack.c.b16 %v1369, %v1368
      %v1382 = vpack.c.b16 %v1371, %v1370
      %v1383 = vpack.c.b16 %v1373, %v1372
      %v1384 = vpack.c.b16 %v1375, %v1374
      %v1385 = vpack.c.b16 %v1377, %v1376
      %1394 = vmatpush.bf16.msra.mxu0 %v1385
      %1395 = vmatpush.bf16.msra.mxu0 %v1384
      %1396 = vmatpush.bf16.msra.mxu0 %v1383
      %1397 = vmatpush.bf16.msra.mxu0 %v1382
      %1398 = vmatpush.bf16.msra.mxu0 %v1381
      %1399 = vmatpush.bf16.msra.mxu0 %v1380
      %1400 = vmatpush.bf16.msra.mxu0 %v1379
      %1401 = vmatpush.bf16.msra.mxu0 %v1378
      %1402 = vmatmul.bf16.gmra.mxu0 %v1325
      %v1403 = vpop.f32.mrf.mxu0
      %v1404 = vadd.f32 %v1344, %v1403
      %v1405 = vpop.f32.mrf.mxu0
      %1406 = vdwg.mxu0
      %v1407 = vadd.f32 %v857, %v1404
      %v1408 = vld [vmem:[%s13] sm:$0x1]
      %v1409 = vld [vmem:[%s14] sm:$0x1]
      %1410 = vadd.xlane.f32.xlu0 %v1407
      %v1411 = vpop.xlane.xlu0 %1410
      %v1412 = vmul.f32 %v1411, %v810
      %v1413 = vsub.f32 %v1407, %v1412
      %v1414 = vmul.f32 %v1413, %v1413
      %1415 = vadd.xlane.f32.xlu0 %v1414
      %v1416 = vpop.xlane.xlu0 %1415
      %v1417 = vmul.f32 %v1416, %v810
      %v1418 = vadd.f32 %v1417, 1e-05
      %v1419 = vrsqrt.pop %v1418
      %v1420 = vmul.f32 %v1419, %v1418
      %v1421 = vmul.f32 %v1420, %v1419
      %v1422 = vmul.f32 0.5, %v1421
      %v1423 = vsub.f32 1.5, %v1422
      %v1424 = vmul.f32 %v1419, %v1423
      %vm1425 = vweird.f32 %v1418
      %vm1426 = vweird.f32 %v1419
      %vm1427 = vmor %vm1425, %vm1426
      %v1428 = vsel %vm1427, %v1419, %v1424
      %v1429 = vmul.f32 %v1413, %v1428
      %v1431 = vperm.slane %v1408, 0
      %v1433 = vmul.f32 %v1429, %v1431
      %v1435 = vperm.slane %v1409, 0
      %v1437 = vadd.f32 %v1433, %v1435
      %v1438 = vpack.c.bf16 %v1437, %v1437
      %v1439 = vld [vmem:[%s15] sm:$0xff]
      %v1440 = vld [vmem:[%s15 + $0x8] sm:$0xff]
      %v1441 = vld [vmem:[%s15 + $0x10] sm:$0xff]
      %v1442 = vld [vmem:[%s15 + $0x18] sm:$0xff]
      %v1443 = vld [vmem:[%s15 + $0x20] sm:$0xff]
      %v1444 = vld [vmem:[%s15 + $0x28] sm:$0xff]
      %v1445 = vld [vmem:[%s15 + $0x30] sm:$0xff]
      %v1446 = vld [vmem:[%s15 + $0x38] sm:$0xff]
      %v1447 = vld [vmem:[%s15 + $0x40] sm:$0xff]
      %v1448 = vld [vmem:[%s15 + $0x48] sm:$0xff]
      %v1449 = vld [vmem:[%s15 + $0x50] sm:$0xff]
      %v1450 = vld [vmem:[%s15 + $0x58] sm:$0xff]
      %v1451 = vld [vmem:[%s15 + $0x60] sm:$0xff]
      %v1452 = vld [vmem:[%s15 + $0x68] sm:$0xff]
      %v1453 = vld [vmem:[%s15 + $0x70] sm:$0xff]
      %v1454 = vld [vmem:[%s15 + $0x78] sm:$0xff]
      %v1455 = vld [vmem:[%s16] sm:$0x3]
      %v1457 = vperm.slane %v1455, 0
      %v1458 = vperm.slane %v1455, 1
      %v1477 = vunpack.c.l.b16 %v1439
      %v1478 = vunpack.c.h.b16 %v1439
      %v1479 = vunpack.c.l.b16 %v1440
      %v1480 = vunpack.c.h.b16 %v1440
      %v1481 = vunpack.c.l.b16 %v1441
      %v1482 = vunpack.c.h.b16 %v1441
      %v1483 = vunpack.c.l.b16 %v1442
      %v1484 = vunpack.c.h.b16 %v1442
      %v1485 = vunpack.c.l.b16 %v1443
      %v1486 = vunpack.c.h.b16 %v1443
      %v1487 = vunpack.c.l.b16 %v1444
      %v1488 = vunpack.c.h.b16 %v1444
      %v1489 = vunpack.c.l.b16 %v1445
      %v1490 = vunpack.c.h.b16 %v1445
      %v1491 = vunpack.c.l.b16 %v1446
      %v1492 = vunpack.c.h.b16 %v1446
      %v1493 = vunpack.c.l.b16 %v1447
      %v1494 = vunpack.c.h.b16 %v1447
      %v1495 = vunpack.c.l.b16 %v1448
      %v1496 = vunpack.c.h.b16 %v1448
      %v1497 = vunpack.c.l.b16 %v1449
      %v1498 = vunpack.c.h.b16 %v1449
      %v1499 = vunpack.c.l.b16 %v1450
      %v1500 = vunpack.c.h.b16 %v1450
      %v1501 = vunpack.c.l.b16 %v1451
      %v1502 = vunpack.c.h.b16 %v1451
      %v1503 = vunpack.c.l.b16 %v1452
      %v1504 = vunpack.c.h.b16 %v1452
      %v1505 = vunpack.c.l.b16 %v1453
      %v1506 = vunpack.c.h.b16 %v1453
      %v1507 = vunpack.c.l.b16 %v1454
      %v1508 = vunpack.c.h.b16 %v1454
      %v1509 = vpack.c.b16 %v1479, %v1477
      %v1510 = vpack.c.b16 %v1480, %v1478
      %v1511 = vpack.c.b16 %v1483, %v1481
      %v1512 = vpack.c.b16 %v1484, %v1482
      %v1513 = vpack.c.b16 %v1487, %v1485
      %v1514 = vpack.c.b16 %v1488, %v1486
      %v1515 = vpack.c.b16 %v1491, %v1489
      %v1516 = vpack.c.b16 %v1492, %v1490
      %v1517 = vpack.c.b16 %v1495, %v1493
      %v1518 = vpack.c.b16 %v1496, %v1494
      %v1519 = vpack.c.b16 %v1499, %v1497
      %v1520 = vpack.c.b16 %v1500, %v1498
      %v1521 = vpack.c.b16 %v1503, %v1501
      %v1522 = vpack.c.b16 %v1504, %v1502
      %v1523 = vpack.c.b16 %v1507, %v1505
      %v1524 = vpack.c.b16 %v1508, %v1506
      %1541 = vmatpush.bf16.msra.mxu0 %v1523
      %1542 = vmatpush.bf16.msra.mxu0 %v1521
      %1543 = vmatpush.bf16.msra.mxu0 %v1519
      %1544 = vmatpush.bf16.msra.mxu0 %v1517
      %1545 = vmatpush.bf16.msra.mxu0 %v1515
      %1546 = vmatpush.bf16.msra.mxu0 %v1513
      %1547 = vmatpush.bf16.msra.mxu0 %v1511
      %1548 = vmatpush.bf16.msra.mxu0 %v1509
      %1549 = vmatmul.bf16.gmra.mxu0 %v1438
      %v1550 = vpop.f32.mrf.mxu0
      %v1551 = vadd.f32 %v1457, %v1550
      %v1552 = vpop.f32.mrf.mxu0
      %1553 = vdwg.mxu0
      %1554 = vmatpush.bf16.msra.mxu0 %v1524
      %1555 = vmatpush.bf16.msra.mxu0 %v1522
      %1556 = vmatpush.bf16.msra.mxu0 %v1520
      %1557 = vmatpush.bf16.msra.mxu0 %v1518
      %1558 = vmatpush.bf16.msra.mxu0 %v1516
      %1559 = vmatpush.bf16.msra.mxu0 %v1514
      %1560 = vmatpush.bf16.msra.mxu0 %v1512
      %1561 = vmatpush.bf16.msra.mxu0 %v1510
      %1562 = vmatmul.bf16.gmra.mxu0 %v1438
      %v1563 = vpop.f32.mrf.mxu0
      %v1564 = vadd.f32 %v1458, %v1563
      %v1565 = vpop.f32.mrf.mxu0
      %1566 = vdwg.mxu0
      %v1567 = vmul.f32 %v1551, %v1551
      %v1568 = vmul.f32 %v1564, %v1564
      %v1569 = vmul.f32 %v1551, %v1567
      %v1570 = vmul.f32 %v1564, %v1568
      %v1571 = vmul.f32 %v1569, 0.044715
      %v1572 = vmul.f32 %v1570, 0.044715
      %v1573 = vadd.f32 %v1551, %v1571
      %v1574 = vadd.f32 %v1564, %v1572
      %v1575 = vmul.f32 %v1573, 0.7978846
      %v1576 = vmul.f32 %v1574, 0.7978846
      %v1577 = vtanh.pop %v1575
      %v1578 = vtanh.pop %v1576
      %v1579 = vadd.f32 %v1577, 1.0
      %v1580 = vadd.f32 %v1578, 1.0
      %v1581 = vmul.f32 %v1579, 0.5
      %v1582 = vmul.f32 %v1580, 0.5
      %v1583 = vmul.f32 %v1551, %v1581
      %v1584 = vmul.f32 %v1564, %v1582
      %v1585 = vpack.c.bf16 %v1583, %v1583
      %v1586 = vpack.c.bf16 %v1584, %v1584
      %v1587 = vld [vmem:[%s17] sm:$0xf]
      %v1588 = vld [vmem:[%s17 + $0x4] sm:$0xf]
      %v1589 = vld [vmem:[%s17 + $0x8] sm:$0xf]
      %v1590 = vld [vmem:[%s17 + $0xc] sm:$0xf]
      %v1591 = vld [vmem:[%s17 + $0x10] sm:$0xf]
      %v1592 = vld [vmem:[%s17 + $0x14] sm:$0xf]
      %v1593 = vld [vmem:[%s17 + $0x18] sm:$0xf]
      %v1594 = vld [vmem:[%s17 + $0x1c] sm:$0xf]
      %v1595 = vld [vmem:[%s17 + $0x20] sm:$0xf]
      %v1596 = vld [vmem:[%s17 + $0x24] sm:$0xf]
      %v1597 = vld [vmem:[%s17 + $0x28] sm:$0xf]
      %v1598 = vld [vmem:[%s17 + $0x2c] sm:$0xf]
      %v1599 = vld [vmem:[%s17 + $0x30] sm:$0xf]
      %v1600 = vld [vmem:[%s17 + $0x34] sm:$0xf]
      %v1601 = vld [vmem:[%s17 + $0x38] sm:$0xf]
      %v1602 = vld [vmem:[%s17 + $0x3c] sm:$0xf]
      %v1603 = vld [vmem:[%s17 + $0x40] sm:$0xf]
      %v1604 = vld [vmem:[%s17 + $0x44] sm:$0xf]
      %v1605 = vld [vmem:[%s17 + $0x48] sm:$0xf]
      %v1606 = vld [vmem:[%s17 + $0x4c] sm:$0xf]
      %v1607 = vld [vmem:[%s17 + $0x50] sm:$0xf]
      %v1608 = vld [vmem:[%s17 + $0x54] sm:$0xf]
      %v1609 = vld [vmem:[%s17 + $0x58] sm:$0xf]
      %v1610 = vld [vmem:[%s17 + $0x5c] sm:$0xf]
      %v1611 = vld [vmem:[%s17 + $0x60] sm:$0xf]
      %v1612 = vld [vmem:[%s17 + $0x64] sm:$0xf]
      %v1613 = vld [vmem:[%s17 + $0x68] sm:$0xf]
      %v1614 = vld [vmem:[%s17 + $0x6c] sm:$0xf]
      %v1615 = vld [vmem:[%s17 + $0x70] sm:$0xf]
      %v1616 = vld [vmem:[%s17 + $0x74] sm:$0xf]
      %v1617 = vld [vmem:[%s17 + $0x78] sm:$0xf]
      %v1618 = vld [vmem:[%s17 + $0x7c] sm:$0xf]
      %v1619 = vld [vmem:[%s18] sm:$0x1]
      %v1621 = vperm.slane %v1619, 0
      %v1655 = vunpack.c.l.b16 %v1587
      %v1656 = vunpack.c.l.b16 %v1588
      %v1657 = vunpack.c.l.b16 %v1589
      %v1658 = vunpack.c.l.b16 %v1590
      %v1659 = vunpack.c.l.b16 %v1591
      %v1660 = vunpack.c.l.b16 %v1592
      %v1661 = vunpack.c.l.b16 %v1593
      %v1662 = vunpack.c.l.b16 %v1594
      %v1663 = vunpack.c.l.b16 %v1595
      %v1664 = vunpack.c.l.b16 %v1596
      %v1665 = vunpack.c.l.b16 %v1597
      %v1666 = vunpack.c.l.b16 %v1598
      %v1667 = vunpack.c.l.b16 %v1599
      %v1668 = vunpack.c.l.b16 %v1600
      %v1669 = vunpack.c.l.b16 %v1601
      %v1670 = vunpack.c.l.b16 %v1602
      %v1671 = vunpack.c.l.b16 %v1603
      %v1672 = vunpack.c.l.b16 %v1604
      %v1673 = vunpack.c.l.b16 %v1605
      %v1674 = vunpack.c.l.b16 %v1606
      %v1675 = vunpack.c.l.b16 %v1607
      %v1676 = vunpack.c.l.b16 %v1608
      %v1677 = vunpack.c.l.b16 %v1609
      %v1678 = vunpack.c.l.b16 %v1610
      %v1679 = vunpack.c.l.b16 %v1611
      %v1680 = vunpack.c.l.b16 %v1612
      %v1681 = vunpack.c.l.b16 %v1613
      %v1682 = vunpack.c.l.b16 %v1614
      %v1683 = vunpack.c.l.b16 %v1615
      %v1684 = vunpack.c.l.b16 %v1616
      %v1685 = vunpack.c.l.b16 %v1617
      %v1686 = vunpack.c.l.b16 %v1618
      %v1687 = vpack.c.b16 %v1656, %v1655
      %v1688 = vpack.c.b16 %v1658, %v1657
      %v1689 = vpack.c.b16 %v1660, %v1659
      %v1690 = vpack.c.b16 %v1662, %v1661
      %v1691 = vpack.c.b16 %v1664, %v1663
      %v1692 = vpack.c.b16 %v1666, %v1665
      %v1693 = vpack.c.b16 %v1668, %v1667
      %v1694 = vpack.c.b16 %v1670, %v1669
      %v1695 = vpack.c.b16 %v1672, %v1671
      %v1696 = vpack.c.b16 %v1674, %v1673
      %v1697 = vpack.c.b16 %v1676, %v1675
      %v1698 = vpack.c.b16 %v1678, %v1677
      %v1699 = vpack.c.b16 %v1680, %v1679
      %v1700 = vpack.c.b16 %v1682, %v1681
      %v1701 = vpack.c.b16 %v1684, %v1683
      %v1702 = vpack.c.b16 %v1686, %v1685
      %1719 = vmatpush.bf16.msra.mxu0 %v1694
      %1720 = vmatpush.bf16.msra.mxu0 %v1693
      %1721 = vmatpush.bf16.msra.mxu0 %v1692
      %1722 = vmatpush.bf16.msra.mxu0 %v1691
      %1723 = vmatpush.bf16.msra.mxu0 %v1690
      %1724 = vmatpush.bf16.msra.mxu0 %v1689
      %1725 = vmatpush.bf16.msra.mxu0 %v1688
      %1726 = vmatpush.bf16.msra.mxu0 %v1687
      %1727 = vmatmul.bf16.gmra.mxu0 %v1585
      %v1728 = vpop.f32.mrf.mxu0
      %v1729 = vadd.f32 %v1621, %v1728
      %v1730 = vpop.f32.mrf.mxu0
      %1731 = vdwg.mxu0
      %1732 = vmatpush.bf16.msra.mxu0 %v1702
      %1733 = vmatpush.bf16.msra.mxu0 %v1701
      %1734 = vmatpush.bf16.msra.mxu0 %v1700
      %1735 = vmatpush.bf16.msra.mxu0 %v1699
      %1736 = vmatpush.bf16.msra.mxu0 %v1698
      %1737 = vmatpush.bf16.msra.mxu0 %v1697
      %1738 = vmatpush.bf16.msra.mxu0 %v1696
      %1739 = vmatpush.bf16.msra.mxu0 %v1695
      %1740 = vmatmul.bf16.gmra.mxu0 %v1586
      %v1741 = vpop.f32.mrf.mxu0
      %v1742 = vadd.f32 %v1729, %v1741
      %v1743 = vpop.f32.mrf.mxu0
      %1744 = vdwg.mxu0
      %v1745 = vadd.f32 %v1437, %v1742
      %v1746 = vld [vmem:[%s19] sm:$0x1]
      %v1747 = vld [vmem:[%s20] sm:$0x1]
      %1748 = vadd.xlane.f32.xlu0 %v1745
      %v1749 = vpop.xlane.xlu0 %1748
      %v1750 = vmul.f32 %v1749, %v810
      %v1751 = vsub.f32 %v1745, %v1750
      %v1752 = vmul.f32 %v1751, %v1751
      %1753 = vadd.xlane.f32.xlu0 %v1752
      %v1754 = vpop.xlane.xlu0 %1753
      %v1755 = vmul.f32 %v1754, %v810
      %v1756 = vadd.f32 %v1755, 1e-05
      %v1757 = vrsqrt.pop %v1756
      %v1758 = vmul.f32 %v1757, %v1756
      %v1759 = vmul.f32 %v1758, %v1757
      %v1760 = vmul.f32 0.5, %v1759
      %v1761 = vsub.f32 1.5, %v1760
      %v1762 = vmul.f32 %v1757, %v1761
      %vm1763 = vweird.f32 %v1756
      %vm1764 = vweird.f32 %v1757
      %vm1765 = vmor %vm1763, %vm1764
      %v1766 = vsel %vm1765, %v1757, %v1762
      %v1767 = vmul.f32 %v1751, %v1766
      %v1769 = vperm.slane %v1746, 0
      %v1771 = vmul.f32 %v1767, %v1769
      %v1773 = vperm.slane %v1747, 0
      %v1775 = vadd.f32 %v1771, %v1773
      %v1776 = vpack.c.bf16 %v1775, %v1775
      %1777 = vst [vmem:[%s654] sm:$0xf] %v1776
      %p1778 = scmp.lt.s32.totalorder %s32, 1
      %s1779 = scalar_select %p1778, %s32, 1
      %s1780 = smul.addr %s1779, 4
      %s1781 = scalar_lea.vmem %s21, %s1780
      // Predicated region
      $region105: #{blip_forward.3} parent=103 // pred_check
        %p1782 = pneg %p496
      $region106: #{blip_forward.3} parent=103 // pred_check_branch
        %1784 = sbr.rel (%p1782) target = $region108
      $region107: #{blip_forward.3} parent=103 // pred_region
        _
      $region108: #{blip_forward.3} parent=103 // pred_fallthru
        _
    $region104: #{blip_forward.3} parent=5 // pred_fallthru
      _
    %p1785 = scmp.le.s32.totalorder 2, %s27
    // Predicated region
    $region109: #{blip_forward.3} parent=5 // pred_check
      %p1786 = pneg %p1785
    $region110: #{blip_forward.3} parent=5 // pred_check_branch
      %1788 = sbr.rel (%p1786) target = $region112
    $region111: #{blip_forward.3} parent=5 // pred_region
      %s1789 = ssub.s32 %s27, 2
      // Predicated region
      $region113: #{blip_forward.3} parent=111 // pred_check
        %p1790 = pneg %p502
      $region114: #{blip_forward.3} parent=111 // pred_check_branch
        %1792 = sbr.rel (%p1790) target = $region116
      $region115: #{blip_forward.3} parent=111 // pred_region
        %p1793 = scmp.lt.s32.totalorder %s33, 1
        %s1794 = scalar_select %p1793, %s33, 1
        %s1795 = smul.addr %s1794, 4
        %s1796 = scalar_lea.vmem %s21, %s1795
      $region116: #{blip_forward.3} parent=111 // pred_fallthru
        _
    $region112: #{blip_forward.3} parent=5 // pred_fallthru
      _
  $region6: #{blip_forward.3} parent=0 // loop_footer
    %s31 = sadd.s32 1, %s27
  $region7: #{blip_forward.3} parent=0 // loop_footer_branch
    %26 = sbr.rel target = $region3
  $region8: #{blip_forward.3} parent=0 // loop_exit
    _

// kernel: blip_forward.4
$region0: #{blip_forward.4}
  #allocation0 [shape = 'u32[]', space=smem, size = 0x4, offset = 0x4, fixed_abs, tag = 'smem constant byte address 0x4 - core index']
  #allocation1 [shape = 'u32[72,128]{1,0:T(1,128)}', space=vmem, size = 0x9000, scoped, tag = 'internal scratch']
  #allocation2 [shape = 'f32[8,128]{1,0:T(8,128)}', space=vmem, size = 0x1000, scoped, tag = 'scratch operand']
  %s0 = inlined_call_operand.vmem [shape: f32[2,8,128], index: 0, kind: input, shape index: {}]
  %s1 = inlined_call_operand.vmem [shape: bf16[2,8,128], index: 1, kind: input, shape index: {}]
  %s2 = inlined_call_operand.vmem [shape: f32[8,8], index: 2, kind: input, shape index: {}]
  %s3 = inlined_call_operand.vmem [shape: f32[2,1,8], index: 3, kind: input, shape index: {}]
  %s4 = inlined_call_operand.vmem [shape: bf16[128,384], index: 4, kind: input, shape index: {}]
  %s5 = inlined_call_operand.vmem [shape: f32[1,384], index: 5, kind: input, shape index: {}]
  %s6 = inlined_call_operand.vmem [shape: bf16[128,128], index: 6, kind: input, shape index: {}]
  %s7 = inlined_call_operand.vmem [shape: f32[1,128], index: 7, kind: input, shape index: {}]
  %s8 = inlined_call_operand.vmem [shape: f32[1,128], index: 8, kind: input, shape index: {}]
  %s9 = inlined_call_operand.vmem [shape: f32[1,128], index: 9, kind: input, shape index: {}]
  %s10 = inlined_call_operand.vmem [shape: bf16[128,128], index: 10, kind: input, shape index: {}]
  %s11 = inlined_call_operand.vmem [shape: f32[1,128], index: 11, kind: input, shape index: {}]
  %s12 = inlined_call_operand.vmem [shape: bf16[128,256], index: 12, kind: input, shape index: {}]
  %s13 = inlined_call_operand.vmem [shape: f32[1,256], index: 13, kind: input, shape index: {}]
  %s14 = inlined_call_operand.vmem [shape: bf16[128,128], index: 14, kind: input, shape index: {}]
  %s15 = inlined_call_operand.vmem [shape: f32[1,128], index: 15, kind: input, shape index: {}]
  %s16 = inlined_call_operand.vmem [shape: f32[1,128], index: 16, kind: input, shape index: {}]
  %s17 = inlined_call_operand.vmem [shape: f32[1,128], index: 17, kind: input, shape index: {}]
  %s18 = inlined_call_operand.vmem [shape: bf16[128,256], index: 18, kind: input, shape index: {}]
  %s19 = inlined_call_operand.vmem [shape: f32[1,256], index: 19, kind: input, shape index: {}]
  %s20 = inlined_call_operand.vmem [shape: bf16[256,128], index: 20, kind: input, shape index: {}]
  %s21 = inlined_call_operand.vmem [shape: f32[1,128], index: 21, kind: input, shape index: {}]
  %s22 = inlined_call_operand.vmem [shape: f32[1,128], index: 22, kind: input, shape index: {}]
  %s23 = inlined_call_operand.vmem [shape: f32[1,128], index: 23, kind: input, shape index: {}]
  %s24 = inlined_call_operand.vmem [shape: bf16[2,8,128], index: 24, kind: output, shape index: {}]
  %s25 = sld [smem:[#allocation0]]
  $region129: #{blip_forward.4} parent=0
    _
  %s27 = ssub.s32 1, %s25
  %s28 = scalar_select 0, %s27, %s25
  loop: start=0, step=1, limit=4
  $region2: #{blip_forward.4} parent=0 // loop_pre_header
    _
  $region3: #{blip_forward.4} parent=0 // loop_header
    %s30 = sphi 0, %s34
    %p31 = scmp.ge.s32.totalorder %s30, 4
    %s40 = sphi 0, %s42
    %s43 = sphi 0, %s40
    %s44 = sphi 0, %s43
    %s60 = sphi 0, %s44
    %s66 = sphi 0, %s68
    %s69 = sphi 0, %s66
    %s70 = sphi 0, %s69
    %s86 = sphi 0, %s70
    %s90 = sphi 0, %s90
    %s92 = sphi 0, %s90
    %s93 = sphi 0, %s92
    %s107 = sphi 0, %s93
    %s113 = sphi 0, %s115
    %s116 = sphi 0, %s113
    %s117 = sphi 0, %s116
    %s133 = sphi 0, %s117
    %s137 = sphi 0, %s137
    %s139 = sphi 0, %s137
    %s140 = sphi 0, %s139
    %s154 = sphi 0, %s140
    %s158 = sphi 0, %s158
    %s160 = sphi 0, %s158
    %s161 = sphi 0, %s160
    %s175 = sphi 0, %s161
    %s179 = sphi 0, %s179
    %s181 = sphi 0, %s179
    %s182 = sphi 0, %s181
    %s196 = sphi 0, %s182
    %s200 = sphi 0, %s200
    %s202 = sphi 0, %s200
    %s203 = sphi 0, %s202
    %s217 = sphi 0, %s203
    %s221 = sphi 0, %s221
    %s223 = sphi 0, %s221
    %s224 = sphi 0, %s223
    %s238 = sphi 0, %s224
    %s242 = sphi 0, %s242
    %s244 = sphi 0, %s242
    %s245 = sphi 0, %s244
    %s259 = sphi 0, %s245
    %s263 = sphi 0, %s263
    %s265 = sphi 0, %s263
    %s266 = sphi 0, %s265
    %s280 = sphi 0, %s266
    %s284 = sphi 0, %s284
    %s286 = sphi 0, %s284
    %s287 = sphi 0, %s286
    %s301 = sphi 0, %s287
    %s305 = sphi 0, %s305
    %s307 = sphi 0, %s305
    %s308 = sphi 0, %s307
    %s322 = sphi 0, %s308
    %s326 = sphi 0, %s326
    %s328 = sphi 0, %s326
    %s329 = sphi 0, %s328
    %s343 = sphi 0, %s329
    %s347 = sphi 0, %s347
    %s349 = sphi 0, %s347
    %s350 = sphi 0, %s349
    %s364 = sphi 0, %s350
    %s368 = sphi 0, %s368
    %s370 = sphi 0, %s368
    %s371 = sphi 0, %s370
    %s385 = sphi 0, %s371
    %s389 = sphi 0, %s389
    %s391 = sphi 0, %s389
    %s392 = sphi 0, %s391
    %s406 = sphi 0, %s392
    %s410 = sphi 0, %s410
    %s412 = sphi 0, %s410
    %s413 = sphi 0, %s412
    %s427 = sphi 0, %s413
    %s431 = sphi 0, %s431
    %s433 = sphi 0, %s431
    %s434 = sphi 0, %s433
    %s448 = sphi 0, %s434
    %s452 = sphi 0, %s452
    %s454 = sphi 0, %s452
    %s455 = sphi 0, %s454
    %s469 = sphi 0, %s455
    %s473 = sphi 0, %s473
    %s475 = sphi 0, %s473
    %s476 = sphi 0, %s475
    %s490 = sphi 0, %s476
    %s494 = sphi 0, %s494
    %s496 = sphi 0, %s494
    %s497 = sphi 0, %s496
    %s511 = sphi 0, %s497
    %s515 = sphi 0, %s515
    %s517 = sphi 0, %s515
    %s518 = sphi 0, %s517
    %s532 = sphi 0, %s518
    %s536 = sphi 0, %s536
    %s538 = sphi 0, %s536
    %s539 = sphi 0, %s538
    %s553 = sphi 0, %s539
    %s559 = sphi 0, %s561
    %s562 = sphi 0, %s559
    %s563 = sphi 0, %s562
    %s579 = sphi 0, %s563
  $region4: #{blip_forward.4} parent=0 // loop_header_branch
    %33 = sbr.rel (%p31) target = $region8
  $region5: #{blip_forward.4} parent=0 // loop_body
    %s35 = ssub.s32 %s30, 1
    %s36 = ssub.s32 %s30, 2
    %s37 = sadd.s32 %s30, 1
    %s38 = ssub.s32 %s30, %s37
    %p39 = scmp.eq.s32.totalorder %s38, 0
    %s41 = sadd.s32 %s40, 1
    %s42 = scalar_select %p39, %s40, %s41
    %p45 = pneg %p39
    %p46 = scmp.eq.s32.totalorder %s30, 1
    %p47 = por %p45, %p46
    %p48 = scmp.ne.s32.totalorder %s40, %s43
    %p49 = scmp.eq.s32.totalorder %s30, 0
    %p50 = por %p48, %p49
    %p51 = scmp.ne.s32.totalorder %s40, %s43
    %p52 = scmp.eq.s32.totalorder %s35, 1
    %p53 = por %p51, %p52
    %p54 = scmp.ne.s32.totalorder %s43, %s44
    %p55 = scmp.eq.s32.totalorder %s35, 0
    %p56 = por %p54, %p55
    %p57 = scmp.ne.s32.totalorder %s43, %s44
    %p58 = scmp.eq.s32.totalorder %s36, 1
    %p59 = por %p57, %p58
    %p61 = scmp.ne.s32.totalorder %s44, %s60
    %p62 = scmp.eq.s32.totalorder %s36, 0
    %p63 = por %p61, %p62
    %s64 = ssub.s32 %s30, %s37
    %p65 = scmp.eq.s32.totalorder %s64, 0
    %s67 = sadd.s32 %s66, 1
    %s68 = scalar_select %p65, %s66, %s67
    %p71 = pneg %p65
    %p72 = scmp.eq.s32.totalorder %s30, 1
    %p73 = por %p71, %p72
    %p74 = scmp.ne.s32.totalorder %s66, %s69
    %p75 = scmp.eq.s32.totalorder %s30, 0
    %p76 = por %p74, %p75
    %p77 = scmp.ne.s32.totalorder %s66, %s69
    %p78 = scmp.eq.s32.totalorder %s35, 1
    %p79 = por %p77, %p78
    %p80 = scmp.ne.s32.totalorder %s69, %s70
    %p81 = scmp.eq.s32.totalorder %s35, 0
    %p82 = por %p80, %p81
    %p83 = scmp.ne.s32.totalorder %s69, %s70
    %p84 = scmp.eq.s32.totalorder %s36, 1
    %p85 = por %p83, %p84
    %p87 = scmp.ne.s32.totalorder %s70, %s86
    %p88 = scmp.eq.s32.totalorder %s36, 0
    %p89 = por %p87, %p88
    %s91 = sadd.s32 %s90, 1
    %p94 = scmp.eq.s32.totalorder %s30, 1
    %p95 = scmp.ne.s32.totalorder %s90, %s92
    %p96 = scmp.eq.s32.totalorder %s30, 0
    %p97 = por %p95, %p96
    %p98 = scmp.ne.s32.totalorder %s90, %s92
    %p99 = scmp.eq.s32.totalorder %s35, 1
    %p100 = por %p98, %p99
    %p101 = scmp.ne.s32.totalorder %s92, %s93
    %p102 = scmp.eq.s32.totalorder %s35, 0
    %p103 = por %p101, %p102
    %p104 = scmp.ne.s32.totalorder %s92, %s93
    %p105 = scmp.eq.s32.totalorder %s36, 1
    %p106 = por %p104, %p105
    %p108 = scmp.ne.s32.totalorder %s93, %s107
    %p109 = scmp.eq.s32.totalorder %s36, 0
    %p110 = por %p108, %p109
    %s111 = ssub.s32 %s30, %s37
    %p112 = scmp.eq.s32.totalorder %s111, 0
    %s114 = sadd.s32 %s113, 1
    %s115 = scalar_select %p112, %s113, %s114
    %p118 = pneg %p112
    %p119 = scmp.eq.s32.totalorder %s30, 1
    %p120 = por %p118, %p119
    %p121 = scmp.ne.s32.totalorder %s113, %s116
    %p122 = scmp.eq.s32.totalorder %s30, 0
    %p123 = por %p121, %p122
    %p124 = scmp.ne.s32.totalorder %s113, %s116
    %p125 = scmp.eq.s32.totalorder %s35, 1
    %p126 = por %p124, %p125
    %p127 = scmp.ne.s32.totalorder %s116, %s117
    %p128 = scmp.eq.s32.totalorder %s35, 0
    %p129 = por %p127, %p128
    %p130 = scmp.ne.s32.totalorder %s116, %s117
    %p131 = scmp.eq.s32.totalorder %s36, 1
    %p132 = por %p130, %p131
    %p134 = scmp.ne.s32.totalorder %s117, %s133
    %p135 = scmp.eq.s32.totalorder %s36, 0
    %p136 = por %p134, %p135
    %s138 = sadd.s32 %s137, 1
    %p141 = scmp.eq.s32.totalorder %s30, 1
    %p142 = scmp.ne.s32.totalorder %s137, %s139
    %p143 = scmp.eq.s32.totalorder %s30, 0
    %p144 = por %p142, %p143
    %p145 = scmp.ne.s32.totalorder %s137, %s139
    %p146 = scmp.eq.s32.totalorder %s35, 1
    %p147 = por %p145, %p146
    %p148 = scmp.ne.s32.totalorder %s139, %s140
    %p149 = scmp.eq.s32.totalorder %s35, 0
    %p150 = por %p148, %p149
    %p151 = scmp.ne.s32.totalorder %s139, %s140
    %p152 = scmp.eq.s32.totalorder %s36, 1
    %p153 = por %p151, %p152
    %p155 = scmp.ne.s32.totalorder %s140, %s154
    %p156 = scmp.eq.s32.totalorder %s36, 0
    %p157 = por %p155, %p156
    %s159 = sadd.s32 %s158, 1
    %p162 = scmp.eq.s32.totalorder %s30, 1
    %p163 = scmp.ne.s32.totalorder %s158, %s160
    %p164 = scmp.eq.s32.totalorder %s30, 0
    %p165 = por %p163, %p164
    %p166 = scmp.ne.s32.totalorder %s158, %s160
    %p167 = scmp.eq.s32.totalorder %s35, 1
    %p168 = por %p166, %p167
    %p169 = scmp.ne.s32.totalorder %s160, %s161
    %p170 = scmp.eq.s32.totalorder %s35, 0
    %p171 = por %p169, %p170
    %p172 = scmp.ne.s32.totalorder %s160, %s161
    %p173 = scmp.eq.s32.totalorder %s36, 1
    %p174 = por %p172, %p173
    %p176 = scmp.ne.s32.totalorder %s161, %s175
    %p177 = scmp.eq.s32.totalorder %s36, 0
    %p178 = por %p176, %p177
    %s180 = sadd.s32 %s179, 1
    %p183 = scmp.eq.s32.totalorder %s30, 1
    %p184 = scmp.ne.s32.totalorder %s179, %s181
    %p185 = scmp.eq.s32.totalorder %s30, 0
    %p186 = por %p184, %p185
    %p187 = scmp.ne.s32.totalorder %s179, %s181
    %p188 = scmp.eq.s32.totalorder %s35, 1
    %p189 = por %p187, %p188
    %p190 = scmp.ne.s32.totalorder %s181, %s182
    %p191 = scmp.eq.s32.totalorder %s35, 0
    %p192 = por %p190, %p191
    %p193 = scmp.ne.s32.totalorder %s181, %s182
    %p194 = scmp.eq.s32.totalorder %s36, 1
    %p195 = por %p193, %p194
    %p197 = scmp.ne.s32.totalorder %s182, %s196
    %p198 = scmp.eq.s32.totalorder %s36, 0
    %p199 = por %p197, %p198
    %s201 = sadd.s32 %s200, 1
    %p204 = scmp.eq.s32.totalorder %s30, 1
    %p205 = scmp.ne.s32.totalorder %s200, %s202
    %p206 = scmp.eq.s32.totalorder %s30, 0
    %p207 = por %p205, %p206
    %p208 = scmp.ne.s32.totalorder %s200, %s202
    %p209 = scmp.eq.s32.totalorder %s35, 1
    %p210 = por %p208, %p209
    %p211 = scmp.ne.s32.totalorder %s202, %s203
    %p212 = scmp.eq.s32.totalorder %s35, 0
    %p213 = por %p211, %p212
    %p214 = scmp.ne.s32.totalorder %s202, %s203
    %p215 = scmp.eq.s32.totalorder %s36, 1
    %p216 = por %p214, %p215
    %p218 = scmp.ne.s32.totalorder %s203, %s217
    %p219 = scmp.eq.s32.totalorder %s36, 0
    %p220 = por %p218, %p219
    %s222 = sadd.s32 %s221, 1
    %p225 = scmp.eq.s32.totalorder %s30, 1
    %p226 = scmp.ne.s32.totalorder %s221, %s223
    %p227 = scmp.eq.s32.totalorder %s30, 0
    %p228 = por %p226, %p227
    %p229 = scmp.ne.s32.totalorder %s221, %s223
    %p230 = scmp.eq.s32.totalorder %s35, 1
    %p231 = por %p229, %p230
    %p232 = scmp.ne.s32.totalorder %s223, %s224
    %p233 = scmp.eq.s32.totalorder %s35, 0
    %p234 = por %p232, %p233
    %p235 = scmp.ne.s32.totalorder %s223, %s224
    %p236 = scmp.eq.s32.totalorder %s36, 1
    %p237 = por %p235, %p236
    %p239 = scmp.ne.s32.totalorder %s224, %s238
    %p240 = scmp.eq.s32.totalorder %s36, 0
    %p241 = por %p239, %p240
    %s243 = sadd.s32 %s242, 1
    %p246 = scmp.eq.s32.totalorder %s30, 1
    %p247 = scmp.ne.s32.totalorder %s242, %s244
    %p248 = scmp.eq.s32.totalorder %s30, 0
    %p249 = por %p247, %p248
    %p250 = scmp.ne.s32.totalorder %s242, %s244
    %p251 = scmp.eq.s32.totalorder %s35, 1
    %p252 = por %p250, %p251
    %p253 = scmp.ne.s32.totalorder %s244, %s245
    %p254 = scmp.eq.s32.totalorder %s35, 0
    %p255 = por %p253, %p254
    %p256 = scmp.ne.s32.totalorder %s244, %s245
    %p257 = scmp.eq.s32.totalorder %s36, 1
    %p258 = por %p256, %p257
    %p260 = scmp.ne.s32.totalorder %s245, %s259
    %p261 = scmp.eq.s32.totalorder %s36, 0
    %p262 = por %p260, %p261
    %s264 = sadd.s32 %s263, 1
    %p267 = scmp.eq.s32.totalorder %s30, 1
    %p268 = scmp.ne.s32.totalorder %s263, %s265
    %p269 = scmp.eq.s32.totalorder %s30, 0
    %p270 = por %p268, %p269
    %p271 = scmp.ne.s32.totalorder %s263, %s265
    %p272 = scmp.eq.s32.totalorder %s35, 1
    %p273 = por %p271, %p272
    %p274 = scmp.ne.s32.totalorder %s265, %s266
    %p275 = scmp.eq.s32.totalorder %s35, 0
    %p276 = por %p274, %p275
    %p277 = scmp.ne.s32.totalorder %s265, %s266
    %p278 = scmp.eq.s32.totalorder %s36, 1
    %p279 = por %p277, %p278
    %p281 = scmp.ne.s32.totalorder %s266, %s280
    %p282 = scmp.eq.s32.totalorder %s36, 0
    %p283 = por %p281, %p282
    %s285 = sadd.s32 %s284, 1
    %p288 = scmp.eq.s32.totalorder %s30, 1
    %p289 = scmp.ne.s32.totalorder %s284, %s286
    %p290 = scmp.eq.s32.totalorder %s30, 0
    %p291 = por %p289, %p290
    %p292 = scmp.ne.s32.totalorder %s284, %s286
    %p293 = scmp.eq.s32.totalorder %s35, 1
    %p294 = por %p292, %p293
    %p295 = scmp.ne.s32.totalorder %s286, %s287
    %p296 = scmp.eq.s32.totalorder %s35, 0
    %p297 = por %p295, %p296
    %p298 = scmp.ne.s32.totalorder %s286, %s287
    %p299 = scmp.eq.s32.totalorder %s36, 1
    %p300 = por %p298, %p299
    %p302 = scmp.ne.s32.totalorder %s287, %s301
    %p303 = scmp.eq.s32.totalorder %s36, 0
    %p304 = por %p302, %p303
    %s306 = sadd.s32 %s305, 1
    %p309 = scmp.eq.s32.totalorder %s30, 1
    %p310 = scmp.ne.s32.totalorder %s305, %s307
    %p311 = scmp.eq.s32.totalorder %s30, 0
    %p312 = por %p310, %p311
    %p313 = scmp.ne.s32.totalorder %s305, %s307
    %p314 = scmp.eq.s32.totalorder %s35, 1
    %p315 = por %p313, %p314
    %p316 = scmp.ne.s32.totalorder %s307, %s308
    %p317 = scmp.eq.s32.totalorder %s35, 0
    %p318 = por %p316, %p317
    %p319 = scmp.ne.s32.totalorder %s307, %s308
    %p320 = scmp.eq.s32.totalorder %s36, 1
    %p321 = por %p319, %p320
    %p323 = scmp.ne.s32.totalorder %s308, %s322
    %p324 = scmp.eq.s32.totalorder %s36, 0
    %p325 = por %p323, %p324
    %s327 = sadd.s32 %s326, 1
    %p330 = scmp.eq.s32.totalorder %s30, 1
    %p331 = scmp.ne.s32.totalorder %s326, %s328
    %p332 = scmp.eq.s32.totalorder %s30, 0
    %p333 = por %p331, %p332
    %p334 = scmp.ne.s32.totalorder %s326, %s328
    %p335 = scmp.eq.s32.totalorder %s35, 1
    %p336 = por %p334, %p335
    %p337 = scmp.ne.s32.totalorder %s328, %s329
    %p338 = scmp.eq.s32.totalorder %s35, 0
    %p339 = por %p337, %p338
    %p340 = scmp.ne.s32.totalorder %s328, %s329
    %p341 = scmp.eq.s32.totalorder %s36, 1
    %p342 = por %p340, %p341
    %p344 = scmp.ne.s32.totalorder %s329, %s343
    %p345 = scmp.eq.s32.totalorder %s36, 0
    %p346 = por %p344, %p345
    %s348 = sadd.s32 %s347, 1
    %p351 = scmp.eq.s32.totalorder %s30, 1
    %p352 = scmp.ne.s32.totalorder %s347, %s349
    %p353 = scmp.eq.s32.totalorder %s30, 0
    %p354 = por %p352, %p353
    %p355 = scmp.ne.s32.totalorder %s347, %s349
    %p356 = scmp.eq.s32.totalorder %s35, 1
    %p357 = por %p355, %p356
    %p358 = scmp.ne.s32.totalorder %s349, %s350
    %p359 = scmp.eq.s32.totalorder %s35, 0
    %p360 = por %p358, %p359
    %p361 = scmp.ne.s32.totalorder %s349, %s350
    %p362 = scmp.eq.s32.totalorder %s36, 1
    %p363 = por %p361, %p362
    %p365 = scmp.ne.s32.totalorder %s350, %s364
    %p366 = scmp.eq.s32.totalorder %s36, 0
    %p367 = por %p365, %p366
    %s369 = sadd.s32 %s368, 1
    %p372 = scmp.eq.s32.totalorder %s30, 1
    %p373 = scmp.ne.s32.totalorder %s368, %s370
    %p374 = scmp.eq.s32.totalorder %s30, 0
    %p375 = por %p373, %p374
    %p376 = scmp.ne.s32.totalorder %s368, %s370
    %p377 = scmp.eq.s32.totalorder %s35, 1
    %p378 = por %p376, %p377
    %p379 = scmp.ne.s32.totalorder %s370, %s371
    %p380 = scmp.eq.s32.totalorder %s35, 0
    %p381 = por %p379, %p380
    %p382 = scmp.ne.s32.totalorder %s370, %s371
    %p383 = scmp.eq.s32.totalorder %s36, 1
    %p384 = por %p382, %p383
    %p386 = scmp.ne.s32.totalorder %s371, %s385
    %p387 = scmp.eq.s32.totalorder %s36, 0
    %p388 = por %p386, %p387
    %s390 = sadd.s32 %s389, 1
    %p393 = scmp.eq.s32.totalorder %s30, 1
    %p394 = scmp.ne.s32.totalorder %s389, %s391
    %p395 = scmp.eq.s32.totalorder %s30, 0
    %p396 = por %p394, %p395
    %p397 = scmp.ne.s32.totalorder %s389, %s391
    %p398 = scmp.eq.s32.totalorder %s35, 1
    %p399 = por %p397, %p398
    %p400 = scmp.ne.s32.totalorder %s391, %s392
    %p401 = scmp.eq.s32.totalorder %s35, 0
    %p402 = por %p400, %p401
    %p403 = scmp.ne.s32.totalorder %s391, %s392
    %p404 = scmp.eq.s32.totalorder %s36, 1
    %p405 = por %p403, %p404
    %p407 = scmp.ne.s32.totalorder %s392, %s406
    %p408 = scmp.eq.s32.totalorder %s36, 0
    %p409 = por %p407, %p408
    %s411 = sadd.s32 %s410, 1
    %p414 = scmp.eq.s32.totalorder %s30, 1
    %p415 = scmp.ne.s32.totalorder %s410, %s412
    %p416 = scmp.eq.s32.totalorder %s30, 0
    %p417 = por %p415, %p416
    %p418 = scmp.ne.s32.totalorder %s410, %s412
    %p419 = scmp.eq.s32.totalorder %s35, 1
    %p420 = por %p418, %p419
    %p421 = scmp.ne.s32.totalorder %s412, %s413
    %p422 = scmp.eq.s32.totalorder %s35, 0
    %p423 = por %p421, %p422
    %p424 = scmp.ne.s32.totalorder %s412, %s413
    %p425 = scmp.eq.s32.totalorder %s36, 1
    %p426 = por %p424, %p425
    %p428 = scmp.ne.s32.totalorder %s413, %s427
    %p429 = scmp.eq.s32.totalorder %s36, 0
    %p430 = por %p428, %p429
    %s432 = sadd.s32 %s431, 1
    %p435 = scmp.eq.s32.totalorder %s30, 1
    %p436 = scmp.ne.s32.totalorder %s431, %s433
    %p437 = scmp.eq.s32.totalorder %s30, 0
    %p438 = por %p436, %p437
    %p439 = scmp.ne.s32.totalorder %s431, %s433
    %p440 = scmp.eq.s32.totalorder %s35, 1
    %p441 = por %p439, %p440
    %p442 = scmp.ne.s32.totalorder %s433, %s434
    %p443 = scmp.eq.s32.totalorder %s35, 0
    %p444 = por %p442, %p443
    %p445 = scmp.ne.s32.totalorder %s433, %s434
    %p446 = scmp.eq.s32.totalorder %s36, 1
    %p447 = por %p445, %p446
    %p449 = scmp.ne.s32.totalorder %s434, %s448
    %p450 = scmp.eq.s32.totalorder %s36, 0
    %p451 = por %p449, %p450
    %s453 = sadd.s32 %s452, 1
    %p456 = scmp.eq.s32.totalorder %s30, 1
    %p457 = scmp.ne.s32.totalorder %s452, %s454
    %p458 = scmp.eq.s32.totalorder %s30, 0
    %p459 = por %p457, %p458
    %p460 = scmp.ne.s32.totalorder %s452, %s454
    %p461 = scmp.eq.s32.totalorder %s35, 1
    %p462 = por %p460, %p461
    %p463 = scmp.ne.s32.totalorder %s454, %s455
    %p464 = scmp.eq.s32.totalorder %s35, 0
    %p465 = por %p463, %p464
    %p466 = scmp.ne.s32.totalorder %s454, %s455
    %p467 = scmp.eq.s32.totalorder %s36, 1
    %p468 = por %p466, %p467
    %p470 = scmp.ne.s32.totalorder %s455, %s469
    %p471 = scmp.eq.s32.totalorder %s36, 0
    %p472 = por %p470, %p471
    %s474 = sadd.s32 %s473, 1
    %p477 = scmp.eq.s32.totalorder %s30, 1
    %p478 = scmp.ne.s32.totalorder %s473, %s475
    %p479 = scmp.eq.s32.totalorder %s30, 0
    %p480 = por %p478, %p479
    %p481 = scmp.ne.s32.totalorder %s473, %s475
    %p482 = scmp.eq.s32.totalorder %s35, 1
    %p483 = por %p481, %p482
    %p484 = scmp.ne.s32.totalorder %s475, %s476
    %p485 = scmp.eq.s32.totalorder %s35, 0
    %p486 = por %p484, %p485
    %p487 = scmp.ne.s32.totalorder %s475, %s476
    %p488 = scmp.eq.s32.totalorder %s36, 1
    %p489 = por %p487, %p488
    %p491 = scmp.ne.s32.totalorder %s476, %s490
    %p492 = scmp.eq.s32.totalorder %s36, 0
    %p493 = por %p491, %p492
    %s495 = sadd.s32 %s494, 1
    %p498 = scmp.eq.s32.totalorder %s30, 1
    %p499 = scmp.ne.s32.totalorder %s494, %s496
    %p500 = scmp.eq.s32.totalorder %s30, 0
    %p501 = por %p499, %p500
    %p502 = scmp.ne.s32.totalorder %s494, %s496
    %p503 = scmp.eq.s32.totalorder %s35, 1
    %p504 = por %p502, %p503
    %p505 = scmp.ne.s32.totalorder %s496, %s497
    %p506 = scmp.eq.s32.totalorder %s35, 0
    %p507 = por %p505, %p506
    %p508 = scmp.ne.s32.totalorder %s496, %s497
    %p509 = scmp.eq.s32.totalorder %s36, 1
    %p510 = por %p508, %p509
    %p512 = scmp.ne.s32.totalorder %s497, %s511
    %p513 = scmp.eq.s32.totalorder %s36, 0
    %p514 = por %p512, %p513
    %s516 = sadd.s32 %s515, 1
    %p519 = scmp.eq.s32.totalorder %s30, 1
    %p520 = scmp.ne.s32.totalorder %s515, %s517
    %p521 = scmp.eq.s32.totalorder %s30, 0
    %p522 = por %p520, %p521
    %p523 = scmp.ne.s32.totalorder %s515, %s517
    %p524 = scmp.eq.s32.totalorder %s35, 1
    %p525 = por %p523, %p524
    %p526 = scmp.ne.s32.totalorder %s517, %s518
    %p527 = scmp.eq.s32.totalorder %s35, 0
    %p528 = por %p526, %p527
    %p529 = scmp.ne.s32.totalorder %s517, %s518
    %p530 = scmp.eq.s32.totalorder %s36, 1
    %p531 = por %p529, %p530
    %p533 = scmp.ne.s32.totalorder %s518, %s532
    %p534 = scmp.eq.s32.totalorder %s36, 0
    %p535 = por %p533, %p534
    %s537 = sadd.s32 %s536, 1
    %p540 = scmp.eq.s32.totalorder %s30, 1
    %p541 = scmp.ne.s32.totalorder %s536, %s538
    %p542 = scmp.eq.s32.totalorder %s30, 0
    %p543 = por %p541, %p542
    %p544 = scmp.ne.s32.totalorder %s536, %s538
    %p545 = scmp.eq.s32.totalorder %s35, 1
    %p546 = por %p544, %p545
    %p547 = scmp.ne.s32.totalorder %s538, %s539
    %p548 = scmp.eq.s32.totalorder %s35, 0
    %p549 = por %p547, %p548
    %p550 = scmp.ne.s32.totalorder %s538, %s539
    %p551 = scmp.eq.s32.totalorder %s36, 1
    %p552 = por %p550, %p551
    %p554 = scmp.ne.s32.totalorder %s539, %s553
    %p555 = scmp.eq.s32.totalorder %s36, 0
    %p556 = por %p554, %p555
    %s557 = ssub.s32 %s30, %s37
    %p558 = scmp.eq.s32.totalorder %s557, 0
    %s560 = sadd.s32 %s559, 1
    %s561 = scalar_select %p558, %s559, %s560
    %p564 = pneg %p558
    %p565 = scmp.eq.s32.totalorder %s30, 1
    %p566 = por %p564, %p565
    %p567 = scmp.ne.s32.totalorder %s559, %s562
    %p568 = scmp.eq.s32.totalorder %s30, 0
    %p569 = por %p567, %p568
    %p570 = scmp.ne.s32.totalorder %s559, %s562
    %p571 = scmp.eq.s32.totalorder %s35, 1
    %p572 = por %p570, %p571
    %p573 = scmp.ne.s32.totalorder %s562, %s563
    %p574 = scmp.eq.s32.totalorder %s35, 0
    %p575 = por %p573, %p574
    %p576 = scmp.ne.s32.totalorder %s562, %s563
    %p577 = scmp.eq.s32.totalorder %s36, 1
    %p578 = por %p576, %p577
    %p580 = scmp.ne.s32.totalorder %s563, %s579
    %p581 = scmp.eq.s32.totalorder %s36, 0
    %p582 = por %p580, %p581
    %p583 = scmp.le.s32.totalorder 1, %s30
    %p584 = scmp.lt.s32.totalorder %s30, 3
    %p585 = pnand %p583, %p584
    %p586 = pneg %p585
    // Predicated region
    $region9: #{blip_forward.4} parent=5 // pred_check
      _
    $region10: #{blip_forward.4} parent=5 // pred_check_branch
      %588 = sbr.rel (%p585) target = $region12
    $region11: #{blip_forward.4} parent=5 // pred_region
      %s589 = ssub.s32 %s30, 1
      // Predicated region
      $region13: #{blip_forward.4} parent=11 // pred_check
        %p590 = pneg %p103
      $region14: #{blip_forward.4} parent=11 // pred_check_branch
        %592 = sbr.rel (%p590) target = $region16
      $region15: #{blip_forward.4} parent=11 // pred_region
        _
      $region16: #{blip_forward.4} parent=11 // pred_fallthru
        _
      // Predicated region
      $region17: #{blip_forward.4} parent=11 // pred_check
        %p593 = pneg %p150
      $region18: #{blip_forward.4} parent=11 // pred_check_branch
        %595 = sbr.rel (%p593) target = $region20
      $region19: #{blip_forward.4} parent=11 // pred_region
        _
      $region20: #{blip_forward.4} parent=11 // pred_fallthru
        _
      // Predicated region
      $region21: #{blip_forward.4} parent=11 // pred_check
        %p596 = pneg %p171
      $region22: #{blip_forward.4} parent=11 // pred_check_branch
        %598 = sbr.rel (%p596) target = $region24
      $region23: #{blip_forward.4} parent=11 // pred_region
        _
      $region24: #{blip_forward.4} parent=11 // pred_fallthru
        _
      // Predicated region
      $region25: #{blip_forward.4} parent=11 // pred_check
        %p599 = pneg %p192
      $region26: #{blip_forward.4} parent=11 // pred_check_branch
        %601 = sbr.rel (%p599) target = $region28
      $region27: #{blip_forward.4} parent=11 // pred_region
        _
      $region28: #{blip_forward.4} parent=11 // pred_fallthru
        _
      // Predicated region
      $region29: #{blip_forward.4} parent=11 // pred_check
        %p602 = pneg %p213
      $region30: #{blip_forward.4} parent=11 // pred_check_branch
        %604 = sbr.rel (%p602) target = $region32
      $region31: #{blip_forward.4} parent=11 // pred_region
        _
      $region32: #{blip_forward.4} parent=11 // pred_fallthru
        _
      // Predicated region
      $region33: #{blip_forward.4} parent=11 // pred_check
        %p605 = pneg %p234
      $region34: #{blip_forward.4} parent=11 // pred_check_branch
        %607 = sbr.rel (%p605) target = $region36
      $region35: #{blip_forward.4} parent=11 // pred_region
        _
      $region36: #{blip_forward.4} parent=11 // pred_fallthru
        _
      // Predicated region
      $region37: #{blip_forward.4} parent=11 // pred_check
        %p608 = pneg %p255
      $region38: #{blip_forward.4} parent=11 // pred_check_branch
        %610 = sbr.rel (%p608) target = $region40
      $region39: #{blip_forward.4} parent=11 // pred_region
        _
      $region40: #{blip_forward.4} parent=11 // pred_fallthru
        _
      // Predicated region
      $region41: #{blip_forward.4} parent=11 // pred_check
        %p611 = pneg %p276
      $region42: #{blip_forward.4} parent=11 // pred_check_branch
        %613 = sbr.rel (%p611) target = $region44
      $region43: #{blip_forward.4} parent=11 // pred_region
        _
      $region44: #{blip_forward.4} parent=11 // pred_fallthru
        _
      // Predicated region
      $region45: #{blip_forward.4} parent=11 // pred_check
        %p614 = pneg %p297
      $region46: #{blip_forward.4} parent=11 // pred_check_branch
        %616 = sbr.rel (%p614) target = $region48
      $region47: #{blip_forward.4} parent=11 // pred_region
        _
      $region48: #{blip_forward.4} parent=11 // pred_fallthru
        _
      // Predicated region
      $region49: #{blip_forward.4} parent=11 // pred_check
        %p617 = pneg %p318
      $region50: #{blip_forward.4} parent=11 // pred_check_branch
        %619 = sbr.rel (%p617) target = $region52
      $region51: #{blip_forward.4} parent=11 // pred_region
        _
      $region52: #{blip_forward.4} parent=11 // pred_fallthru
        _
      // Predicated region
      $region53: #{blip_forward.4} parent=11 // pred_check
        %p620 = pneg %p339
      $region54: #{blip_forward.4} parent=11 // pred_check_branch
        %622 = sbr.rel (%p620) target = $region56
      $region55: #{blip_forward.4} parent=11 // pred_region
        _
      $region56: #{blip_forward.4} parent=11 // pred_fallthru
        _
      // Predicated region
      $region57: #{blip_forward.4} parent=11 // pred_check
        %p623 = pneg %p360
      $region58: #{blip_forward.4} parent=11 // pred_check_branch
        %625 = sbr.rel (%p623) target = $region60
      $region59: #{blip_forward.4} parent=11 // pred_region
        _
      $region60: #{blip_forward.4} parent=11 // pred_fallthru
        _
      // Predicated region
      $region61: #{blip_forward.4} parent=11 // pred_check
        %p626 = pneg %p381
      $region62: #{blip_forward.4} parent=11 // pred_check_branch
        %628 = sbr.rel (%p626) target = $region64
      $region63: #{blip_forward.4} parent=11 // pred_region
        _
      $region64: #{blip_forward.4} parent=11 // pred_fallthru
        _
      // Predicated region
      $region65: #{blip_forward.4} parent=11 // pred_check
        %p629 = pneg %p402
      $region66: #{blip_forward.4} parent=11 // pred_check_branch
        %631 = sbr.rel (%p629) target = $region68
      $region67: #{blip_forward.4} parent=11 // pred_region
        _
      $region68: #{blip_forward.4} parent=11 // pred_fallthru
        _
      // Predicated region
      $region69: #{blip_forward.4} parent=11 // pred_check
        %p632 = pneg %p423
      $region70: #{blip_forward.4} parent=11 // pred_check_branch
        %634 = sbr.rel (%p632) target = $region72
      $region71: #{blip_forward.4} parent=11 // pred_region
        _
      $region72: #{blip_forward.4} parent=11 // pred_fallthru
        _
      // Predicated region
      $region73: #{blip_forward.4} parent=11 // pred_check
        %p635 = pneg %p444
      $region74: #{blip_forward.4} parent=11 // pred_check_branch
        %637 = sbr.rel (%p635) target = $region76
      $region75: #{blip_forward.4} parent=11 // pred_region
        _
      $region76: #{blip_forward.4} parent=11 // pred_fallthru
        _
      // Predicated region
      $region77: #{blip_forward.4} parent=11 // pred_check
        %p638 = pneg %p465
      $region78: #{blip_forward.4} parent=11 // pred_check_branch
        %640 = sbr.rel (%p638) target = $region80
      $region79: #{blip_forward.4} parent=11 // pred_region
        _
      $region80: #{blip_forward.4} parent=11 // pred_fallthru
        _
      // Predicated region
      $region81: #{blip_forward.4} parent=11 // pred_check
        %p641 = pneg %p486
      $region82: #{blip_forward.4} parent=11 // pred_check_branch
        %643 = sbr.rel (%p641) target = $region84
      $region83: #{blip_forward.4} parent=11 // pred_region
        _
      $region84: #{blip_forward.4} parent=11 // pred_fallthru
        _
      // Predicated region
      $region85: #{blip_forward.4} parent=11 // pred_check
        %p644 = pneg %p507
      $region86: #{blip_forward.4} parent=11 // pred_check_branch
        %646 = sbr.rel (%p644) target = $region88
      $region87: #{blip_forward.4} parent=11 // pred_region
        _
      $region88: #{blip_forward.4} parent=11 // pred_fallthru
        _
      // Predicated region
      $region89: #{blip_forward.4} parent=11 // pred_check
        %p647 = pneg %p528
      $region90: #{blip_forward.4} parent=11 // pred_check_branch
        %649 = sbr.rel (%p647) target = $region92
      $region91: #{blip_forward.4} parent=11 // pred_region
        _
      $region92: #{blip_forward.4} parent=11 // pred_fallthru
        _
      // Predicated region
      $region93: #{blip_forward.4} parent=11 // pred_check
        %p650 = pneg %p549
      $region94: #{blip_forward.4} parent=11 // pred_check_branch
        %652 = sbr.rel (%p650) target = $region96
      $region95: #{blip_forward.4} parent=11 // pred_region
        _
      $region96: #{blip_forward.4} parent=11 // pred_fallthru
        _
    $region12: #{blip_forward.4} parent=5 // pred_fallthru
      _
    %p653 = scmp.lt.s32.totalorder %s30, 2
    // Predicated region
    $region97: #{blip_forward.4} parent=5 // pred_check
      %p654 = pneg %p653
    $region98: #{blip_forward.4} parent=5 // pred_check_branch
      %656 = sbr.rel (%p654) target = $region100
    $region99: #{blip_forward.4} parent=5 // pred_region
      // Predicated region
      $region101: #{blip_forward.4} parent=99 // pred_check
        %p657 = pneg %p50
      $region102: #{blip_forward.4} parent=99 // pred_check_branch
        %659 = sbr.rel (%p657) target = $region104
      $region103: #{blip_forward.4} parent=99 // pred_region
        %p660 = scmp.lt.s32.totalorder %s30, 1
        %s661 = scalar_select %p660, %s30, 1
        %s662 = smul.addr %s661, 8
        %s663 = scalar_lea.vmem %s0, %s662
      $region104: #{blip_forward.4} parent=99 // pred_fallthru
        _
      // Predicated region
      $region105: #{blip_forward.4} parent=99 // pred_check
        %p664 = pneg %p76
      $region106: #{blip_forward.4} parent=99 // pred_check_branch
        %666 = sbr.rel (%p664) target = $region108
      $region107: #{blip_forward.4} parent=99 // pred_region
        %p667 = scmp.lt.s32.totalorder %s30, 1
        %s668 = scalar_select %p667, %s30, 1
        %s669 = smul.addr %s668, 4
        %s670 = scalar_lea.vmem %s1, %s669
      $region108: #{blip_forward.4} parent=99 // pred_fallthru
        _
      // Predicated region
      $region109: #{blip_forward.4} parent=99 // pred_check
        %p671 = pneg %p123
      $region110: #{blip_forward.4} parent=99 // pred_check_branch
        %673 = sbr.rel (%p671) target = $region112
      $region111: #{blip_forward.4} parent=99 // pred_region
        %p674 = scmp.lt.s32.totalorder %s30, 1
        %s675 = scalar_select %p674, %s30, 1
        %s676 = scalar_lea.vmem %s3, %s675
      $region112: #{blip_forward.4} parent=99 // pred_fallthru
        _
    $region100: #{blip_forward.4} parent=5 // pred_fallthru
      _
    %p677 = scmp.le.s32.totalorder 1, %s30
    %p678 = scmp.lt.s32.totalorder %s30, 3
    %p679 = pnand %p677, %p678
    %p680 = pneg %p679
    // Predicated region
    $region113: #{blip_forward.4} parent=5 // pred_check
      _
    $region114: #{blip_forward.4} parent=5 // pred_check_branch
      %682 = sbr.rel (%p679) target = $region116
    $region115: #{blip_forward.4} parent=5 // pred_region
      %s683 = ssub.s32 %s30, 1
      %p684 = scmp.lt.s32.totalorder %s35, 1
      %s685 = scalar_select %p684, %s35, 1
      %s686 = smul.addr %s685, 8
      %s687 = scalar_lea.vmem %s0, %s686
      %p688 = pneg %p56
      %p689 = pneg %p53
      %p690 = scmp.lt.s32.totalorder %s35, 1
      %s691 = scalar_select %p690, %s35, 1
      %s692 = smul.addr %s691, 4
      %s693 = scalar_lea.vmem %s1, %s692
      %p694 = pneg %p82
      %p695 = pneg %p79
      %p696 = pneg %p103
      %p697 = pneg %p100
      %p698 = scmp.lt.s32.totalorder %s35, 1
      %s699 = scalar_select %p698, %s35, 1
      %s700 = scalar_lea.vmem %s3, %s699
      %p701 = pneg %p129
      %p702 = pneg %p126
      %p703 = pneg %p150
      %p704 = pneg %p147
      %p705 = pneg %p171
      %p706 = pneg %p168
      %p707 = pneg %p192
      %p708 = pneg %p189
      %p709 = pneg %p213
      %p710 = pneg %p210
      %p711 = pneg %p234
      %p712 = pneg %p231
      %p713 = pneg %p255
      %p714 = pneg %p252
      %p715 = pneg %p276
      %p716 = pneg %p273
      %p717 = pneg %p297
      %p718 = pneg %p294
      %p719 = pneg %p318
      %p720 = pneg %p315
      %p721 = pneg %p339
      %p722 = pneg %p336
      %p723 = pneg %p360
      %p724 = pneg %p357
      %p725 = pneg %p381
      %p726 = pneg %p378
      %p727 = pneg %p402
      %p728 = pneg %p399
      %p729 = pneg %p423
      %p730 = pneg %p420
      %p731 = pneg %p444
      %p732 = pneg %p441
      %p733 = pneg %p465
      %p734 = pneg %p462
      %p735 = pneg %p486
      %p736 = pneg %p483
      %p737 = pneg %p507
      %p738 = pneg %p504
      %p739 = pneg %p528
      %p740 = pneg %p525
      %p741 = pneg %p549
      %p742 = pneg %p546
      %p743 = pneg %p575
      %p744 = pneg %p572
      %p745 = scmp.lt.s32.totalorder %s35, 1
      %s746 = scalar_select %p745, %s35, 1
      %s747 = smul.addr %s746, 4
      %s748 = scalar_lea.vmem %s24, %s747
      %p749 = scmp.lt.s32.totalorder %s35, 1
      %s750 = scalar_select %p749, %s35, 1
      %s751 = smul.addr %s750, 8
      %s752 = scalar_lea.vmem %s0, %s751
      %p753 = scmp.lt.s32.totalorder %s35, 1
      %s754 = scalar_select %p753, %s35, 1
      %s755 = smul.addr %s754, 4
      %s756 = scalar_lea.vmem %s1, %s755
      %p757 = scmp.lt.s32.totalorder %s35, 1
      %s758 = scalar_select %p757, %s35, 1
      %s759 = scalar_lea.vmem %s3, %s758
      %p760 = scmp.lt.s32.totalorder %s35, 1
      %s761 = scalar_select %p760, %s35, 1
      %s762 = smul.addr %s761, 4
      %s763 = scalar_lea.vmem %s24, %s762
      %v765 = vld [vmem:[%s752] sm:$0xff]
      %v766 = vld [vmem:[%s2] sm:$0xff]
      %v767 = vld [vmem:[%s759] sm:$0x1]
      %v769 = vperm.slane %v767, 0
      %v771 = vadd.f32 %v766, %v769
      %v772 = vpack.c.bf16 %v765, %v765
      %v773 = vld [vmem:[%s4] sm:$0xff]
      %v774 = vld [vmem:[%s4 + $0x8] sm:$0xf]
      %v775 = vld [vmem:[%s4 + $0xc] sm:$0xff]
      %v776 = vld [vmem:[%s4 + $0x14] sm:$0xf]
      %v777 = vld [vmem:[%s4 + $0x18] sm:$0xff]
      %v778 = vld [vmem:[%s4 + $0x20] sm:$0xf]
      %v779 = vld [vmem:[%s4 + $0x24] sm:$0xff]
      %v780 = vld [vmem:[%s4 + $0x2c] sm:$0xf]
      %v781 = vld [vmem:[%s4 + $0x30] sm:$0xff]
      %v782 = vld [vmem:[%s4 + $0x38] sm:$0xf]
      %v783 = vld [vmem:[%s4 + $0x3c] sm:$0xff]
      %v784 = vld [vmem:[%s4 + $0x44] sm:$0xf]
      %v785 = vld [vmem:[%s4 + $0x48] sm:$0xff]
      %v786 = vld [vmem:[%s4 + $0x50] sm:$0xf]
      %v787 = vld [vmem:[%s4 + $0x54] sm:$0xff]
      %v788 = vld [vmem:[%s4 + $0x5c] sm:$0xf]
      %v789 = vld [vmem:[%s4 + $0x60] sm:$0xff]
      %v790 = vld [vmem:[%s4 + $0x68] sm:$0xf]
      %v791 = vld [vmem:[%s4 + $0x6c] sm:$0xff]
      %v792 = vld [vmem:[%s4 + $0x74] sm:$0xf]
      %v793 = vld [vmem:[%s4 + $0x78] sm:$0xff]
      %v794 = vld [vmem:[%s4 + $0x80] sm:$0xf]
      %v795 = vld [vmem:[%s4 + $0x84] sm:$0xff]
      %v796 = vld [vmem:[%s4 + $0x8c] sm:$0xf]
      %v797 = vld [vmem:[%s4 + $0x90] sm:$0xff]
      %v798 = vld [vmem:[%s4 + $0x98] sm:$0xf]
      %v799 = vld [vmem:[%s4 + $0x9c] sm:$0xff]
      %v800 = vld [vmem:[%s4 + $0xa4] sm:$0xf]
      %v801 = vld [vmem:[%s4 + $0xa8] sm:$0xff]
      %v802 = vld [vmem:[%s4 + $0xb0] sm:$0xf]
      %v803 = vld [vmem:[%s4 + $0xb4] sm:$0xff]
      %v804 = vld [vmem:[%s4 + $0xbc] sm:$0xf]
      %v805 = vld [vmem:[%s5] sm:$0x7]
      %v807 = vperm.slane %v805, 0
      %v808 = vperm.slane %v805, 1
      %v809 = vperm.slane %v805, 2
      %v845 = vunpack.c.l.b16 %v773
      %v846 = vunpack.c.h.b16 %v773
      %v847 = vunpack.c.l.b16 %v774
      %v848 = vunpack.c.l.b16 %v775
      %v849 = vunpack.c.h.b16 %v775
      %v850 = vunpack.c.l.b16 %v776
      %v851 = vunpack.c.l.b16 %v777
      %v852 = vunpack.c.h.b16 %v777
      %v853 = vunpack.c.l.b16 %v778
      %v854 = vunpack.c.l.b16 %v779
      %v855 = vunpack.c.h.b16 %v779
      %v856 = vunpack.c.l.b16 %v780
      %v857 = vunpack.c.l.b16 %v781
      %v858 = vunpack.c.h.b16 %v781
      %v859 = vunpack.c.l.b16 %v782
      %v860 = vunpack.c.l.b16 %v783
      %v861 = vunpack.c.h.b16 %v783
      %v862 = vunpack.c.l.b16 %v784
      %v863 = vunpack.c.l.b16 %v785
      %v864 = vunpack.c.h.b16 %v785
      %v865 = vunpack.c.l.b16 %v786
      %v866 = vunpack.c.l.b16 %v787
      %v867 = vunpack.c.h.b16 %v787
      %v868 = vunpack.c.l.b16 %v788
      %v869 = vunpack.c.l.b16 %v789
      %v870 = vunpack.c.h.b16 %v789
      %v871 = vunpack.c.l.b16 %v790
      %v872 = vunpack.c.l.b16 %v791
      %v873 = vunpack.c.h.b16 %v791
      %v874 = vunpack.c.l.b16 %v792
      %v875 = vunpack.c.l.b16 %v793
      %v876 = vunpack.c.h.b16 %v793
      %v877 = vunpack.c.l.b16 %v794
      %v878 = vunpack.c.l.b16 %v795
      %v879 = vunpack.c.h.b16 %v795
      %v880 = vunpack.c.l.b16 %v796
      %v881 = vunpack.c.l.b16 %v797
      %v882 = vunpack.c.h.b16 %v797
      %v883 = vunpack.c.l.b16 %v798
      %v884 = vunpack.c.l.b16 %v799
      %v885 = vunpack.c.h.b16 %v799
      %v886 = vunpack.c.l.b16 %v800
      %v887 = vunpack.c.l.b16 %v801
      %v888 = vunpack.c.h.b16 %v801
      %v889 = vunpack.c.l.b16 %v802
      %v890 = vunpack.c.l.b16 %v803
      %v891 = vunpack.c.h.b16 %v803
      %v892 = vunpack.c.l.b16 %v804
      %v893 = vpack.c.b16 %v848, %v845
      %v894 = vpack.c.b16 %v849, %v846
      %v895 = vpack.c.b16 %v850, %v847
      %v896 = vpack.c.b16 %v854, %v851
      %v897 = vpack.c.b16 %v855, %v852
      %v898 = vpack.c.b16 %v856, %v853
      %v899 = vpack.c.b16 %v860, %v857
      %v900 = vpack.c.b16 %v861, %v858
      %v901 = vpack.c.b16 %v862, %v859
      %v902 = vpack.c.b16 %v866, %v863
      %v903 = vpack.c.b16 %v867, %v864
      %v904 = vpack.c.b16 %v868, %v865
      %v905 = vpack.c.b16 %v872, %v869
      %v906 = vpack.c.b16 %v873, %v870
      %v907 = vpack.c.b16 %v874, %v871
      %v908 = vpack.c.b16 %v878, %v875
      %v909 = vpack.c.b16 %v879, %v876
      %v910 = vpack.c.b16 %v880, %v877
      %v911 = vpack.c.b16 %v884, %v881
      %v912 = vpack.c.b16 %v885, %v882
      %v913 = vpack.c.b16 %v886, %v883
      %v914 = vpack.c.b16 %v890, %v887
      %v915 = vpack.c.b16 %v891, %v888
      %v916 = vpack.c.b16 %v892, %v889
      %941 = vmatpush.bf16.msra.mxu0 %v914
      %942 = vmatpush.bf16.msra.mxu0 %v911
      %943 = vmatpush.bf16.msra.mxu0 %v908
      %944 = vmatpush.bf16.msra.mxu0 %v905
      %945 = vmatpush.bf16.msra.mxu0 %v902
      %946 = vmatpush.bf16.msra.mxu0 %v899
      %947 = vmatpush.bf16.msra.mxu0 %v896
      %948 = vmatpush.bf16.msra.mxu0 %v893
      %949 = vmatmul.bf16.gmra.mxu0 %v772
      %v950 = vpop.f32.mrf.mxu0
      %v951 = vadd.f32 %v807, %v950
      %v952 = vpop.f32.mrf.mxu0
      %953 = vdwg.mxu0
      %954 = vmatpush.bf16.msra.mxu0 %v915
      %955 = vmatpush.bf16.msra.mxu0 %v912
      %956 = vmatpush.bf16.msra.mxu0 %v909
      %957 = vmatpush.bf16.msra.mxu0 %v906
      %958 = vmatpush.bf16.msra.mxu0 %v903
      %959 = vmatpush.bf16.msra.mxu0 %v900
      %960 = vmatpush.bf16.msra.mxu0 %v897
      %961 = vmatpush.bf16.msra.mxu0 %v894
      %962 = vmatmul.bf16.gmra.mxu0 %v772
      %v963 = vpop.f32.mrf.mxu0
      %v964 = vadd.f32 %v808, %v963
      %v965 = vpop.f32.mrf.mxu0
      %966 = vdwg.mxu0
      %967 = vmatpush.bf16.msra.mxu0 %v916
      %968 = vmatpush.bf16.msra.mxu0 %v913
      %969 = vmatpush.bf16.msra.mxu0 %v910
      %970 = vmatpush.bf16.msra.mxu0 %v907
      %971 = vmatpush.bf16.msra.mxu0 %v904
      %972 = vmatpush.bf16.msra.mxu0 %v901
      %973 = vmatpush.bf16.msra.mxu0 %v898
      %974 = vmatpush.bf16.msra.mxu0 %v895
      %975 = vmatmul.bf16.gmra.mxu0 %v772
      %v976 = vpop.f32.mrf.mxu0
      %v977 = vadd.f32 %v809, %v976
      %v978 = vpop.f32.mrf.mxu0
      %979 = vdwg.mxu0
      %v980 = vpack.c.bf16 %v951, %v951
      %v981 = vpack.c.bf16 %v964, %v964
      %v982 = vpack.c.bf16 %v977, %v977
      %vm983 = vcmask 261120
      %v985 = vsel %vm983, %v980, 0
      %v988 = vsel %vm983, %v981, 0
      %990 = vmatpush.bf16.xpose.msra.mxu0 0
      %991 = vmatpush.bf16.xpose.msra.mxu0 0
      %992 = vmatpush.bf16.xpose.msra.mxu0 0
      %993 = vmatpush.bf16.xpose.msra.mxu0 0
      %994 = vmatpush.bf16.xpose.msra.mxu0 0
      %995 = vmatpush.bf16.xpose.msra.mxu0 0
      %996 = vmatpush.bf16.xpose.msra.mxu0 0
      %997 = vmatpush.bf16.xpose.msra.mxu0 %v988
      %998 = vmatmul.bf16.gmra.mxu0 %v985
      %v999 = vpop.f32.mrf.mxu0
      %v1000 = vadd.f32 0.0, %v999
      %v1001 = vpop.f32.mrf.mxu0
      %1002 = vdwg.mxu0
      %v1004 = vunpack.c.l.b16 %v980
      %v1005 = vpack.c.b16 %v1004, %v1004
      %1006 = vrot.lane.b32.xlu0 %v1005, 96
      %v1007 = vpop.permute.xlu0 %1006
      %v1009 = vunpack.c.l.b16 %v981
      %v1010 = vpack.c.b16 %v1009, %v1009
      %1011 = vrot.lane.b32.xlu0 %v1010, 96
      %v1012 = vpop.permute.xlu0 %1011
      %v1014 = vsel %vm983, %v1007, 0
      %v1017 = vsel %vm983, %v1012, 0
      %1019 = vmatpush.bf16.xpose.msra.mxu0 0
      %1020 = vmatpush.bf16.xpose.msra.mxu0 0
      %1021 = vmatpush.bf16.xpose.msra.mxu0 0
      %1022 = vmatpush.bf16.xpose.msra.mxu0 0
      %1023 = vmatpush.bf16.xpose.msra.mxu0 0
      %1024 = vmatpush.bf16.xpose.msra.mxu0 0
      %1025 = vmatpush.bf16.xpose.msra.mxu0 0
      %1026 = vmatpush.bf16.xpose.msra.mxu0 %v1017
      %1027 = vmatmul.bf16.gmra.mxu0 %v1014
      %v1028 = vpop.f32.mrf.mxu0
      %v1029 = vadd.f32 0.0, %v1028
      %v1030 = vpop.f32.mrf.mxu0
      %1031 = vdwg.mxu0
      %1032 = vrot.lane.b32.xlu0 %v1005, 64
      %v1033 = vpop.permute.xlu0 %1032
      %1034 = vrot.lane.b32.xlu0 %v1010, 64
      %v1035 = vpop.permute.xlu0 %1034
      %v1037 = vsel %vm983, %v1033, 0
      %v1040 = vsel %vm983, %v1035, 0
      %1042 = vmatpush.bf16.xpose.msra.mxu0 0
      %1043 = vmatpush.bf16.xpose.msra.mxu0 0
      %1044 = vmatpush.bf16.xpose.msra.mxu0 0
      %1045 = vmatpush.bf16.xpose.msra.mxu0 0
      %1046 = vmatpush.bf16.xpose.msra.mxu0 0
      %1047 = vmatpush.bf16.xpose.msra.mxu0 0
      %1048 = vmatpush.bf16.xpose.msra.mxu0 0
      %1049 = vmatpush.bf16.xpose.msra.mxu0 %v1040
      %1050 = vmatmul.bf16.gmra.mxu0 %v1037
      %v1051 = vpop.f32.mrf.mxu0
      %v1052 = vadd.f32 0.0, %v1051
      %v1053 = vpop.f32.mrf.mxu0
      %1054 = vdwg.mxu0
      %1055 = vrot.lane.b32.xlu0 %v1005, 32
      %v1056 = vpop.permute.xlu0 %1055
      %1057 = vrot.lane.b32.xlu0 %v1010, 32
      %v1058 = vpop.permute.xlu0 %1057
      %v1060 = vsel %vm983, %v1056, 0
      %v1063 = vsel %vm983, %v1058, 0
      %1065 = vmatpush.bf16.xpose.msra.mxu0 0
      %1066 = vmatpush.bf16.xpose.msra.mxu0 0
      %1067 = vmatpush.bf16.xpose.msra.mxu0 0
      %1068 = vmatpush.bf16.xpose.msra.mxu0 0
      %1069 = vmatpush.bf16.xpose.msra.mxu0 0
      %1070 = vmatpush.bf16.xpose.msra.mxu0 0
      %1071 = vmatpush.bf16.xpose.msra.mxu0 0
      %1072 = vmatpush.bf16.xpose.msra.mxu0 %v1063
      %1073 = vmatmul.bf16.gmra.mxu0 %v1060
      %v1074 = vpop.f32.mrf.mxu0
      %v1075 = vadd.f32 0.0, %v1074
      %v1076 = vpop.f32.mrf.mxu0
      %1077 = vdwg.mxu0
      %v1078 = vmul.f32 %v1000, 0.17677669
      %v1079 = vmul.f32 %v1029, 0.17677669
      %v1080 = vmul.f32 %v1052, 0.17677669
      %v1081 = vmul.f32 %v1075, 0.17677669
      %v1082 = vadd.f32 %v1078, %v771
      %v1083 = vadd.f32 %v1079, %v771
      %v1084 = vadd.f32 %v1080, %v771
      %v1085 = vadd.f32 %v1081, %v771
      %vm1086 = vcmask 64512
      %v1087 = vsel %vm1086, %v1082, -inf
      %1088 = vmax.xlane.f32.xlu0 %v1087
      %v1089 = vpop.xlane.xlu0 %1088
      %v1090 = vsel %vm1086, %v1083, -inf
      %1091 = vmax.xlane.f32.xlu0 %v1090
      %v1092 = vpop.xlane.xlu0 %1091
      %v1093 = vsel %vm1086, %v1084, -inf
      %1094 = vmax.xlane.f32.xlu0 %v1093
      %v1095 = vpop.xlane.xlu0 %1094
      %v1096 = vsel %vm1086, %v1085, -inf
      %1097 = vmax.xlane.f32.xlu0 %v1096
      %v1098 = vpop.xlane.xlu0 %1097
      %v1099 = vsub.f32 %v1082, %v1089
      %v1100 = vsub.f32 %v1083, %v1092
      %v1101 = vsub.f32 %v1084, %v1095
      %v1102 = vsub.f32 %v1085, %v1098
      %v1103 = vmul.f32 %v1099, 1.442695
      %v1104 = vpow.pop %v1103
      %v1105 = vmul.f32 %v1100, 1.442695
      %v1106 = vpow.pop %v1105
      %v1107 = vmul.f32 %v1101, 1.442695
      %v1108 = vpow.pop %v1107
      %v1109 = vmul.f32 %v1102, 1.442695
      %v1110 = vpow.pop %v1109
      %v1111 = vsel %vm1086, %v1104, 0.0
      %1112 = vadd.xlane.f32.xlu0 %v1111
      %v1113 = vpop.xlane.xlu0 %1112
      %v1114 = vsel %vm1086, %v1106, 0.0
      %1115 = vadd.xlane.f32.xlu0 %v1114
      %v1116 = vpop.xlane.xlu0 %1115
      %v1117 = vsel %vm1086, %v1108, 0.0
      %1118 = vadd.xlane.f32.xlu0 %v1117
      %v1119 = vpop.xlane.xlu0 %1118
      %v1120 = vsel %vm1086, %v1110, 0.0
      %1121 = vadd.xlane.f32.xlu0 %v1120
      %v1122 = vpop.xlane.xlu0 %1121
      %v1123 = vrcp.pop %v1113
      %v1124 = vrcp.pop %v1116
      %v1125 = vrcp.pop %v1119
      %v1126 = vrcp.pop %v1122
      %v1127 = vmul.f32 %v1104, %v1123
      %v1128 = vmul.f32 %v1106, %v1124
      %v1129 = vmul.f32 %v1108, %v1125
      %v1130 = vmul.f32 %v1110, %v1126
      %v1131 = vpack.c.bf16 %v1127, %v1127
      %v1132 = vpack.c.bf16 %v1128, %v1128
      %v1133 = vpack.c.bf16 %v1129, %v1129
      %v1134 = vpack.c.bf16 %v1130, %v1130
      %v1136 = vsel %vm1086, %v1131, 0
      %vm1138 = vcmask 1043456
      %v1140 = vsel %vm1138, %v982, 0
      %1142 = vmatpush.bf16.msra.mxu0 0
      %1143 = vmatpush.bf16.msra.mxu0 0
      %1144 = vmatpush.bf16.msra.mxu0 0
      %1145 = vmatpush.bf16.msra.mxu0 0
      %1146 = vmatpush.bf16.msra.mxu0 0
      %1147 = vmatpush.bf16.msra.mxu0 0
      %1148 = vmatpush.bf16.msra.mxu0 0
      %1149 = vmatpush.bf16.msra.mxu0 %v1140
      %1150 = vmatmul.bf16.gmra.mxu0 %v1136
      %v1151 = vpop.f32.mrf.mxu0
      %v1152 = vadd.f32 0.0, %v1151
      %v1153 = vpop.f32.mrf.mxu0
      %1154 = vdwg.mxu0
      %1155 = vst.msk [vmem:[#allocation2] sm:$0xff] %vm983, %v1152
      %v1157 = vunpack.c.l.b16 %v982
      %v1158 = vpack.c.b16 %v1157, %v1157
      %1159 = vrot.lane.b32.xlu0 %v1158, 96
      %v1160 = vpop.permute.xlu0 %1159
      %v1162 = vsel %vm1086, %v1132, 0
      %v1165 = vsel %vm1138, %v1160, 0
      %1167 = vmatpush.bf16.msra.mxu0 0
      %1168 = vmatpush.bf16.msra.mxu0 0
      %1169 = vmatpush.bf16.msra.mxu0 0
      %1170 = vmatpush.bf16.msra.mxu0 0
      %1171 = vmatpush.bf16.msra.mxu0 0
      %1172 = vmatpush.bf16.msra.mxu0 0
      %1173 = vmatpush.bf16.msra.mxu0 0
      %1174 = vmatpush.bf16.msra.mxu0 %v1165
      %1175 = vmatmul.bf16.gmra.mxu0 %v1162
      %v1176 = vpop.f32.mrf.mxu0
      %v1177 = vadd.f32 0.0, %v1176
      %v1178 = vpop.f32.mrf.mxu0
      %1179 = vdwg.mxu0
      %1181 = vrot.lane.b32.xlu0 %v1177, 32
      %v1182 = vpop.permute.xlu0 %1181
      %vm1184 = vcmask 523520
      %1185 = vst.msk [vmem:[#allocation2] sm:$0xff] %vm1184, %v1182
      %1186 = vrot.lane.b32.xlu0 %v1158, 64
      %v1187 = vpop.permute.xlu0 %1186
      %v1189 = vsel %vm1086, %v1133, 0
      %v1192 = vsel %vm1138, %v1187, 0
      %1194 = vmatpush.bf16.msra.mxu0 0
      %1195 = vmatpush.bf16.msra.mxu0 0
      %1196 = vmatpush.bf16.msra.mxu0 0
      %1197 = vmatpush.bf16.msra.mxu0 0
      %1198 = vmatpush.bf16.msra.mxu0 0
      %1199 = vmatpush.bf16.msra.mxu0 0
      %1200 = vmatpush.bf16.msra.mxu0 0
      %1201 = vmatpush.bf16.msra.mxu0 %v1192
      %1202 = vmatmul.bf16.gmra.mxu0 %v1189
      %v1203 = vpop.f32.mrf.mxu0
      %v1204 = vadd.f32 0.0, %v1203
      %v1205 = vpop.f32.mrf.mxu0
      %1206 = vdwg.mxu0
      %1208 = vrot.lane.b32.xlu0 %v1204, 64
      %v1209 = vpop.permute.xlu0 %1208
      %vm1211 = vcmask 785920
      %1212 = vst.msk [vmem:[#allocation2] sm:$0xff] %vm1211, %v1209
      %1213 = vrot.lane.b32.xlu0 %v1158, 32
      %v1214 = vpop.permute.xlu0 %1213
      %v1216 = vsel %vm1086, %v1134, 0
      %v1219 = vsel %vm1138, %v1214, 0
      %1221 = vmatpush.bf16.msra.mxu0 0
      %1222 = vmatpush.bf16.msra.mxu0 0
      %1223 = vmatpush.bf16.msra.mxu0 0
      %1224 = vmatpush.bf16.msra.mxu0 0
      %1225 = vmatpush.bf16.msra.mxu0 0
      %1226 = vmatpush.bf16.msra.mxu0 0
      %1227 = vmatpush.bf16.msra.mxu0 0
      %1228 = vmatpush.bf16.msra.mxu0 %v1219
      %1229 = vmatmul.bf16.gmra.mxu0 %v1216
      %v1230 = vpop.f32.mrf.mxu0
      %v1231 = vadd.f32 0.0, %v1230
      %v1232 = vpop.f32.mrf.mxu0
      %1233 = vdwg.mxu0
      %1235 = vrot.lane.b32.xlu0 %v1231, 96
      %v1236 = vpop.permute.xlu0 %1235
      %vm1238 = vcmask 1048320
      %1239 = vst.msk [vmem:[#allocation2] sm:$0xff] %vm1238, %v1236
      %v1240 = vld [vmem:[#allocation2] sm:$0xff]
      %v1241 = vpack.c.bf16 %v1240, %v1240
      %v1242 = vld [vmem:[%s6] sm:$0xf]
      %v1243 = vld [vmem:[%s6 + $0x4] sm:$0xf]
      %v1244 = vld [vmem:[%s6 + $0x8] sm:$0xf]
      %v1245 = vld [vmem:[%s6 + $0xc] sm:$0xf]
      %v1246 = vld [vmem:[%s6 + $0x10] sm:$0xf]
      %v1247 = vld [vmem:[%s6 + $0x14] sm:$0xf]
      %v1248 = vld [vmem:[%s6 + $0x18] sm:$0xf]
      %v1249 = vld [vmem:[%s6 + $0x1c] sm:$0xf]
      %v1250 = vld [vmem:[%s6 + $0x20] sm:$0xf]
      %v1251 = vld [vmem:[%s6 + $0x24] sm:$0xf]
      %v1252 = vld [vmem:[%s6 + $0x28] sm:$0xf]
      %v1253 = vld [vmem:[%s6 + $0x2c] sm:$0xf]
      %v1254 = vld [vmem:[%s6 + $0x30] sm:$0xf]
      %v1255 = vld [vmem:[%s6 + $0x34] sm:$0xf]
      %v1256 = vld [vmem:[%s6 + $0x38] sm:$0xf]
      %v1257 = vld [vmem:[%s6 + $0x3c] sm:$0xf]
      %v1258 = vld [vmem:[%s7] sm:$0x1]
      %v1260 = vperm.slane %v1258, 0
      %v1278 = vunpack.c.l.b16 %v1242
      %v1279 = vunpack.c.l.b16 %v1243
      %v1280 = vunpack.c.l.b16 %v1244
      %v1281 = vunpack.c.l.b16 %v1245
      %v1282 = vunpack.c.l.b16 %v1246
      %v1283 = vunpack.c.l.b16 %v1247
      %v1284 = vunpack.c.l.b16 %v1248
      %v1285 = vunpack.c.l.b16 %v1249
      %v1286 = vunpack.c.l.b16 %v1250
      %v1287 = vunpack.c.l.b16 %v1251
      %v1288 = vunpack.c.l.b16 %v1252
      %v1289 = vunpack.c.l.b16 %v1253
      %v1290 = vunpack.c.l.b16 %v1254
      %v1291 = vunpack.c.l.b16 %v1255
      %v1292 = vunpack.c.l.b16 %v1256
      %v1293 = vunpack.c.l.b16 %v1257
      %v1294 = vpack.c.b16 %v1279, %v1278
      %v1295 = vpack.c.b16 %v1281, %v1280
      %v1296 = vpack.c.b16 %v1283, %v1282
      %v1297 = vpack.c.b16 %v1285, %v1284
      %v1298 = vpack.c.b16 %v1287, %v1286
      %v1299 = vpack.c.b16 %v1289, %v1288
      %v1300 = vpack.c.b16 %v1291, %v1290
      %v1301 = vpack.c.b16 %v1293, %v1292
      %1310 = vmatpush.bf16.msra.mxu0 %v1301
      %1311 = vmatpush.bf16.msra.mxu0 %v1300
      %1312 = vmatpush.bf16.msra.mxu0 %v1299
      %1313 = vmatpush.bf16.msra.mxu0 %v1298
      %1314 = vmatpush.bf16.msra.mxu0 %v1297
      %1315 = vmatpush.bf16.msra.mxu0 %v1296
      %1316 = vmatpush.bf16.msra.mxu0 %v1295
      %1317 = vmatpush.bf16.msra.mxu0 %v1294
      %1318 = vmatmul.bf16.gmra.mxu0 %v1241
      %v1319 = vpop.f32.mrf.mxu0
      %v1320 = vadd.f32 %v1260, %v1319
      %v1321 = vpop.f32.mrf.mxu0
      %1322 = vdwg.mxu0
      %v1323 = vadd.f32 %v765, %v1320
      %v1324 = vld [vmem:[%s8] sm:$0x1]
      %v1325 = vld [vmem:[%s9] sm:$0x1]
      %1326 = vadd.xlane.f32.xlu0 %v1323
      %v1327 = vpop.xlane.xlu0 %1326
      %v1328 = vrcp.pop 128.0
      %v1329 = vmul.f32 128.0, %v1328
      %v1330 = vsub.f32 1.0, %v1329
      %v1331 = vmul.f32 %v1328, %v1330
      %v1332 = vadd.f32 %v1328, %v1331
      %vm1333 = vweird.f32 %v1328
      %v1334 = vsel %vm1333, %v1328, %v1332
      %v1335 = vmul.f32 %v1327, %v1334
      %v1336 = vsub.f32 %v1323, %v1335
      %v1337 = vmul.f32 %v1336, %v1336
      %1338 = vadd.xlane.f32.xlu0 %v1337
      %v1339 = vpop.xlane.xlu0 %1338
      %v1340 = vmul.f32 %v1339, %v1334
      %v1341 = vadd.f32 %v1340, 1e-05
      %v1342 = vrsqrt.pop %v1341
      %v1343 = vmul.f32 %v1342, %v1341
      %v1344 = vmul.f32 %v1343, %v1342
      %v1345 = vmul.f32 0.5, %v1344
      %v1346 = vsub.f32 1.5, %v1345
      %v1347 = vmul.f32 %v1342, %v1346
      %vm1348 = vweird.f32 %v1341
      %vm1349 = vweird.f32 %v1342
      %vm1350 = vmor %vm1348, %vm1349
      %v1351 = vsel %vm1350, %v1342, %v1347
      %v1352 = vmul.f32 %v1336, %v1351
      %v1354 = vperm.slane %v1324, 0
      %v1356 = vmul.f32 %v1352, %v1354
      %v1358 = vperm.slane %v1325, 0
      %v1360 = vadd.f32 %v1356, %v1358
      %v1361 = vpack.c.bf16 %v1360, %v1360
      %v1362 = vld [vmem:[%s10] sm:$0xf]
      %v1363 = vld [vmem:[%s10 + $0x4] sm:$0xf]
      %v1364 = vld [vmem:[%s10 + $0x8] sm:$0xf]
      %v1365 = vld [vmem:[%s10 + $0xc] sm:$0xf]
      %v1366 = vld [vmem:[%s10 + $0x10] sm:$0xf]
      %v1367 = vld [vmem:[%s10 + $0x14] sm:$0xf]
      %v1368 = vld [vmem:[%s10 + $0x18] sm:$0xf]
      %v1369 = vld [vmem:[%s10 + $0x1c] sm:$0xf]
      %v1370 = vld [vmem:[%s10 + $0x20] sm:$0xf]
      %v1371 = vld [vmem:[%s10 + $0x24] sm:$0xf]
      %v1372 = vld [vmem:[%s10 + $0x28] sm:$0xf]
      %v1373 = vld [vmem:[%s10 + $0x2c] sm:$0xf]
      %v1374 = vld [vmem:[%s10 + $0x30] sm:$0xf]
      %v1375 = vld [vmem:[%s10 + $0x34] sm:$0xf]
      %v1376 = vld [vmem:[%s10 + $0x38] sm:$0xf]
      %v1377 = vld [vmem:[%s10 + $0x3c] sm:$0xf]
      %v1378 = vld [vmem:[%s11] sm:$0x1]
      %v1380 = vperm.slane %v1378, 0
      %v1398 = vunpack.c.l.b16 %v1362
      %v1399 = vunpack.c.l.b16 %v1363
      %v1400 = vunpack.c.l.b16 %v1364
      %v1401 = vunpack.c.l.b16 %v1365
      %v1402 = vunpack.c.l.b16 %v1366
      %v1403 = vunpack.c.l.b16 %v1367
      %v1404 = vunpack.c.l.b16 %v1368
      %v1405 = vunpack.c.l.b16 %v1369
      %v1406 = vunpack.c.l.b16 %v1370
      %v1407 = vunpack.c.l.b16 %v1371
      %v1408 = vunpack.c.l.b16 %v1372
      %v1409 = vunpack.c.l.b16 %v1373
      %v1410 = vunpack.c.l.b16 %v1374
      %v1411 = vunpack.c.l.b16 %v1375
      %v1412 = vunpack.c.l.b16 %v1376
      %v1413 = vunpack.c.l.b16 %v1377
      %v1414 = vpack.c.b16 %v1399, %v1398
      %v1415 = vpack.c.b16 %v1401, %v1400
      %v1416 = vpack.c.b16 %v1403, %v1402
      %v1417 = vpack.c.b16 %v1405, %v1404
      %v1418 = vpack.c.b16 %v1407, %v1406
      %v1419 = vpack.c.b16 %v1409, %v1408
      %v1420 = vpack.c.b16 %v1411, %v1410
      %v1421 = vpack.c.b16 %v1413, %v1412
      %1430 = vmatpush.bf16.msra.mxu0 %v1421
      %1431 = vmatpush.bf16.msra.mxu0 %v1420
      %1432 = vmatpush.bf16.msra.mxu0 %v1419
      %1433 = vmatpush.bf16.msra.mxu0 %v1418
      %1434 = vmatpush.bf16.msra.mxu0 %v1417
      %1435 = vmatpush.bf16.msra.mxu0 %v1416
      %1436 = vmatpush.bf16.msra.mxu0 %v1415
      %1437 = vmatpush.bf16.msra.mxu0 %v1414
      %1438 = vmatmul.bf16.gmra.mxu0 %v1361
      %v1439 = vpop.f32.mrf.mxu0
      %v1440 = vadd.f32 %v1380, %v1439
      %v1441 = vpop.f32.mrf.mxu0
      %1442 = vdwg.mxu0
      %v1443 = vld [vmem:[%s756] sm:$0xf]
      %v1444 = vld [vmem:[%s12] sm:$0xff]
      %v1445 = vld [vmem:[%s12 + $0x8] sm:$0xff]
      %v1446 = vld [vmem:[%s12 + $0x10] sm:$0xff]
      %v1447 = vld [vmem:[%s12 + $0x18] sm:$0xff]
      %v1448 = vld [vmem:[%s12 + $0x20] sm:$0xff]
      %v1449 = vld [vmem:[%s12 + $0x28] sm:$0xff]
      %v1450 = vld [vmem:[%s12 + $0x30] sm:$0xff]
      %v1451 = vld [vmem:[%s12 + $0x38] sm:$0xff]
      %v1452 = vld [vmem:[%s12 + $0x40] sm:$0xff]
      %v1453 = vld [vmem:[%s12 + $0x48] sm:$0xff]
      %v1454 = vld [vmem:[%s12 + $0x50] sm:$0xff]
      %v1455 = vld [vmem:[%s12 + $0x58] sm:$0xff]
      %v1456 = vld [vmem:[%s12 + $0x60] sm:$0xff]
      %v1457 = vld [vmem:[%s12 + $0x68] sm:$0xff]
      %v1458 = vld [vmem:[%s12 + $0x70] sm:$0xff]
      %v1459 = vld [vmem:[%s12 + $0x78] sm:$0xff]
      %v1460 = vld [vmem:[%s13] sm:$0x3]
      %v1462 = vperm.slane %v1460, 0
      %v1463 = vperm.slane %v1460, 1
      %v1482 = vunpack.c.l.b16 %v1444
      %v1483 = vunpack.c.h.b16 %v1444
      %v1484 = vunpack.c.l.b16 %v1445
      %v1485 = vunpack.c.h.b16 %v1445
      %v1486 = vunpack.c.l.b16 %v1446
      %v1487 = vunpack.c.h.b16 %v1446
      %v1488 = vunpack.c.l.b16 %v1447
      %v1489 = vunpack.c.h.b16 %v1447
      %v1490 = vunpack.c.l.b16 %v1448
      %v1491 = vunpack.c.h.b16 %v1448
      %v1492 = vunpack.c.l.b16 %v1449
      %v1493 = vunpack.c.h.b16 %v1449
      %v1494 = vunpack.c.l.b16 %v1450
      %v1495 = vunpack.c.h.b16 %v1450
      %v1496 = vunpack.c.l.b16 %v1451
      %v1497 = vunpack.c.h.b16 %v1451
      %v1498 = vunpack.c.l.b16 %v1452
      %v1499 = vunpack.c.h.b16 %v1452
      %v1500 = vunpack.c.l.b16 %v1453
      %v1501 = vunpack.c.h.b16 %v1453
      %v1502 = vunpack.c.l.b16 %v1454
      %v1503 = vunpack.c.h.b16 %v1454
      %v1504 = vunpack.c.l.b16 %v1455
      %v1505 = vunpack.c.h.b16 %v1455
      %v1506 = vunpack.c.l.b16 %v1456
      %v1507 = vunpack.c.h.b16 %v1456
      %v1508 = vunpack.c.l.b16 %v1457
      %v1509 = vunpack.c.h.b16 %v1457
      %v1510 = vunpack.c.l.b16 %v1458
      %v1511 = vunpack.c.h.b16 %v1458
      %v1512 = vunpack.c.l.b16 %v1459
      %v1513 = vunpack.c.h.b16 %v1459
      %v1514 = vpack.c.b16 %v1484, %v1482
      %v1515 = vpack.c.b16 %v1485, %v1483
      %v1516 = vpack.c.b16 %v1488, %v1486
      %v1517 = vpack.c.b16 %v1489, %v1487
      %v1518 = vpack.c.b16 %v1492, %v1490
      %v1519 = vpack.c.b16 %v1493, %v1491
      %v1520 = vpack.c.b16 %v1496, %v1494
      %v1521 = vpack.c.b16 %v1497, %v1495
      %v1522 = vpack.c.b16 %v1500, %v1498
      %v1523 = vpack.c.b16 %v1501, %v1499
      %v1524 = vpack.c.b16 %v1504, %v1502
      %v1525 = vpack.c.b16 %v1505, %v1503
      %v1526 = vpack.c.b16 %v1508, %v1506
      %v1527 = vpack.c.b16 %v1509, %v1507
      %v1528 = vpack.c.b16 %v1512, %v1510
      %v1529 = vpack.c.b16 %v1513, %v1511
      %1546 = vmatpush.bf16.msra.mxu0 %v1528
      %1547 = vmatpush.bf16.msra.mxu0 %v1526
      %1548 = vmatpush.bf16.msra.mxu0 %v1524
      %1549 = vmatpush.bf16.msra.mxu0 %v1522
      %1550 = vmatpush.bf16.msra.mxu0 %v1520
      %1551 = vmatpush.bf16.msra.mxu0 %v1518
      %1552 = vmatpush.bf16.msra.mxu0 %v1516
      %1553 = vmatpush.bf16.msra.mxu0 %v1514
      %1554 = vmatmul.bf16.gmra.mxu0 %v1443
      %v1555 = vpop.f32.mrf.mxu0
      %v1556 = vadd.f32 %v1462, %v1555
      %v1557 = vpop.f32.mrf.mxu0
      %1558 = vdwg.mxu0
      %1559 = vmatpush.bf16.msra.mxu0 %v1529
      %1560 = vmatpush.bf16.msra.mxu0 %v1527
      %1561 = vmatpush.bf16.msra.mxu0 %v1525
      %1562 = vmatpush.bf16.msra.mxu0 %v1523
      %1563 = vmatpush.bf16.msra.mxu0 %v1521
      %1564 = vmatpush.bf16.msra.mxu0 %v1519
      %1565 = vmatpush.bf16.msra.mxu0 %v1517
      %1566 = vmatpush.bf16.msra.mxu0 %v1515
      %1567 = vmatmul.bf16.gmra.mxu0 %v1443
      %v1568 = vpop.f32.mrf.mxu0
      %v1569 = vadd.f32 %v1463, %v1568
      %v1570 = vpop.f32.mrf.mxu0
      %1571 = vdwg.mxu0
      %v1572 = vpack.c.bf16 %v1440, %v1440
      %v1573 = vpack.c.bf16 %v1556, %v1556
      %v1574 = vpack.c.bf16 %v1569, %v1569
      %v1576 = vsel %vm983, %v1572, 0
      %v1579 = vsel %vm983, %v1573, 0
      %1581 = vmatpush.bf16.xpose.msra.mxu0 0
      %1582 = vmatpush.bf16.xpose.msra.mxu0 0
      %1583 = vmatpush.bf16.xpose.msra.mxu0 0
      %1584 = vmatpush.bf16.xpose.msra.mxu0 0
      %1585 = vmatpush.bf16.xpose.msra.mxu0 0
      %1586 = vmatpush.bf16.xpose.msra.mxu0 0
      %1587 = vmatpush.bf16.xpose.msra.mxu0 0
      %1588 = vmatpush.bf16.xpose.msra.mxu0 %v1579
      %1589 = vmatmul.bf16.gmra.mxu0 %v1576
      %v1590 = vpop.f32.mrf.mxu0
      %v1591 = vadd.f32 0.0, %v1590
      %v1592 = vpop.f32.mrf.mxu0
      %1593 = vdwg.mxu0
      %v1595 = vunpack.c.l.b16 %v1572
      %v1596 = vpack.c.b16 %v1595, %v1595
      %1597 = vrot.lane.b32.xlu0 %v1596, 96
      %v1598 = vpop.permute.xlu0 %1597
      %v1600 = vunpack.c.l.b16 %v1573
      %v1601 = vpack.c.b16 %v1600, %v1600
      %1602 = vrot.lane.b32.xlu0 %v1601, 96
      %v1603 = vpop.permute.xlu0 %1602
      %v1605 = vsel %vm983, %v1598, 0
      %v1608 = vsel %vm983, %v1603, 0
      %1610 = vmatpush.bf16.xpose.msra.mxu0 0
      %1611 = vmatpush.bf16.xpose.msra.mxu0 0
      %1612 = vmatpush.bf16.xpose.msra.mxu0 0
      %1613 = vmatpush.bf16.xpose.msra.mxu0 0
      %1614 = vmatpush.bf16.xpose.msra.mxu0 0
      %1615 = vmatpush.bf16.xpose.msra.mxu0 0
      %1616 = vmatpush.bf16.xpose.msra.mxu0 0
      %1617 = vmatpush.bf16.xpose.msra.mxu0 %v1608
      %1618 = vmatmul.bf16.gmra.mxu0 %v1605
      %v1619 = vpop.f32.mrf.mxu0
      %v1620 = vadd.f32 0.0, %v1619
      %v1621 = vpop.f32.mrf.mxu0
      %1622 = vdwg.mxu0
      %1623 = vrot.lane.b32.xlu0 %v1596, 64
      %v1624 = vpop.permute.xlu0 %1623
      %1625 = vrot.lane.b32.xlu0 %v1601, 64
      %v1626 = vpop.permute.xlu0 %1625
      %v1628 = vsel %vm983, %v1624, 0
      %v1631 = vsel %vm983, %v1626, 0
      %1633 = vmatpush.bf16.xpose.msra.mxu0 0
      %1634 = vmatpush.bf16.xpose.msra.mxu0 0
      %1635 = vmatpush.bf16.xpose.msra.mxu0 0
      %1636 = vmatpush.bf16.xpose.msra.mxu0 0
      %1637 = vmatpush.bf16.xpose.msra.mxu0 0
      %1638 = vmatpush.bf16.xpose.msra.mxu0 0
      %1639 = vmatpush.bf16.xpose.msra.mxu0 0
      %1640 = vmatpush.bf16.xpose.msra.mxu0 %v1631
      %1641 = vmatmul.bf16.gmra.mxu0 %v1628
      %v1642 = vpop.f32.mrf.mxu0
      %v1643 = vadd.f32 0.0, %v1642
      %v1644 = vpop.f32.mrf.mxu0
      %1645 = vdwg.mxu0
      %1646 = vrot.lane.b32.xlu0 %v1596, 32
      %v1647 = vpop.permute.xlu0 %1646
      %1648 = vrot.lane.b32.xlu0 %v1601, 32
      %v1649 = vpop.permute.xlu0 %1648
      %v1651 = vsel %vm983, %v1647, 0
      %v1654 = vsel %vm983, %v1649, 0
      %1656 = vmatpush.bf16.xpose.msra.mxu0 0
      %1657 = vmatpush.bf16.xpose.msra.mxu0 0
      %1658 = vmatpush.bf16.xpose.msra.mxu0 0
      %1659 = vmatpush.bf16.xpose.msra.mxu0 0
      %1660 = vmatpush.bf16.xpose.msra.mxu0 0
      %1661 = vmatpush.bf16.xpose.msra.mxu0 0
      %1662 = vmatpush.bf16.xpose.msra.mxu0 0
      %1663 = vmatpush.bf16.xpose.msra.mxu0 %v1654
      %1664 = vmatmul.bf16.gmra.mxu0 %v1651
      %v1665 = vpop.f32.mrf.mxu0
      %v1666 = vadd.f32 0.0, %v1665
      %v1667 = vpop.f32.mrf.mxu0
      %1668 = vdwg.mxu0
      %v1669 = vmul.f32 %v1591, 0.17677669
      %v1670 = vmul.f32 %v1620, 0.17677669
      %v1671 = vmul.f32 %v1643, 0.17677669
      %v1672 = vmul.f32 %v1666, 0.17677669
      %v1673 = vsel %vm1086, %v1669, -inf
      %1674 = vmax.xlane.f32.xlu0 %v1673
      %v1675 = vpop.xlane.xlu0 %1674
      %v1676 = vsel %vm1086, %v1670, -inf
      %1677 = vmax.xlane.f32.xlu0 %v1676
      %v1678 = vpop.xlane.xlu0 %1677
      %v1679 = vsel %vm1086, %v1671, -inf
      %1680 = vmax.xlane.f32.xlu0 %v1679
      %v1681 = vpop.xlane.xlu0 %1680
      %v1682 = vsel %vm1086, %v1672, -inf
      %1683 = vmax.xlane.f32.xlu0 %v1682
      %v1684 = vpop.xlane.xlu0 %1683
      %v1685 = vsub.f32 %v1669, %v1675
      %v1686 = vsub.f32 %v1670, %v1678
      %v1687 = vsub.f32 %v1671, %v1681
      %v1688 = vsub.f32 %v1672, %v1684
      %v1689 = vmul.f32 %v1685, 1.442695
      %v1690 = vpow.pop %v1689
      %v1691 = vmul.f32 %v1686, 1.442695
      %v1692 = vpow.pop %v1691
      %v1693 = vmul.f32 %v1687, 1.442695
      %v1694 = vpow.pop %v1693
      %v1695 = vmul.f32 %v1688, 1.442695
      %v1696 = vpow.pop %v1695
      %v1697 = vsel %vm1086, %v1690, 0.0
      %1698 = vadd.xlane.f32.xlu0 %v1697
      %v1699 = vpop.xlane.xlu0 %1698
      %v1700 = vsel %vm1086, %v1692, 0.0
      %1701 = vadd.xlane.f32.xlu0 %v1700
      %v1702 = vpop.xlane.xlu0 %1701
      %v1703 = vsel %vm1086, %v1694, 0.0
      %1704 = vadd.xlane.f32.xlu0 %v1703
      %v1705 = vpop.xlane.xlu0 %1704
      %v1706 = vsel %vm1086, %v1696, 0.0
      %1707 = vadd.xlane.f32.xlu0 %v1706
      %v1708 = vpop.xlane.xlu0 %1707
      %v1709 = vrcp.pop %v1699
      %v1710 = vrcp.pop %v1702
      %v1711 = vrcp.pop %v1705
      %v1712 = vrcp.pop %v1708
      %v1713 = vmul.f32 %v1690, %v1709
      %v1714 = vmul.f32 %v1692, %v1710
      %v1715 = vmul.f32 %v1694, %v1711
      %v1716 = vmul.f32 %v1696, %v1712
      %v1717 = vpack.c.bf16 %v1713, %v1713
      %v1718 = vpack.c.bf16 %v1714, %v1714
      %v1719 = vpack.c.bf16 %v1715, %v1715
      %v1720 = vpack.c.bf16 %v1716, %v1716
      %v1722 = vsel %vm1086, %v1717, 0
      %v1725 = vsel %vm1138, %v1574, 0
      %1727 = vmatpush.bf16.msra.mxu0 0
      %1728 = vmatpush.bf16.msra.mxu0 0
      %1729 = vmatpush.bf16.msra.mxu0 0
      %1730 = vmatpush.bf16.msra.mxu0 0
      %1731 = vmatpush.bf16.msra.mxu0 0
      %1732 = vmatpush.bf16.msra.mxu0 0
      %1733 = vmatpush.bf16.msra.mxu0 0
      %1734 = vmatpush.bf16.msra.mxu0 %v1725
      %1735 = vmatmul.bf16.gmra.mxu0 %v1722
      %v1736 = vpop.f32.mrf.mxu0
      %v1737 = vadd.f32 0.0, %v1736
      %v1738 = vpop.f32.mrf.mxu0
      %1739 = vdwg.mxu0
      %1740 = vst.msk [vmem:[#allocation2] sm:$0xff] %vm983, %v1737
      %v1742 = vunpack.c.l.b16 %v1574
      %v1743 = vpack.c.b16 %v1742, %v1742
      %1744 = vrot.lane.b32.xlu0 %v1743, 96
      %v1745 = vpop.permute.xlu0 %1744
      %v1747 = vsel %vm1086, %v1718, 0
      %v1750 = vsel %vm1138, %v1745, 0
      %1752 = vmatpush.bf16.msra.mxu0 0
      %1753 = vmatpush.bf16.msra.mxu0 0
      %1754 = vmatpush.bf16.msra.mxu0 0
      %1755 = vmatpush.bf16.msra.mxu0 0
      %1756 = vmatpush.bf16.msra.mxu0 0
      %1757 = vmatpush.bf16.msra.mxu0 0
      %1758 = vmatpush.bf16.msra.mxu0 0
      %1759 = vmatpush.bf16.msra.mxu0 %v1750
      %1760 = vmatmul.bf16.gmra.mxu0 %v1747
      %v1761 = vpop.f32.mrf.mxu0
      %v1762 = vadd.f32 0.0, %v1761
      %v1763 = vpop.f32.mrf.mxu0
      %1764 = vdwg.mxu0
      %1766 = vrot.lane.b32.xlu0 %v1762, 32
      %v1767 = vpop.permute.xlu0 %1766
      %1769 = vst.msk [vmem:[#allocation2] sm:$0xff] %vm1184, %v1767
      %1770 = vrot.lane.b32.xlu0 %v1743, 64
      %v1771 = vpop.permute.xlu0 %1770
      %v1773 = vsel %vm1086, %v1719, 0
      %v1776 = vsel %vm1138, %v1771, 0
      %1778 = vmatpush.bf16.msra.mxu0 0
      %1779 = vmatpush.bf16.msra.mxu0 0
      %1780 = vmatpush.bf16.msra.mxu0 0
      %1781 = vmatpush.bf16.msra.mxu0 0
      %1782 = vmatpush.bf16.msra.mxu0 0
      %1783 = vmatpush.bf16.msra.mxu0 0
      %1784 = vmatpush.bf16.msra.mxu0 0
      %1785 = vmatpush.bf16.msra.mxu0 %v1776
      %1786 = vmatmul.bf16.gmra.mxu0 %v1773
      %v1787 = vpop.f32.mrf.mxu0
      %v1788 = vadd.f32 0.0, %v1787
      %v1789 = vpop.f32.mrf.mxu0
      %1790 = vdwg.mxu0
      %1792 = vrot.lane.b32.xlu0 %v1788, 64
      %v1793 = vpop.permute.xlu0 %1792
      %1795 = vst.msk [vmem:[#allocation2] sm:$0xff] %vm1211, %v1793
      %1796 = vrot.lane.b32.xlu0 %v1743, 32
      %v1797 = vpop.permute.xlu0 %1796
      %v1799 = vsel %vm1086, %v1720, 0
      %v1802 = vsel %vm1138, %v1797, 0
      %1804 = vmatpush.bf16.msra.mxu0 0
      %1805 = vmatpush.bf16.msra.mxu0 0
      %1806 = vmatpush.bf16.msra.mxu0 0
      %1807 = vmatpush.bf16.msra.mxu0 0
      %1808 = vmatpush.bf16.msra.mxu0 0
      %1809 = vmatpush.bf16.msra.mxu0 0
      %1810 = vmatpush.bf16.msra.mxu0 0
      %1811 = vmatpush.bf16.msra.mxu0 %v1802
      %1812 = vmatmul.bf16.gmra.mxu0 %v1799
      %v1813 = vpop.f32.mrf.mxu0
      %v1814 = vadd.f32 0.0, %v1813
      %v1815 = vpop.f32.mrf.mxu0
      %1816 = vdwg.mxu0
      %1818 = vrot.lane.b32.xlu0 %v1814, 96
      %v1819 = vpop.permute.xlu0 %1818
      %1821 = vst.msk [vmem:[#allocation2] sm:$0xff] %vm1238, %v1819
      %v1822 = vld [vmem:[#allocation2] sm:$0xff]
      %v1823 = vpack.c.bf16 %v1822, %v1822
      %v1824 = vld [vmem:[%s14] sm:$0xf]
      %v1825 = vld [vmem:[%s14 + $0x4] sm:$0xf]
      %v1826 = vld [vmem:[%s14 + $0x8] sm:$0xf]
      %v1827 = vld [vmem:[%s14 + $0xc] sm:$0xf]
      %v1828 = vld [vmem:[%s14 + $0x10] sm:$0xf]
      %v1829 = vld [vmem:[%s14 + $0x14] sm:$0xf]
      %v1830 = vld [vmem:[%s14 + $0x18] sm:$0xf]
      %v1831 = vld [vmem:[%s14 + $0x1c] sm:$0xf]
      %v1832 = vld [vmem:[%s14 + $0x20] sm:$0xf]
      %v1833 = vld [vmem:[%s14 + $0x24] sm:$0xf]
      %v1834 = vld [vmem:[%s14 + $0x28] sm:$0xf]
      %v1835 = vld [vmem:[%s14 + $0x2c] sm:$0xf]
      %v1836 = vld [vmem:[%s14 + $0x30] sm:$0xf]
      %v1837 = vld [vmem:[%s14 + $0x34] sm:$0xf]
      %v1838 = vld [vmem:[%s14 + $0x38] sm:$0xf]
      %v1839 = vld [vmem:[%s14 + $0x3c] sm:$0xf]
      %v1840 = vld [vmem:[%s15] sm:$0x1]
      %v1842 = vperm.slane %v1840, 0
      %v1860 = vunpack.c.l.b16 %v1824
      %v1861 = vunpack.c.l.b16 %v1825
      %v1862 = vunpack.c.l.b16 %v1826
      %v1863 = vunpack.c.l.b16 %v1827
      %v1864 = vunpack.c.l.b16 %v1828
      %v1865 = vunpack.c.l.b16 %v1829
      %v1866 = vunpack.c.l.b16 %v1830
      %v1867 = vunpack.c.l.b16 %v1831
      %v1868 = vunpack.c.l.b16 %v1832
      %v1869 = vunpack.c.l.b16 %v1833
      %v1870 = vunpack.c.l.b16 %v1834
      %v1871 = vunpack.c.l.b16 %v1835
      %v1872 = vunpack.c.l.b16 %v1836
      %v1873 = vunpack.c.l.b16 %v1837
      %v1874 = vunpack.c.l.b16 %v1838
      %v1875 = vunpack.c.l.b16 %v1839
      %v1876 = vpack.c.b16 %v1861, %v1860
      %v1877 = vpack.c.b16 %v1863, %v1862
      %v1878 = vpack.c.b16 %v1865, %v1864
      %v1879 = vpack.c.b16 %v1867, %v1866
      %v1880 = vpack.c.b16 %v1869, %v1868
      %v1881 = vpack.c.b16 %v1871, %v1870
      %v1882 = vpack.c.b16 %v1873, %v1872
      %v1883 = vpack.c.b16 %v1875, %v1874
      %1892 = vmatpush.bf16.msra.mxu0 %v1883
      %1893 = vmatpush.bf16.msra.mxu0 %v1882
      %1894 = vmatpush.bf16.msra.mxu0 %v1881
      %1895 = vmatpush.bf16.msra.mxu0 %v1880
      %1896 = vmatpush.bf16.msra.mxu0 %v1879
      %1897 = vmatpush.bf16.msra.mxu0 %v1878
      %1898 = vmatpush.bf16.msra.mxu0 %v1877
      %1899 = vmatpush.bf16.msra.mxu0 %v1876
      %1900 = vmatmul.bf16.gmra.mxu0 %v1823
      %v1901 = vpop.f32.mrf.mxu0
      %v1902 = vadd.f32 %v1842, %v1901
      %v1903 = vpop.f32.mrf.mxu0
      %1904 = vdwg.mxu0
      %v1905 = vadd.f32 %v1360, %v1902
      %v1906 = vld [vmem:[%s16] sm:$0x1]
      %v1907 = vld [vmem:[%s17] sm:$0x1]
      %1908 = vadd.xlane.f32.xlu0 %v1905
      %v1909 = vpop.xlane.xlu0 %1908
      %v1910 = vmul.f32 %v1909, %v1334
      %v1911 = vsub.f32 %v1905, %v1910
      %v1912 = vmul.f32 %v1911, %v1911
      %1913 = vadd.xlane.f32.xlu0 %v1912
      %v1914 = vpop.xlane.xlu0 %1913
      %v1915 = vmul.f32 %v1914, %v1334
      %v1916 = vadd.f32 %v1915, 1e-05
      %v1917 = vrsqrt.pop %v1916
      %v1918 = vmul.f32 %v1917, %v1916
      %v1919 = vmul.f32 %v1918, %v1917
      %v1920 = vmul.f32 0.5, %v1919
      %v1921 = vsub.f32 1.5, %v1920
      %v1922 = vmul.f32 %v1917, %v1921
      %vm1923 = vweird.f32 %v1916
      %vm1924 = vweird.f32 %v1917
      %vm1925 = vmor %vm1923, %vm1924
      %v1926 = vsel %vm1925, %v1917, %v1922
      %v1927 = vmul.f32 %v1911, %v1926
      %v1929 = vperm.slane %v1906, 0
      %v1931 = vmul.f32 %v1927, %v1929
      %v1933 = vperm.slane %v1907, 0
      %v1935 = vadd.f32 %v1931, %v1933
      %v1936 = vpack.c.bf16 %v1935, %v1935
      %v1937 = vld [vmem:[%s18] sm:$0xff]
      %v1938 = vld [vmem:[%s18 + $0x8] sm:$0xff]
      %v1939 = vld [vmem:[%s18 + $0x10] sm:$0xff]
      %v1940 = vld [vmem:[%s18 + $0x18] sm:$0xff]
      %v1941 = vld [vmem:[%s18 + $0x20] sm:$0xff]
      %v1942 = vld [vmem:[%s18 + $0x28] sm:$0xff]
      %v1943 = vld [vmem:[%s18 + $0x30] sm:$0xff]
      %v1944 = vld [vmem:[%s18 + $0x38] sm:$0xff]
      %v1945 = vld [vmem:[%s18 + $0x40] sm:$0xff]
      %v1946 = vld [vmem:[%s18 + $0x48] sm:$0xff]
      %v1947 = vld [vmem:[%s18 + $0x50] sm:$0xff]
      %v1948 = vld [vmem:[%s18 + $0x58] sm:$0xff]
      %v1949 = vld [vmem:[%s18 + $0x60] sm:$0xff]
      %v1950 = vld [vmem:[%s18 + $0x68] sm:$0xff]
      %v1951 = vld [vmem:[%s18 + $0x70] sm:$0xff]
      %v1952 = vld [vmem:[%s18 + $0x78] sm:$0xff]
      %v1953 = vld [vmem:[%s19] sm:$0x3]
      %v1955 = vperm.slane %v1953, 0
      %v1956 = vperm.slane %v1953, 1
      %v1975 = vunpack.c.l.b16 %v1937
      %v1976 = vunpack.c.h.b16 %v1937
      %v1977 = vunpack.c.l.b16 %v1938
      %v1978 = vunpack.c.h.b16 %v1938
      %v1979 = vunpack.c.l.b16 %v1939
      %v1980 = vunpack.c.h.b16 %v1939
      %v1981 = vunpack.c.l.b16 %v1940
      %v1982 = vunpack.c.h.b16 %v1940
      %v1983 = vunpack.c.l.b16 %v1941
      %v1984 = vunpack.c.h.b16 %v1941
      %v1985 = vunpack.c.l.b16 %v1942
      %v1986 = vunpack.c.h.b16 %v1942
      %v1987 = vunpack.c.l.b16 %v1943
      %v1988 = vunpack.c.h.b16 %v1943
      %v1989 = vunpack.c.l.b16 %v1944
      %v1990 = vunpack.c.h.b16 %v1944
      %v1991 = vunpack.c.l.b16 %v1945
      %v1992 = vunpack.c.h.b16 %v1945
      %v1993 = vunpack.c.l.b16 %v1946
      %v1994 = vunpack.c.h.b16 %v1946
      %v1995 = vunpack.c.l.b16 %v1947
      %v1996 = vunpack.c.h.b16 %v1947
      %v1997 = vunpack.c.l.b16 %v1948
      %v1998 = vunpack.c.h.b16 %v1948
      %v1999 = vunpack.c.l.b16 %v1949
      %v2000 = vunpack.c.h.b16 %v1949
      %v2001 = vunpack.c.l.b16 %v1950
      %v2002 = vunpack.c.h.b16 %v1950
      %v2003 = vunpack.c.l.b16 %v1951
      %v2004 = vunpack.c.h.b16 %v1951
      %v2005 = vunpack.c.l.b16 %v1952
      %v2006 = vunpack.c.h.b16 %v1952
      %v2007 = vpack.c.b16 %v1977, %v1975
      %v2008 = vpack.c.b16 %v1978, %v1976
      %v2009 = vpack.c.b16 %v1981, %v1979
      %v2010 = vpack.c.b16 %v1982, %v1980
      %v2011 = vpack.c.b16 %v1985, %v1983
      %v2012 = vpack.c.b16 %v1986, %v1984
      %v2013 = vpack.c.b16 %v1989, %v1987
      %v2014 = vpack.c.b16 %v1990, %v1988
      %v2015 = vpack.c.b16 %v1993, %v1991
      %v2016 = vpack.c.b16 %v1994, %v1992
      %v2017 = vpack.c.b16 %v1997, %v1995
      %v2018 = vpack.c.b16 %v1998, %v1996
      %v2019 = vpack.c.b16 %v2001, %v1999
      %v2020 = vpack.c.b16 %v2002, %v2000
      %v2021 = vpack.c.b16 %v2005, %v2003
      %v2022 = vpack.c.b16 %v2006, %v2004
      %2039 = vmatpush.bf16.msra.mxu0 %v2021
      %2040 = vmatpush.bf16.msra.mxu0 %v2019
      %2041 = vmatpush.bf16.msra.mxu0 %v2017
      %2042 = vmatpush.bf16.msra.mxu0 %v2015
      %2043 = vmatpush.bf16.msra.mxu0 %v2013
      %2044 = vmatpush.bf16.msra.mxu0 %v2011
      %2045 = vmatpush.bf16.msra.mxu0 %v2009
      %2046 = vmatpush.bf16.msra.mxu0 %v2007
      %2047 = vmatmul.bf16.gmra.mxu0 %v1936
      %v2048 = vpop.f32.mrf.mxu0
      %v2049 = vadd.f32 %v1955, %v2048
      %v2050 = vpop.f32.mrf.mxu0
      %2051 = vdwg.mxu0
      %2052 = vmatpush.bf16.msra.mxu0 %v2022
      %2053 = vmatpush.bf16.msra.mxu0 %v2020
      %2054 = vmatpush.bf16.msra.mxu0 %v2018
      %2055 = vmatpush.bf16.msra.mxu0 %v2016
      %2056 = vmatpush.bf16.msra.mxu0 %v2014
      %2057 = vmatpush.bf16.msra.mxu0 %v2012
      %2058 = vmatpush.bf16.msra.mxu0 %v2010
      %2059 = vmatpush.bf16.msra.mxu0 %v2008
      %2060 = vmatmul.bf16.gmra.mxu0 %v1936
      %v2061 = vpop.f32.mrf.mxu0
      %v2062 = vadd.f32 %v1956, %v2061
      %v2063 = vpop.f32.mrf.mxu0
      %2064 = vdwg.mxu0
      %v2065 = vmul.f32 %v2049, %v2049
      %v2066 = vmul.f32 %v2062, %v2062
      %v2067 = vmul.f32 %v2049, %v2065
      %v2068 = vmul.f32 %v2062, %v2066
      %v2069 = vmul.f32 %v2067, 0.044715
      %v2070 = vmul.f32 %v2068, 0.044715
      %v2071 = vadd.f32 %v2049, %v2069
      %v2072 = vadd.f32 %v2062, %v2070
      %v2073 = vmul.f32 %v2071, 0.7978846
      %v2074 = vmul.f32 %v2072, 0.7978846
      %v2075 = vtanh.pop %v2073
      %v2076 = vtanh.pop %v2074
      %v2077 = vadd.f32 %v2075, 1.0
      %v2078 = vadd.f32 %v2076, 1.0
      %v2079 = vmul.f32 %v2077, 0.5
      %v2080 = vmul.f32 %v2078, 0.5
      %v2081 = vmul.f32 %v2049, %v2079
      %v2082 = vmul.f32 %v2062, %v2080
      %v2083 = vpack.c.bf16 %v2081, %v2081
      %v2084 = vpack.c.bf16 %v2082, %v2082
      %v2085 = vld [vmem:[%s20] sm:$0xf]
      %v2086 = vld [vmem:[%s20 + $0x4] sm:$0xf]
      %v2087 = vld [vmem:[%s20 + $0x8] sm:$0xf]
      %v2088 = vld [vmem:[%s20 + $0xc] sm:$0xf]
      %v2089 = vld [vmem:[%s20 + $0x10] sm:$0xf]
      %v2090 = vld [vmem:[%s20 + $0x14] sm:$0xf]
      %v2091 = vld [vmem:[%s20 + $0x18] sm:$0xf]
      %v2092 = vld [vmem:[%s20 + $0x1c] sm:$0xf]
      %v2093 = vld [vmem:[%s20 + $0x20] sm:$0xf]
      %v2094 = vld [vmem:[%s20 + $0x24] sm:$0xf]
      %v2095 = vld [vmem:[%s20 + $0x28] sm:$0xf]
      %v2096 = vld [vmem:[%s20 + $0x2c] sm:$0xf]
      %v2097 = vld [vmem:[%s20 + $0x30] sm:$0xf]
      %v2098 = vld [vmem:[%s20 + $0x34] sm:$0xf]
      %v2099 = vld [vmem:[%s20 + $0x38] sm:$0xf]
      %v2100 = vld [vmem:[%s20 + $0x3c] sm:$0xf]
      %v2101 = vld [vmem:[%s20 + $0x40] sm:$0xf]
      %v2102 = vld [vmem:[%s20 + $0x44] sm:$0xf]
      %v2103 = vld [vmem:[%s20 + $0x48] sm:$0xf]
      %v2104 = vld [vmem:[%s20 + $0x4c] sm:$0xf]
      %v2105 = vld [vmem:[%s20 + $0x50] sm:$0xf]
      %v2106 = vld [vmem:[%s20 + $0x54] sm:$0xf]
      %v2107 = vld [vmem:[%s20 + $0x58] sm:$0xf]
      %v2108 = vld [vmem:[%s20 + $0x5c] sm:$0xf]
      %v2109 = vld [vmem:[%s20 + $0x60] sm:$0xf]
      %v2110 = vld [vmem:[%s20 + $0x64] sm:$0xf]
      %v2111 = vld [vmem:[%s20 + $0x68] sm:$0xf]
      %v2112 = vld [vmem:[%s20 + $0x6c] sm:$0xf]
      %v2113 = vld [vmem:[%s20 + $0x70] sm:$0xf]
      %v2114 = vld [vmem:[%s20 + $0x74] sm:$0xf]
      %v2115 = vld [vmem:[%s20 + $0x78] sm:$0xf]
      %v2116 = vld [vmem:[%s20 + $0x7c] sm:$0xf]
      %v2117 = vld [vmem:[%s21] sm:$0x1]
      %v2119 = vperm.slane %v2117, 0
      %v2153 = vunpack.c.l.b16 %v2085
      %v2154 = vunpack.c.l.b16 %v2086
      %v2155 = vunpack.c.l.b16 %v2087
      %v2156 = vunpack.c.l.b16 %v2088
      %v2157 = vunpack.c.l.b16 %v2089
      %v2158 = vunpack.c.l.b16 %v2090
      %v2159 = vunpack.c.l.b16 %v2091
      %v2160 = vunpack.c.l.b16 %v2092
      %v2161 = vunpack.c.l.b16 %v2093
      %v2162 = vunpack.c.l.b16 %v2094
      %v2163 = vunpack.c.l.b16 %v2095
      %v2164 = vunpack.c.l.b16 %v2096
      %v2165 = vunpack.c.l.b16 %v2097
      %v2166 = vunpack.c.l.b16 %v2098
      %v2167 = vunpack.c.l.b16 %v2099
      %v2168 = vunpack.c.l.b16 %v2100
      %v2169 = vunpack.c.l.b16 %v2101
      %v2170 = vunpack.c.l.b16 %v2102
      %v2171 = vunpack.c.l.b16 %v2103
      %v2172 = vunpack.c.l.b16 %v2104
      %v2173 = vunpack.c.l.b16 %v2105
      %v2174 = vunpack.c.l.b16 %v2106
      %v2175 = vunpack.c.l.b16 %v2107
      %v2176 = vunpack.c.l.b16 %v2108
      %v2177 = vunpack.c.l.b16 %v2109
      %v2178 = vunpack.c.l.b16 %v2110
      %v2179 = vunpack.c.l.b16 %v2111
      %v2180 = vunpack.c.l.b16 %v2112
      %v2181 = vunpack.c.l.b16 %v2113
      %v2182 = vunpack.c.l.b16 %v2114
      %v2183 = vunpack.c.l.b16 %v2115
      %v2184 = vunpack.c.l.b16 %v2116
      %v2185 = vpack.c.b16 %v2154, %v2153
      %v2186 = vpack.c.b16 %v2156, %v2155
      %v2187 = vpack.c.b16 %v2158, %v2157
      %v2188 = vpack.c.b16 %v2160, %v2159
      %v2189 = vpack.c.b16 %v2162, %v2161
      %v2190 = vpack.c.b16 %v2164, %v2163
      %v2191 = vpack.c.b16 %v2166, %v2165
      %v2192 = vpack.c.b16 %v2168, %v2167
      %v2193 = vpack.c.b16 %v2170, %v2169
      %v2194 = vpack.c.b16 %v2172, %v2171
      %v2195 = vpack.c.b16 %v2174, %v2173
      %v2196 = vpack.c.b16 %v2176, %v2175
      %v2197 = vpack.c.b16 %v2178, %v2177
      %v2198 = vpack.c.b16 %v2180, %v2179
      %v2199 = vpack.c.b16 %v2182, %v2181
      %v2200 = vpack.c.b16 %v2184, %v2183
      %2217 = vmatpush.bf16.msra.mxu0 %v2192
      %2218 = vmatpush.bf16.msra.mxu0 %v2191
      %2219 = vmatpush.bf16.msra.mxu0 %v2190
      %2220 = vmatpush.bf16.msra.mxu0 %v2189
      %2221 = vmatpush.bf16.msra.mxu0 %v2188
      %2222 = vmatpush.bf16.msra.mxu0 %v2187
      %2223 = vmatpush.bf16.msra.mxu0 %v2186
      %2224 = vmatpush.bf16.msra.mxu0 %v2185
      %2225 = vmatmul.bf16.gmra.mxu0 %v2083
      %v2226 = vpop.f32.mrf.mxu0
      %v2227 = vadd.f32 %v2119, %v2226
      %v2228 = vpop.f32.mrf.mxu0
      %2229 = vdwg.mxu0
      %2230 = vmatpush.bf16.msra.mxu0 %v2200
      %2231 = vmatpush.bf16.msra.mxu0 %v2199
      %2232 = vmatpush.bf16.msra.mxu0 %v2198
      %2233 = vmatpush.bf16.msra.mxu0 %v2197
      %2234 = vmatpush.bf16.msra.mxu0 %v2196
      %2235 = vmatpush.bf16.msra.mxu0 %v2195
      %2236 = vmatpush.bf16.msra.mxu0 %v2194
      %2237 = vmatpush.bf16.msra.mxu0 %v2193
      %2238 = vmatmul.bf16.gmra.mxu0 %v2084
      %v2239 = vpop.f32.mrf.mxu0
      %v2240 = vadd.f32 %v2227, %v2239
      %v2241 = vpop.f32.mrf.mxu0
      %2242 = vdwg.mxu0
      %v2243 = vadd.f32 %v1935, %v2240
      %v2244 = vld [vmem:[%s22] sm:$0x1]
      %v2245 = vld [vmem:[%s23] sm:$0x1]
      %2246 = vadd.xlane.f32.xlu0 %v2243
      %v2247 = vpop.xlane.xlu0 %2246
      %v2248 = vmul.f32 %v2247, %v1334
      %v2249 = vsub.f32 %v2243, %v2248
      %v2250 = vmul.f32 %v2249, %v2249
      %2251 = vadd.xlane.f32.xlu0 %v2250
      %v2252 = vpop.xlane.xlu0 %2251
      %v2253 = vmul.f32 %v2252, %v1334
      %v2254 = vadd.f32 %v2253, 1e-05
      %v2255 = vrsqrt.pop %v2254
      %v2256 = vmul.f32 %v2255, %v2254
      %v2257 = vmul.f32 %v2256, %v2255
      %v2258 = vmul.f32 0.5, %v2257
      %v2259 = vsub.f32 1.5, %v2258
      %v2260 = vmul.f32 %v2255, %v2259
      %vm2261 = vweird.f32 %v2254
      %vm2262 = vweird.f32 %v2255
      %vm2263 = vmor %vm2261, %vm2262
      %v2264 = vsel %vm2263, %v2255, %v2260
      %v2265 = vmul.f32 %v2249, %v2264
      %v2267 = vperm.slane %v2244, 0
      %v2269 = vmul.f32 %v2265, %v2267
      %v2271 = vperm.slane %v2245, 0
      %v2273 = vadd.f32 %v2269, %v2271
      %v2274 = vpack.c.bf16 %v2273, %v2273
      %2275 = vst [vmem:[%s763] sm:$0xf] %v2274
      %p2276 = scmp.lt.s32.totalorder %s35, 1
      %s2277 = scalar_select %p2276, %s35, 1
      %s2278 = smul.addr %s2277, 4
      %s2279 = scalar_lea.vmem %s24, %s2278
      // Predicated region
      $region117: #{blip_forward.4} parent=115 // pred_check
        %p2280 = pneg %p572
      $region118: #{blip_forward.4} parent=115 // pred_check_branch
        %2282 = sbr.rel (%p2280) target = $region120
      $region119: #{blip_forward.4} parent=115 // pred_region
        _
      $region120: #{blip_forward.4} parent=115 // pred_fallthru
        _
    $region116: #{blip_forward.4} parent=5 // pred_fallthru
      _
    %p2283 = scmp.le.s32.totalorder 2, %s30
    // Predicated region
    $region121: #{blip_forward.4} parent=5 // pred_check
      %p2284 = pneg %p2283
    $region122: #{blip_forward.4} parent=5 // pred_check_branch
      %2286 = sbr.rel (%p2284) target = $region124
    $region123: #{blip_forward.4} parent=5 // pred_region
      %s2287 = ssub.s32 %s30, 2
      // Predicated region
      $region125: #{blip_forward.4} parent=123 // pred_check
        %p2288 = pneg %p578
      $region126: #{blip_forward.4} parent=123 // pred_check_branch
        %2290 = sbr.rel (%p2288) target = $region128
      $region127: #{blip_forward.4} parent=123 // pred_region
        %p2291 = scmp.lt.s32.totalorder %s36, 1
        %s2292 = scalar_select %p2291, %s36, 1
        %s2293 = smul.addr %s2292, 4
        %s2294 = scalar_lea.vmem %s24, %s2293
      $region128: #{blip_forward.4} parent=123 // pred_fallthru
        _
    $region124: #{blip_forward.4} parent=5 // pred_fallthru
      _
  $region6: #{blip_forward.4} parent=0 // loop_footer
    %s34 = sadd.s32 1, %s30
  $region7: #{blip_forward.4} parent=0 // loop_footer_branch
    %29 = sbr.rel target = $region3
  $region8: #{blip_forward.4} parent=0 // loop_exit
    _

</llo_original>
